<compile_context>
chip_gen: v7x
topology: tpu7x:2x2x1
jax: 0.10.0
libtpu: 0.0.40
codegen_flags: <defaults>
</compile_context>

<pallas_src>
import functools

import jax
import jax.numpy as jnp
from jax.experimental import pallas as pl
from jax.experimental.pallas import tpu as pltpu


def _round_up(x, m):
    return (x + m - 1) // m * m


def _pick_tile(full, unit, max_tile):
    """Tile size (multiple of `unit`, <= max_tile) and padded extent."""
    t = min(_round_up(full, unit), max_tile)
    return t, _round_up(full, t)


# ---------------------------------------------------------------------------
# Pallas kernel 1a: resident-weight GEMM (single K block) with fused
# BatchNorm scale/bias + ReLU epilogue.  Grid = (M tiles,); B / scale / bias
# have constant index maps so they are fetched from HBM exactly once.
# ---------------------------------------------------------------------------
def _mm_bn_relu_resident_kernel(a_ref, b_ref, s_ref, t_ref, o_ref, *, relu):
    y = jnp.dot(a_ref[...], b_ref[...], preferred_element_type=jnp.float32)
    y = y * s_ref[...] + t_ref[...]
    if relu:
        y = jnp.maximum(y, 0.0)
    o_ref[...] = y.astype(o_ref.dtype)


# ---------------------------------------------------------------------------
# Pallas kernel 1b: K-tiled GEMM (f32 VMEM accumulator) for large-K fallbacks
# (im2col path).  Grid = (M tiles, K tiles); N kept full width.
# ---------------------------------------------------------------------------
def _mm_bn_relu_ktiled_kernel(a_ref, b_ref, s_ref, t_ref, o_ref, acc_ref, *,
                              relu):
    k = pl.program_id(1)

    @pl.when(k == 0)
    def _():
        acc_ref[...] = jnp.zeros_like(acc_ref)

    acc_ref[...] += jnp.dot(a_ref[...], b_ref[...],
                            preferred_element_type=jnp.float32)

    @pl.when(k == pl.num_programs(1) - 1)
    def _():
        y = acc_ref[...] * s_ref[...] + t_ref[...]
        if relu:
            y = jnp.maximum(y, 0.0)
        o_ref[...] = y.astype(o_ref.dtype)


def _pick_k_tile(K):
    # Largest K tile (multiple of 128) whose padding waste is <= 5%; otherwise
    # minimal padding (prefer larger tiles on ties).
    cands = (512, 384, 256, 128)
    for tk in cands:
        kp = _round_up(K, tk)
        if (kp - K) <= 0.05 * K:
            return tk, kp
    kp, neg_tk = min((_round_up(K, tk), -tk) for tk in cands)
    return -neg_tk, kp


def _pick_tm(M):
    if M >= 1024:
        return 512
    if M >= 512:
        return 256          # >= 2 parallel M tiles keeps dual-TC chips busy
    return _round_up(M, 8)


@functools.partial(jax.jit, static_argnames=("relu",))
def matmul_bn_relu(a, b, scale, bias, relu=True):
    """a: [M, K], b: [K, N], scale/bias: [N].  Returns bf16 [M, N]."""
    M, K = a.shape
    N = b.shape[1]
    Np = _round_up(N, 128)             # full-width N (<= 768 in I3D)
    tm = _pick_tm(M)
    Mp = _round_up(M, tm)

    s_p = jnp.pad(scale.astype(jnp.float32), (0, Np - N)).reshape(1, Np)
    t_p = jnp.pad(bias.astype(jnp.float32), (0, Np - N)).reshape(1, Np)

    if K <= 2048:
        # Single resident K block: no K grid axis, no 128-padding copy of A.
        K8 = _round_up(K, 8)
        a_p = jnp.pad(a.astype(jnp.bfloat16), ((0, Mp - M), (0, K8 - K)))
        b_p = jnp.pad(b.astype(jnp.bfloat16), ((0, K8 - K), (0, Np - N)))
        cost = pl.CostEstimate(
            flops=2 * Mp * K8 * Np, transcendentals=0,
            bytes_accessed=a_p.size * 2 + b_p.size * 2 + Mp * Np * 2 + 8 * Np)
        out = pl.pallas_call(
            functools.partial(_mm_bn_relu_resident_kernel, relu=relu),
            out_shape=jax.ShapeDtypeStruct((Mp, Np), jnp.bfloat16),
            grid_spec=pltpu.PrefetchScalarGridSpec(
                num_scalar_prefetch=0,
                grid=(Mp // tm,),
                in_specs=[
                    pl.BlockSpec((tm, K8), lambda i: (i, 0)),
                    pl.BlockSpec((K8, Np), lambda i: (0, 0)),
                    pl.BlockSpec((1, Np), lambda i: (0, 0)),
                    pl.BlockSpec((1, Np), lambda i: (0, 0)),
                ],
                out_specs=pl.BlockSpec((tm, Np), lambda i: (i, 0)),
            ),
            compiler_params=pltpu.CompilerParams(
                dimension_semantics=("parallel",)),
            cost_estimate=cost,
        )(a_p, b_p, s_p, t_p)
    else:
        tk, Kp = _pick_k_tile(K)
        a_p = jnp.pad(a.astype(jnp.bfloat16), ((0, Mp - M), (0, Kp - K)))
        b_p = jnp.pad(b.astype(jnp.bfloat16), ((0, Kp - K), (0, Np - N)))
        cost = pl.CostEstimate(
            flops=2 * Mp * Kp * Np, transcendentals=0,
            bytes_accessed=(a_p.size * 2 + b_p.size * 2 * (Mp // tm)
                            + Mp * Np * 2))
        out = pl.pallas_call(
            functools.partial(_mm_bn_relu_ktiled_kernel, relu=relu),
            out_shape=jax.ShapeDtypeStruct((Mp, Np), jnp.bfloat16),
            grid_spec=pltpu.PrefetchScalarGridSpec(
                num_scalar_prefetch=0,
                grid=(Mp // tm, Kp // tk),
                in_specs=[
                    pl.BlockSpec((tm, tk), lambda i, k: (i, k)),
                    pl.BlockSpec((tk, Np), lambda i, k: (k, 0)),
                    pl.BlockSpec((1, Np), lambda i, k: (0, 0)),
                    pl.BlockSpec((1, Np), lambda i, k: (0, 0)),
                ],
                out_specs=pl.BlockSpec((tm, Np), lambda i, k: (i, 0)),
                scratch_shapes=[pltpu.VMEM((tm, Np), jnp.float32)],
            ),
            compiler_params=pltpu.CompilerParams(
                dimension_semantics=("parallel", "arbitrary")),
            cost_estimate=cost,
        )(a_p, b_p, s_p, t_p)
    return out[:M, :N]


# ---------------------------------------------------------------------------
# Pallas kernel 2: DIRECT stride-1 conv3d (no im2col).  One (batch, out-depth)
# slice per grid step.  The padded activation for a batch element is stored
# flattened as [Dp, Hp*Wp8, Cin] so each of the kD*kH*kW taps is a contiguous
# row-slice of the (H*W)-flattened plane (rows past Wo are garbage columns
# that are dropped before the store).  The activation block index is constant
# along the depth axis, so it is DMA'd from HBM once per batch element.
# ---------------------------------------------------------------------------
def _conv3d_s1_kernel(x_ref, w_ref, s_ref, t_ref, o_ref, *,
                      kD, kH, kW, Ho, Wo, Wp8, relu):
    d = pl.program_id(1)
    rows = Ho * Wp8
    cout = o_ref.shape[-1]
    acc = jnp.zeros((rows, cout), jnp.float32)
    for kd in range(kD):
        xd = x_ref[d + kd]                       # (Hp*Wp8, Cin) bf16
        for kh in range(kH):
            for kw in range(kW):
                off = kh * Wp8 + kw
                a = xd[off:off + rows, :]
                t = (kd * kH + kh) * kW + kw
                acc = acc + jnp.dot(a, w_ref[t],
                                    preferred_element_type=jnp.float32)
    y = acc * s_ref[...] + t_ref[...]
    if relu:
        y = jnp.maximum(y, 0.0)
    y = y.reshape(Ho, Wp8, cout)[:, :Wo, :]      # drop padded / garbage cols
    o_ref[...] = y.astype(o_ref.dtype)


def _conv3d_direct_s1(x, w, scale, bias, relu):
    N, D, H, W, Cin = x.shape
    kD, kH, kW, _, Cout = w.shape
    Do, Ho, Wo = D, H, W                                   # stride-1 SAME
    (pd0, pd1), (ph0, ph1), (pw0, pw1) = _same_pads((kD, kH, kW), (1, 1, 1))
    Wp = W + pw0 + pw1
    Wp8 = _round_up(max(Wp, 8), 8)      # sublane-aligned padded width
    Hp = H + ph0 + ph1 + 1              # +1 guard row for last-tap row slice
    Dp = D + pd0 + pd1
    xp = jnp.pad(x, ((0, 0), (pd0, pd1), (ph0, ph1 + 1),
                     (pw0, pw1 + (Wp8 - Wp)), (0, 0)))
    x_flat = xp.reshape(N, Dp, Hp * Wp8, Cin)              # metadata reshape
    T = kD * kH * kW
    w_flat = w.reshape(T, Cin, Cout).astype(jnp.bfloat16)
    s2 = scale.astype(jnp.float32).reshape(1, Cout)
    t2 = bias.astype(jnp.float32).reshape(1, Cout)

    cost = pl.CostEstimate(
        flops=2 * N * Do * Ho * Wo * T * Cin * Cout,
        transcendentals=0,
        bytes_accessed=(x_flat.size * 2 + w_flat.size * 2
                        + N * Do * Ho * Wo * Cout * 2 + 8 * Cout))
    return pl.pallas_call(
        functools.partial(_conv3d_s1_kernel, kD=kD, kH=kH, kW=kW,
                          Ho=Ho, Wo=Wo, Wp8=Wp8, relu=relu),
        out_shape=jax.ShapeDtypeStruct((N, Do, Ho, Wo, Cout), jnp.bfloat16),
        grid_spec=pltpu.PrefetchScalarGridSpec(
            num_scalar_prefetch=0,
            grid=(N, Do),
            in_specs=[
                pl.BlockSpec((None, Dp, Hp * Wp8, Cin),
                             lambda b, d: (b, 0, 0, 0)),
                pl.BlockSpec((T, Cin, Cout), lambda b, d: (0, 0, 0)),
                pl.BlockSpec((1, Cout), lambda b, d: (0, 0)),
                pl.BlockSpec((1, Cout), lambda b, d: (0, 0)),
            ],
            out_specs=pl.BlockSpec((None, None, Ho, Wo, Cout),
                                   lambda b, d: (b, d, 0, 0, 0)),
        ),
        compiler_params=pltpu.CompilerParams(
            dimension_semantics=("parallel", "arbitrary")),
        cost_estimate=cost,
    )(x_flat, w_flat, s2, t2)


def _direct_conv_vmem_ok(Dp, flat_rows, Cin, T, Cout, Ho, Wo, Wp8):
    x_blk = Dp * flat_rows * Cin * 2
    w_b = T * Cin * Cout * 2
    out_blk = Ho * Wo * Cout * 2
    acc = Ho * Wp8 * Cout * 4
    return (2 * x_blk + 2 * w_b + 2 * out_blk + 2 * acc) <= 12 * 1024 * 1024


# ---------------------------------------------------------------------------
# Pallas kernel 3: dense (stride-1) windowed max along the middle axis of a
# [P, A, Q] view.  The k shifted windows are read from VMEM (no HBM tap
# stack); stride is applied afterwards by a cheap glue subsample.
# ---------------------------------------------------------------------------
def _pool_axis_kernel(x_ref, o_ref, *, k):
    ad = o_ref.shape[1]
    acc = x_ref[:, 0:ad, :]
    for t in range(1, k):
        acc = jnp.maximum(acc, x_ref[:, t:t + ad, :])
    o_ref[...] = acc


def _pool1d_dense(x3, k):
    """x3: [P, A, Q] -> stride-1 windowed max over axis 1 -> [P, A-k+1, Q]."""
    P, A, Q = x3.shape
    Ad = A - k + 1
    Qt, Qp = _pick_tile(Q, 128, 2048)
    row_bytes = A * Qt * x3.dtype.itemsize
    Pt = max(1, min(P, (2 << 20) // row_bytes))   # ~2 MiB input blocks
    Pp = _round_up(P, Pt)
    x_p = jnp.pad(x3, ((0, Pp - P), (0, 0), (0, Qp - Q)))
    out = pl.pallas_call(
        functools.partial(_pool_axis_kernel, k=k),
        out_shape=jax.ShapeDtypeStruct((Pp, Ad, Qp), x3.dtype),
        grid_spec=pltpu.PrefetchScalarGridSpec(
            num_scalar_prefetch=0,
            grid=(Pp // Pt, Qp // Qt),
            in_specs=[pl.BlockSpec((Pt, A, Qt), lambda i, j: (i, 0, j))],
            out_specs=pl.BlockSpec((Pt, Ad, Qt), lambda i, j: (i, 0, j)),
        ),
        compiler_params=pltpu.CompilerParams(
            dimension_semantics=("parallel", "parallel")),
    )(x_p)
    return out[:P, :, :Q]


# ---------------------------------------------------------------------------
# Pallas kernel 4: global average pool (AdaptiveAvgPool3d(1)), tiled over the
# spatial axis with an f32 resident-output accumulator.
# ---------------------------------------------------------------------------
def _avgpool_kernel(x_ref, o_ref, *, inv_denom):
    s = pl.program_id(1)

    @pl.when(s == 0)
    def _():
        o_ref[...] = jnp.zeros_like(o_ref)

    o_ref[...] += jnp.sum(x_ref[...].astype(jnp.float32), axis=1,
                          keepdims=True)

    @pl.when(s == pl.num_programs(1) - 1)
    def _():
        o_ref[...] = o_ref[...] * inv_denom


@jax.jit
def global_avg_pool(x):
    """x: [N, D, H, W, C] -> [N, C] (f32) mean over D*H*W."""
    N, D, H, W, C = x.shape
    S = D * H * W
    Cp = _round_up(C, 128)
    St, Sp = _pick_tile(S, 8, 1024)
    xr = jnp.pad(x.reshape(N, S, C).astype(jnp.bfloat16),
                 ((0, 0), (0, Sp - S), (0, Cp - C)))
    out = pl.pallas_call(
        functools.partial(_avgpool_kernel, inv_denom=1.0 / S),
        out_shape=jax.ShapeDtypeStruct((N, 1, Cp), jnp.float32),
        grid_spec=pltpu.PrefetchScalarGridSpec(
            num_scalar_prefetch=0,
            grid=(N, Sp // St),
            in_specs=[pl.BlockSpec((1, St, Cp), lambda n, s: (n, s, 0))],
            out_specs=pl.BlockSpec((1, 1, Cp), lambda n, s: (n, 0, 0)),
        ),
        compiler_params=pltpu.CompilerParams(
            dimension_semantics=("parallel", "arbitrary")),
    )(xr)
    return out[:, 0, :C]


# ---------------------------------------------------------------------------
# TF-SAME padding (matches get_padding_shape: pad = max(k - s, 0))
# ---------------------------------------------------------------------------
def _same_pads(ksz, stride):
    pads = []
    for k, s in zip(ksz, stride):
        p = max(k - s, 0)
        pads.append((p // 2, p - p // 2))
    return pads


# ---------------------------------------------------------------------------
# Unit3Dpy: conv3d (SAME, no bias) + BN + ReLU
# ---------------------------------------------------------------------------
def _conv3d_im2col(x, w, scale, bias, stride, relu):
    # TODO(synk): stride>1 convs (conv1a 7x7x7/s2) and oversize layers still
    # materialize the [M, taps*Cin] im2col matrix in HBM before the GEMM.
    N, D, H, W, Cin = x.shape
    kD, kH, kW, _, Cout = w.shape
    pd, ph, pw = _same_pads((kD, kH, kW), stride)
    xp = jnp.pad(x, ((0, 0), pd, ph, pw, (0, 0)))
    Dp, Hp, Wp = xp.shape[1:4]
    sD, sH, sW = stride
    Do = (Dp - kD) // sD + 1
    Ho = (Hp - kH) // sH + 1
    Wo = (Wp - kW) // sW + 1
    patches = []
    for kd in range(kD):
        for kh in range(kH):
            for kw in range(kW):
                patches.append(
                    xp[:,
                       kd:kd + (Do - 1) * sD + 1:sD,
                       kh:kh + (Ho - 1) * sH + 1:sH,
                       kw:kw + (Wo - 1) * sW + 1:sW, :])
    a = jnp.concatenate(patches, axis=-1).reshape(
        N * Do * Ho * Wo, kD * kH * kW * Cin)
    b = w.reshape(kD * kH * kW * Cin, Cout)
    y = matmul_bn_relu(a, b, scale, bias, relu=relu)
    return y.reshape(N, Do, Ho, Wo, Cout)


@functools.partial(jax.jit, static_argnames=("stride", "relu"))
def conv3d_bn_relu(x, w, scale, bias, stride=(1, 1, 1), relu=True):
    # x: [N, D, H, W, Cin] (bf16);  w: [kD, kH, kW, Cin, Cout]
    N, D, H, W, Cin = x.shape
    kD, kH, kW, _, Cout = w.shape

    if (kD, kH, kW) == (1, 1, 1) and stride == (1, 1, 1):
        y = matmul_bn_relu(x.reshape(N * D * H * W, Cin),
                           w.reshape(Cin, Cout), scale, bias, relu=relu)
        return y.reshape(N, D, H, W, Cout)

    if stride == (1, 1, 1):
        (pd0, pd1), (ph0, ph1), (pw0, pw1) = _same_pads((kD, kH, kW), stride)
        Wp8 = _round_up(max(W + pw0 + pw1, 8), 8)
        Hp = H + ph0 + ph1 + 1
        Dp = D + pd0 + pd1
        if _direct_conv_vmem_ok(Dp, Hp * Wp8, Cin, kD * kH * kW, Cout,
                                H, W, Wp8):
            return _conv3d_direct_s1(x, w, scale, bias, relu)

    return _conv3d_im2col(x, w, scale, bias, stride, relu)


# ---------------------------------------------------------------------------
# MaxPool3dTFPadding: zero-pad (TF SAME) then max-pool, axis-separable.
# (Zero padding matches the reference ConstantPad3d(0): activations are
# post-ReLU, so 0 is a valid identity for max.)
# ---------------------------------------------------------------------------
@functools.partial(jax.jit, static_argnames=("ksz", "stride"))
def maxpool3d_tf(x, ksz, stride):
    N = x.shape[0]
    kD, kH, kW = ksz
    sD, sH, sW = stride
    pd, ph, pw = _same_pads(ksz, stride)
    xp = jnp.pad(x, ((0, 0), pd, ph, pw, (0, 0)))
    D, H, W, C = xp.shape[1:]

    if kW > 1 or sW > 1:                                      # pool W
        y = _pool1d_dense(xp.reshape(N * D * H, W, C), kW)[:, ::sW, :]
        W = y.shape[1]
        xp = y.reshape(N, D, H, W, C)
    if kH > 1 or sH > 1:                                      # pool H
        y = _pool1d_dense(xp.reshape(N * D, H, W * C), kH)[:, ::sH, :]
        H = y.shape[1]
        xp = y.reshape(N, D, H, W, C)
    if kD > 1 or sD > 1:                                      # pool D
        y = _pool1d_dense(xp.reshape(N, D, H * W * C), kD)[:, ::sD, :]
        D = y.shape[1]
        xp = y.reshape(N, D, H, W, C)
    return xp


# ---------------------------------------------------------------------------
# Parameter initialization (deterministic, kaiming-style convs, constant BN)
# ---------------------------------------------------------------------------
_BN_EPS = 1e-5


def init_unit(key, cin, cout, ksz):
    fan_in = cin * ksz[0] * ksz[1] * ksz[2]
    std = (2.0 / fan_in) ** 0.5
    w = (jax.random.normal(key, (*ksz, cin, cout), jnp.float32) * std
         ).astype(jnp.bfloat16)
    gamma = jnp.ones((cout,), jnp.float32)
    beta = jnp.zeros((cout,), jnp.float32)
    r_mean = jnp.zeros((cout,), jnp.float32)
    r_var = jnp.ones((cout,), jnp.float32)
    scale = gamma / jnp.sqrt(r_var + _BN_EPS)
    bias = beta - r_mean * scale
    return dict(w=w, scale=scale, bias=bias)


def init_mixed(key, cin, oc):
    ks = jax.random.split(key, 6)
    b0 = init_unit(ks[0], cin, oc[0], (1, 1, 1))
    b1a = init_unit(ks[1], cin, oc[1], (1, 1, 1))
    b2a = init_unit(ks[3], cin, oc[3], (1, 1, 1))
    # Fuse the three same-input 1x1 branch convolutions into one wide GEMM.
    fused = dict(
        w=jnp.concatenate([b0["w"], b1a["w"], b2a["w"]], axis=-1),
        scale=jnp.concatenate([b0["scale"], b1a["scale"], b2a["scale"]]),
        bias=jnp.concatenate([b0["bias"], b1a["bias"], b2a["bias"]]),
    )
    return dict(
        fused_1x1=fused,
        splits=(oc[0], oc[1], oc[3]),
        b1b=init_unit(ks[2], oc[1], oc[2], (3, 3, 3)),
        b2b=init_unit(ks[4], oc[3], oc[4], (3, 3, 3)),
        b3=init_unit(ks[5], cin, oc[5], (1, 1, 1)),
    )


def init_i3d_params(key, in_channels):
    keys = iter(jax.random.split(key, 16))
    p = {}
    p["conv1a"] = init_unit(next(keys), in_channels, 64, (7, 7, 7))
    p["conv2b"] = init_unit(next(keys), 64, 64, (1, 1, 1))
    p["conv2c"] = init_unit(next(keys), 64, 192, (3, 3, 3))
    p["mixed_3b"] = init_mixed(next(keys), 192, [64, 96, 128, 16, 32, 32])
    p["mixed_3c"] = init_mixed(next(keys), 256, [128, 128, 192, 32, 96, 64])
    p["mixed_4b"] = init_mixed(next(keys), 480, [192, 96, 208, 16, 48, 64])
    p["mixed_4c"] = init_mixed(next(keys), 512, [160, 112, 224, 24, 64, 64])
    p["mixed_4d"] = init_mixed(next(keys), 512, [128, 128, 256, 24, 64, 64])
    p["mixed_4e"] = init_mixed(next(keys), 512, [112, 144, 288, 32, 64, 64])
    p["mixed_4f"] = init_mixed(next(keys), 528, [256, 160, 320, 32, 128, 128])
    p["mixed_5b"] = init_mixed(next(keys), 832, [256, 160, 320, 32, 128, 128])
    p["mixed_5c"] = init_mixed(next(keys), 832, [384, 192, 384, 48, 128, 128])
    return p


# ---------------------------------------------------------------------------
# Forward pass
# ---------------------------------------------------------------------------
def apply_unit(p, x, stride=(1, 1, 1)):
    return conv3d_bn_relu(x, p["w"], p["scale"], p["bias"],
                          stride=stride, relu=True)


def apply_mixed(p, x):
    c0, c1, c2 = p["splits"]
    f = p["fused_1x1"]
    y = conv3d_bn_relu(x, f["w"], f["scale"], f["bias"])     # fused 1x1 GEMM
    o0 = y[..., :c0]
    h1 = y[..., c0:c0 + c1]
    h2 = y[..., c0 + c1:c0 + c1 + c2]
    o1 = apply_unit(p["b1b"], h1)
    o2 = apply_unit(p["b2b"], h2)
    o3 = apply_unit(p["b3"], maxpool3d_tf(x, (3, 3, 3), (1, 1, 1)))
    # channel concat == torch.cat(dim=1) in NCDHW
    return jnp.concatenate([o0, o1, o2, o3], axis=-1)


def i3d_forward(params, x_ncdhw):
    # PyTorch input layout: (N, C, D, H, W) -> internal NDHWC, bf16 activations
    x = jnp.transpose(x_ncdhw, (0, 2, 3, 4, 1)).astype(jnp.bfloat16)
    x = apply_unit(params["conv1a"], x, stride=(2, 2, 2))
    x = maxpool3d_tf(x, (1, 3, 3), (1, 2, 2))
    x = apply_unit(params["conv2b"], x)
    x = apply_unit(params["conv2c"], x)
    x = maxpool3d_tf(x, (1, 3, 3), (1, 2, 2))
    x = apply_mixed(params["mixed_3b"], x)
    x = apply_mixed(params["mixed_3c"], x)
    x = maxpool3d_tf(x, (3, 3, 3), (2, 2, 2))
    x = apply_mixed(params["mixed_4b"], x)
    x = apply_mixed(params["mixed_4c"], x)
    x = apply_mixed(params["mixed_4d"], x)
    x = apply_mixed(params["mixed_4e"], x)
    x = apply_mixed(params["mixed_4f"], x)
    x = maxpool3d_tf(x, (2, 2, 2), (2, 2, 2))
    x = apply_mixed(params["mixed_5b"], x)
    x = apply_mixed(params["mixed_5c"], x)

    feat = global_avg_pool(x)                                 # (N, C) f32
    out = jnp.transpose(x, (0, 4, 1, 2, 3)).astype(jnp.float32)   # NCDHW
    feature = feat.reshape(feat.shape[0], feat.shape[1], 1, 1, 1)
    return out, feature


if __name__ == "__main__":
    key = jax.random.PRNGKey(0)
    k_param, k_inp = jax.random.split(key)

    in_channels = 3
    # Smallest input that survives all stride-2 stages: (N, C, D, H, W)
    x = jax.random.normal(k_inp, (2, in_channels, 8, 32, 32), jnp.float32)

    params = init_i3d_params(k_param, in_channels)

    out, feature = i3d_forward(params, x)
    out = jax.block_until_ready(out)
    feature = jax.block_until_ready(feature)

    assert out.shape == (2, 1024, 1, 1, 1), out.shape
    assert feature.shape == (2, 1024, 1, 1, 1), feature.shape
    assert jnp.all(jnp.isfinite(out)) and jnp.all(jnp.isfinite(feature))

    print("KERNEL_OK")
</pallas_src>

<mosaic_0001>
module attributes {stable_mosaic.version = 11 : i64} {
  func.func @_mm_bn_relu_resident_kernel(%arg0: i32, %arg1: memref<512x1032xbf16, #tpu.memory_space<vmem>>, %arg2: memref<1032x128xbf16, #tpu.memory_space<vmem>>, %arg3: memref<1x128xf32, #tpu.memory_space<vmem>>, %arg4: memref<1x128xf32, #tpu.memory_space<vmem>>, %arg5: memref<512x128xbf16, #tpu.memory_space<vmem>>) attributes {dimension_semantics = [#tpu.dimension_semantics<parallel>], iteration_bounds = array<i64: 4>, scalar_prefetch = 0 : i64, scratch_operands = 0 : i64, tpu.core_type = #tpu.core_type<tc>, window_params = [{transform_indices = @transform_0, window_bounds = array<i64: 512, 1032>}, {pipeline_mode = #tpu.pipeline_mode<synchronous>, transform_indices = @transform_1, window_bounds = array<i64: 1032, 128>}, {pipeline_mode = #tpu.pipeline_mode<synchronous>, transform_indices = @transform_2, window_bounds = array<i64: 1, 128>}, {pipeline_mode = #tpu.pipeline_mode<synchronous>, transform_indices = @transform_3, window_bounds = array<i64: 1, 128>}, {transform_indices = @transform_4, window_bounds = array<i64: 512, 128>}]} {
    %c0 = arith.constant 0 : index
    %c0_0 = arith.constant 0 : index
    %0 = vector.load %arg1[%c0, %c0_0] : memref<512x1032xbf16, #tpu.memory_space<vmem>>, vector<512x1032xbf16>
    %c0_1 = arith.constant 0 : index
    %c0_2 = arith.constant 0 : index
    %1 = vector.load %arg2[%c0_1, %c0_2] : memref<1032x128xbf16, #tpu.memory_space<vmem>>, vector<1032x128xbf16>
    %cst = arith.constant dense<0.000000e+00> : vector<512x128xf32>
    %2 = tpu.matmul %0, %1, %cst {dimension_numbers = #tpu.dot_dimension_numbers<[1], [0], [0], [1], [0, 0, 1, 1], [], []>} : vector<512x1032xbf16>, vector<1032x128xbf16>, vector<512x128xf32> -> vector<512x128xf32>
    %c0_3 = arith.constant 0 : index
    %c0_4 = arith.constant 0 : index
    %3 = vector.load %arg3[%c0_3, %c0_4] : memref<1x128xf32, #tpu.memory_space<vmem>>, vector<1x128xf32>
    %4 = vector.broadcast %3 : vector<1x128xf32> to vector<512x128xf32>
    %5 = arith.mulf %2, %4 : vector<512x128xf32>
    %c0_5 = arith.constant 0 : index
    %c0_6 = arith.constant 0 : index
    %6 = vector.load %arg4[%c0_5, %c0_6] : memref<1x128xf32, #tpu.memory_space<vmem>>, vector<1x128xf32>
    %7 = vector.broadcast %6 : vector<1x128xf32> to vector<512x128xf32>
    %8 = arith.addf %5, %7 : vector<512x128xf32>
    %cst_7 = arith.constant 0.000000e+00 : f32
    %9 = vector.broadcast %cst_7 : f32 to vector<512x128xf32>
    %10 = arith.maximumf %8, %9 : vector<512x128xf32>
    %11 = arith.truncf %10 : vector<512x128xf32> to vector<512x128xbf16>
    %c0_8 = arith.constant 0 : index
    %c0_9 = arith.constant 0 : index
    %12 = vector.load %arg5[%c0_8, %c0_9] : memref<512x128xbf16, #tpu.memory_space<vmem>>, vector<512x128xbf16>
    tpu.vector_store %arg5[%c0_8, %c0_9], %11 {strides = array<i32>} : memref<512x128xbf16, #tpu.memory_space<vmem>>, vector<512x128xbf16>,
    return
  }
  func.func @transform_0(%arg0: i32) -> (i32, i32) {
    %c0_i32 = arith.constant 0 : i32
    %c0_i32_0 = arith.constant 0 : i32
    return %arg0, %c0_i32 : i32, i32
  }
  func.func @transform_1(%arg0: i32) -> (i32, i32) {
    %c0_i32 = arith.constant 0 : i32
    %c0_i32_0 = arith.constant 0 : i32
    %c0_i32_1 = arith.constant 0 : i32
    return %c0_i32, %c0_i32_0 : i32, i32
  }
  func.func @transform_2(%arg0: i32) -> (i32, i32) {
    %c0_i32 = arith.constant 0 : i32
    %c0_i32_0 = arith.constant 0 : i32
    %c0_i32_1 = arith.constant 0 : i32
    return %c0_i32, %c0_i32_0 : i32, i32
  }
  func.func @transform_3(%arg0: i32) -> (i32, i32) {
    %c0_i32 = arith.constant 0 : i32
    %c0_i32_0 = arith.constant 0 : i32
    %c0_i32_1 = arith.constant 0 : i32
    return %c0_i32, %c0_i32_0 : i32, i32
  }
  func.func @transform_4(%arg0: i32) -> (i32, i32) {
    %c0_i32 = arith.constant 0 : i32
    %c0_i32_0 = arith.constant 0 : i32
    return %arg0, %c0_i32 : i32, i32
  }
}

</mosaic_0001>

<llo_original>
// kernel: matmul_bn_relu.1
$region0: #{matmul_bn_relu.1}
  #allocation0 [shape = 'u32[]', space=smem, size = 0x4, offset = 0x4, fixed_abs, tag = 'smem constant byte address 0x4 - core index']
  #allocation1 [shape = 'u32[144,128]{1,0:T(1,128)}', space=vmem, size = 0x12000, scoped, tag = 'internal scratch']
  %s0 = inlined_call_operand.vmem [shape: bf16[2048,1032], index: 0, kind: input, shape index: {}]
  %s1 = inlined_call_operand.vmem [shape: bf16[1032,128], index: 1, kind: input, shape index: {}]
  %s2 = inlined_call_operand.vmem [shape: f32[1,128], index: 2, kind: input, shape index: {}]
  %s3 = inlined_call_operand.vmem [shape: f32[1,128], index: 3, kind: input, shape index: {}]
  %s4 = inlined_call_operand.vmem [shape: bf16[2048,128], index: 4, kind: output, shape index: {}]
  %s5 = sld [smem:[#allocation0]]
  $region49: #{matmul_bn_relu.1} parent=0
    _
  %s7 = ssub.s32 1, %s5
  %s8 = scalar_select 0, %s7, %s5
  loop: start=0, step=1, limit=6
  $region2: #{matmul_bn_relu.1} parent=0 // loop_pre_header
    _
  $region3: #{matmul_bn_relu.1} parent=0 // loop_header
    %s10 = sphi 0, %s14
    %p11 = scmp.ge.s32.totalorder %s10, 6
    %s20 = sphi 0, %s22
    %s23 = sphi 0, %s20
    %s24 = sphi 0, %s23
    %s40 = sphi 0, %s24
    %s44 = sphi 0, %s44
    %s46 = sphi 0, %s44
    %s47 = sphi 0, %s46
    %s61 = sphi 0, %s47
    %s65 = sphi 0, %s65
    %s67 = sphi 0, %s65
    %s68 = sphi 0, %s67
    %s82 = sphi 0, %s68
    %s86 = sphi 0, %s86
    %s88 = sphi 0, %s86
    %s89 = sphi 0, %s88
    %s103 = sphi 0, %s89
    %s109 = sphi 0, %s111
    %s112 = sphi 0, %s109
    %s113 = sphi 0, %s112
    %s129 = sphi 0, %s113
  $region4: #{matmul_bn_relu.1} parent=0 // loop_header_branch
    %13 = sbr.rel (%p11) target = $region8
  $region5: #{matmul_bn_relu.1} parent=0 // loop_body
    %s15 = ssub.s32 %s10, 1
    %s16 = ssub.s32 %s10, 2
    %s17 = sadd.s32 %s10, 1
    %s18 = ssub.s32 %s10, %s17
    %p19 = scmp.eq.s32.totalorder %s18, 0
    %s21 = sadd.s32 %s20, 1
    %s22 = scalar_select %p19, %s20, %s21
    %p25 = pneg %p19
    %p26 = scmp.eq.s32.totalorder %s10, 3
    %p27 = por %p25, %p26
    %p28 = scmp.ne.s32.totalorder %s20, %s23
    %p29 = scmp.eq.s32.totalorder %s10, 0
    %p30 = por %p28, %p29
    %p31 = scmp.ne.s32.totalorder %s20, %s23
    %p32 = scmp.eq.s32.totalorder %s15, 3
    %p33 = por %p31, %p32
    %p34 = scmp.ne.s32.totalorder %s23, %s24
    %p35 = scmp.eq.s32.totalorder %s15, 0
    %p36 = por %p34, %p35
    %p37 = scmp.ne.s32.totalorder %s23, %s24
    %p38 = scmp.eq.s32.totalorder %s16, 3
    %p39 = por %p37, %p38
    %p41 = scmp.ne.s32.totalorder %s24, %s40
    %p42 = scmp.eq.s32.totalorder %s16, 0
    %p43 = por %p41, %p42
    %s45 = sadd.s32 %s44, 1
    %p48 = scmp.eq.s32.totalorder %s10, 3
    %p49 = scmp.ne.s32.totalorder %s44, %s46
    %p50 = scmp.eq.s32.totalorder %s10, 0
    %p51 = por %p49, %p50
    %p52 = scmp.ne.s32.totalorder %s44, %s46
    %p53 = scmp.eq.s32.totalorder %s15, 3
    %p54 = por %p52, %p53
    %p55 = scmp.ne.s32.totalorder %s46, %s47
    %p56 = scmp.eq.s32.totalorder %s15, 0
    %p57 = por %p55, %p56
    %p58 = scmp.ne.s32.totalorder %s46, %s47
    %p59 = scmp.eq.s32.totalorder %s16, 3
    %p60 = por %p58, %p59
    %p62 = scmp.ne.s32.totalorder %s47, %s61
    %p63 = scmp.eq.s32.totalorder %s16, 0
    %p64 = por %p62, %p63
    %s66 = sadd.s32 %s65, 1
    %p69 = scmp.eq.s32.totalorder %s10, 3
    %p70 = scmp.ne.s32.totalorder %s65, %s67
    %p71 = scmp.eq.s32.totalorder %s10, 0
    %p72 = por %p70, %p71
    %p73 = scmp.ne.s32.totalorder %s65, %s67
    %p74 = scmp.eq.s32.totalorder %s15, 3
    %p75 = por %p73, %p74
    %p76 = scmp.ne.s32.totalorder %s67, %s68
    %p77 = scmp.eq.s32.totalorder %s15, 0
    %p78 = por %p76, %p77
    %p79 = scmp.ne.s32.totalorder %s67, %s68
    %p80 = scmp.eq.s32.totalorder %s16, 3
    %p81 = por %p79, %p80
    %p83 = scmp.ne.s32.totalorder %s68, %s82
    %p84 = scmp.eq.s32.totalorder %s16, 0
    %p85 = por %p83, %p84
    %s87 = sadd.s32 %s86, 1
    %p90 = scmp.eq.s32.totalorder %s10, 3
    %p91 = scmp.ne.s32.totalorder %s86, %s88
    %p92 = scmp.eq.s32.totalorder %s10, 0
    %p93 = por %p91, %p92
    %p94 = scmp.ne.s32.totalorder %s86, %s88
    %p95 = scmp.eq.s32.totalorder %s15, 3
    %p96 = por %p94, %p95
    %p97 = scmp.ne.s32.totalorder %s88, %s89
    %p98 = scmp.eq.s32.totalorder %s15, 0
    %p99 = por %p97, %p98
    %p100 = scmp.ne.s32.totalorder %s88, %s89
    %p101 = scmp.eq.s32.totalorder %s16, 3
    %p102 = por %p100, %p101
    %p104 = scmp.ne.s32.totalorder %s89, %s103
    %p105 = scmp.eq.s32.totalorder %s16, 0
    %p106 = por %p104, %p105
    %s107 = ssub.s32 %s10, %s17
    %p108 = scmp.eq.s32.totalorder %s107, 0
    %s110 = sadd.s32 %s109, 1
    %s111 = scalar_select %p108, %s109, %s110
    %p114 = pneg %p108
    %p115 = scmp.eq.s32.totalorder %s10, 3
    %p116 = por %p114, %p115
    %p117 = scmp.ne.s32.totalorder %s109, %s112
    %p118 = scmp.eq.s32.totalorder %s10, 0
    %p119 = por %p117, %p118
    %p120 = scmp.ne.s32.totalorder %s109, %s112
    %p121 = scmp.eq.s32.totalorder %s15, 3
    %p122 = por %p120, %p121
    %p123 = scmp.ne.s32.totalorder %s112, %s113
    %p124 = scmp.eq.s32.totalorder %s15, 0
    %p125 = por %p123, %p124
    %p126 = scmp.ne.s32.totalorder %s112, %s113
    %p127 = scmp.eq.s32.totalorder %s16, 3
    %p128 = por %p126, %p127
    %p130 = scmp.ne.s32.totalorder %s113, %s129
    %p131 = scmp.eq.s32.totalorder %s16, 0
    %p132 = por %p130, %p131
    %p133 = scmp.le.s32.totalorder 1, %s10
    %p134 = scmp.lt.s32.totalorder %s10, 5
    %p135 = pnand %p133, %p134
    %p136 = pneg %p135
    // Predicated region
    $region9: #{matmul_bn_relu.1} parent=5 // pred_check
      _
    $region10: #{matmul_bn_relu.1} parent=5 // pred_check_branch
      %138 = sbr.rel (%p135) target = $region12
    $region11: #{matmul_bn_relu.1} parent=5 // pred_region
      %s139 = ssub.s32 %s10, 1
      // Predicated region
      $region13: #{matmul_bn_relu.1} parent=11 // pred_check
        %p140 = pneg %p57
      $region14: #{matmul_bn_relu.1} parent=11 // pred_check_branch
        %142 = sbr.rel (%p140) target = $region16
      $region15: #{matmul_bn_relu.1} parent=11 // pred_region
        _
      $region16: #{matmul_bn_relu.1} parent=11 // pred_fallthru
        _
      // Predicated region
      $region17: #{matmul_bn_relu.1} parent=11 // pred_check
        %p143 = pneg %p78
      $region18: #{matmul_bn_relu.1} parent=11 // pred_check_branch
        %145 = sbr.rel (%p143) target = $region20
      $region19: #{matmul_bn_relu.1} parent=11 // pred_region
        _
      $region20: #{matmul_bn_relu.1} parent=11 // pred_fallthru
        _
      // Predicated region
      $region21: #{matmul_bn_relu.1} parent=11 // pred_check
        %p146 = pneg %p99
      $region22: #{matmul_bn_relu.1} parent=11 // pred_check_branch
        %148 = sbr.rel (%p146) target = $region24
      $region23: #{matmul_bn_relu.1} parent=11 // pred_region
        _
      $region24: #{matmul_bn_relu.1} parent=11 // pred_fallthru
        _
    $region12: #{matmul_bn_relu.1} parent=5 // pred_fallthru
      _
    %p149 = scmp.lt.s32.totalorder %s10, 4
    // Predicated region
    $region25: #{matmul_bn_relu.1} parent=5 // pred_check
      %p150 = pneg %p149
    $region26: #{matmul_bn_relu.1} parent=5 // pred_check_branch
      %152 = sbr.rel (%p150) target = $region28
    $region27: #{matmul_bn_relu.1} parent=5 // pred_region
      // Predicated region
      $region29: #{matmul_bn_relu.1} parent=27 // pred_check
        %p153 = pneg %p30
      $region30: #{matmul_bn_relu.1} parent=27 // pred_check_branch
        %155 = sbr.rel (%p153) target = $region32
      $region31: #{matmul_bn_relu.1} parent=27 // pred_region
        %s156 = smul.u32 64, %s10
        %p157 = scmp.lt.s32.totalorder %s156, 255
        %s158 = scalar_select %p157, %s156, 255
        %s159 = smul.addr %s158, 9
        %s160 = smul.addr %s159, 4
        %s161 = scalar_lea.vmem %s0, %s160
        %s162 = smul.u32 64, %s10
      $region32: #{matmul_bn_relu.1} parent=27 // pred_fallthru
        _
    $region28: #{matmul_bn_relu.1} parent=5 // pred_fallthru
      _
    %p163 = scmp.le.s32.totalorder 1, %s10
    %p164 = scmp.lt.s32.totalorder %s10, 5
    %p165 = pnand %p163, %p164
    %p166 = pneg %p165
    // Predicated region
    $region33: #{matmul_bn_relu.1} parent=5 // pred_check
      _
    $region34: #{matmul_bn_relu.1} parent=5 // pred_check_branch
      %168 = sbr.rel (%p165) target = $region36
    $region35: #{matmul_bn_relu.1} parent=5 // pred_region
      %s169 = ssub.s32 %s10, 1
      %s170 = smul.u32 64, %s15
      %p171 = scmp.lt.s32.totalorder %s170, 255
      %s172 = scalar_select %p171, %s170, 255
      %s173 = smul.addr %s172, 9
      %s174 = smul.addr %s173, 4
      %s175 = scalar_lea.vmem %s0, %s174
      %p176 = pneg %p36
      %p177 = pneg %p33
      %p178 = pneg %p57
      %p179 = pneg %p54
      %p180 = pneg %p78
      %p181 = pneg %p75
      %p182 = pneg %p99
      %p183 = pneg %p96
      %p184 = pneg %p125
      %p185 = pneg %p122
      %s186 = smul.u32 64, %s15
      %p187 = scmp.lt.s32.totalorder %s186, 255
      %s188 = scalar_select %p187, %s186, 255
      %s189 = smul.addr %s188, 4
      %s190 = scalar_lea.vmem %s4, %s189
      %s191 = smul.u32 64, %s15
      %p192 = scmp.lt.s32.totalorder %s191, 255
      %s193 = scalar_select %p192, %s191, 255
      %s194 = smul.addr %s193, 9
      %s195 = smul.addr %s194, 4
      %s196 = scalar_lea.vmem %s0, %s195
      %s197 = smul.u32 64, %s15
      %s198 = smul.u32 64, %s15
      %p199 = scmp.lt.s32.totalorder %s198, 255
      %s200 = scalar_select %p199, %s198, 255
      %s201 = smul.addr %s200, 4
      %s202 = scalar_lea.vmem %s4, %s201
      %s203 = smul.u32 64, %s15
      %v205 = vld [vmem:[%s196] sm:$0xff]
      %v206 = vld [vmem:[%s196 + $0x8] sm:$0xff]
      %v207 = vld [vmem:[%s196 + $0x10] sm:$0xff]
      %v208 = vld [vmem:[%s196 + $0x18] sm:$0xff]
      %v209 = vld [vmem:[%s196 + $0x20] sm:$0xf]
      %v210 = vld [vmem:[%s196 + $0x24] sm:$0xff]
      %v211 = vld [vmem:[%s196 + $0x2c] sm:$0xff]
      %v212 = vld [vmem:[%s196 + $0x34] sm:$0xff]
      %v213 = vld [vmem:[%s196 + $0x3c] sm:$0xff]
      %v214 = vld [vmem:[%s196 + $0x44] sm:$0xf]
      %v215 = vld [vmem:[%s196 + $0x48] sm:$0xff]
      %v216 = vld [vmem:[%s196 + $0x50] sm:$0xff]
      %v217 = vld [vmem:[%s196 + $0x58] sm:$0xff]
      %v218 = vld [vmem:[%s196 + $0x60] sm:$0xff]
      %v219 = vld [vmem:[%s196 + $0x68] sm:$0xf]
      %v220 = vld [vmem:[%s196 + $0x6c] sm:$0xff]
      %v221 = vld [vmem:[%s196 + $0x74] sm:$0xff]
      %v222 = vld [vmem:[%s196 + $0x7c] sm:$0xff]
      %v223 = vld [vmem:[%s196 + $0x84] sm:$0xff]
      %v224 = vld [vmem:[%s196 + $0x8c] sm:$0xf]
      %v225 = vld [vmem:[%s196 + $0x90] sm:$0xff]
      %v226 = vld [vmem:[%s196 + $0x98] sm:$0xff]
      %v227 = vld [vmem:[%s196 + $0xa0] sm:$0xff]
      %v228 = vld [vmem:[%s196 + $0xa8] sm:$0xff]
      %v229 = vld [vmem:[%s196 + $0xb0] sm:$0xf]
      %v230 = vld [vmem:[%s196 + $0xb4] sm:$0xff]
      %v231 = vld [vmem:[%s196 + $0xbc] sm:$0xff]
      %v232 = vld [vmem:[%s196 + $0xc4] sm:$0xff]
      %v233 = vld [vmem:[%s196 + $0xcc] sm:$0xff]
      %v234 = vld [vmem:[%s196 + $0xd4] sm:$0xf]
      %v235 = vld [vmem:[%s196 + $0xd8] sm:$0xff]
      %v236 = vld [vmem:[%s196 + $0xe0] sm:$0xff]
      %v237 = vld [vmem:[%s196 + $0xe8] sm:$0xff]
      %v238 = vld [vmem:[%s196 + $0xf0] sm:$0xff]
      %v239 = vld [vmem:[%s196 + $0xf8] sm:$0xf]
      %v240 = vld [vmem:[%s196 + $0xfc] sm:$0xff]
      %v241 = vld [vmem:[%s196 + $0x104] sm:$0xff]
      %v242 = vld [vmem:[%s196 + $0x10c] sm:$0xff]
      %v243 = vld [vmem:[%s196 + $0x114] sm:$0xff]
      %v244 = vld [vmem:[%s196 + $0x11c] sm:$0xf]
      %v245 = vld [vmem:[%s196 + $0x120] sm:$0xff]
      %v246 = vld [vmem:[%s196 + $0x128] sm:$0xff]
      %v247 = vld [vmem:[%s196 + $0x130] sm:$0xff]
      %v248 = vld [vmem:[%s196 + $0x138] sm:$0xff]
      %v249 = vld [vmem:[%s196 + $0x140] sm:$0xf]
      %v250 = vld [vmem:[%s196 + $0x144] sm:$0xff]
      %v251 = vld [vmem:[%s196 + $0x14c] sm:$0xff]
      %v252 = vld [vmem:[%s196 + $0x154] sm:$0xff]
      %v253 = vld [vmem:[%s196 + $0x15c] sm:$0xff]
      %v254 = vld [vmem:[%s196 + $0x164] sm:$0xf]
      %v255 = vld [vmem:[%s196 + $0x168] sm:$0xff]
      %v256 = vld [vmem:[%s196 + $0x170] sm:$0xff]
      %v257 = vld [vmem:[%s196 + $0x178] sm:$0xff]
      %v258 = vld [vmem:[%s196 + $0x180] sm:$0xff]
      %v259 = vld [vmem:[%s196 + $0x188] sm:$0xf]
      %v260 = vld [vmem:[%s196 + $0x18c] sm:$0xff]
      %v261 = vld [vmem:[%s196 + $0x194] sm:$0xff]
      %v262 = vld [vmem:[%s196 + $0x19c] sm:$0xff]
      %v263 = vld [vmem:[%s196 + $0x1a4] sm:$0xff]
      %v264 = vld [vmem:[%s196 + $0x1ac] sm:$0xf]
      %v265 = vld [vmem:[%s196 + $0x1b0] sm:$0xff]
      %v266 = vld [vmem:[%s196 + $0x1b8] sm:$0xff]
      %v267 = vld [vmem:[%s196 + $0x1c0] sm:$0xff]
      %v268 = vld [vmem:[%s196 + $0x1c8] sm:$0xff]
      %v269 = vld [vmem:[%s196 + $0x1d0] sm:$0xf]
      %v270 = vld [vmem:[%s196 + $0x1d4] sm:$0xff]
      %v271 = vld [vmem:[%s196 + $0x1dc] sm:$0xff]
      %v272 = vld [vmem:[%s196 + $0x1e4] sm:$0xff]
      %v273 = vld [vmem:[%s196 + $0x1ec] sm:$0xff]
      %v274 = vld [vmem:[%s196 + $0x1f4] sm:$0xf]
      %v275 = vld [vmem:[%s196 + $0x1f8] sm:$0xff]
      %v276 = vld [vmem:[%s196 + $0x200] sm:$0xff]
      %v277 = vld [vmem:[%s196 + $0x208] sm:$0xff]
      %v278 = vld [vmem:[%s196 + $0x210] sm:$0xff]
      %v279 = vld [vmem:[%s196 + $0x218] sm:$0xf]
      %v280 = vld [vmem:[%s196 + $0x21c] sm:$0xff]
      %v281 = vld [vmem:[%s196 + $0x224] sm:$0xff]
      %v282 = vld [vmem:[%s196 + $0x22c] sm:$0xff]
      %v283 = vld [vmem:[%s196 + $0x234] sm:$0xff]
      %v284 = vld [vmem:[%s196 + $0x23c] sm:$0xf]
      %v285 = vld [vmem:[%s196 + $0x240] sm:$0xff]
      %v286 = vld [vmem:[%s196 + $0x248] sm:$0xff]
      %v287 = vld [vmem:[%s196 + $0x250] sm:$0xff]
      %v288 = vld [vmem:[%s196 + $0x258] sm:$0xff]
      %v289 = vld [vmem:[%s196 + $0x260] sm:$0xf]
      %v290 = vld [vmem:[%s196 + $0x264] sm:$0xff]
      %v291 = vld [vmem:[%s196 + $0x26c] sm:$0xff]
      %v292 = vld [vmem:[%s196 + $0x274] sm:$0xff]
      %v293 = vld [vmem:[%s196 + $0x27c] sm:$0xff]
      %v294 = vld [vmem:[%s196 + $0x284] sm:$0xf]
      %v295 = vld [vmem:[%s196 + $0x288] sm:$0xff]
      %v296 = vld [vmem:[%s196 + $0x290] sm:$0xff]
      %v297 = vld [vmem:[%s196 + $0x298] sm:$0xff]
      %v298 = vld [vmem:[%s196 + $0x2a0] sm:$0xff]
      %v299 = vld [vmem:[%s196 + $0x2a8] sm:$0xf]
      %v300 = vld [vmem:[%s196 + $0x2ac] sm:$0xff]
      %v301 = vld [vmem:[%s196 + $0x2b4] sm:$0xff]
      %v302 = vld [vmem:[%s196 + $0x2bc] sm:$0xff]
      %v303 = vld [vmem:[%s196 + $0x2c4] sm:$0xff]
      %v304 = vld [vmem:[%s196 + $0x2cc] sm:$0xf]
      %v305 = vld [vmem:[%s196 + $0x2d0] sm:$0xff]
      %v306 = vld [vmem:[%s196 + $0x2d8] sm:$0xff]
      %v307 = vld [vmem:[%s196 + $0x2e0] sm:$0xff]
      %v308 = vld [vmem:[%s196 + $0x2e8] sm:$0xff]
      %v309 = vld [vmem:[%s196 + $0x2f0] sm:$0xf]
      %v310 = vld [vmem:[%s196 + $0x2f4] sm:$0xff]
      %v311 = vld [vmem:[%s196 + $0x2fc] sm:$0xff]
      %v312 = vld [vmem:[%s196 + $0x304] sm:$0xff]
      %v313 = vld [vmem:[%s196 + $0x30c] sm:$0xff]
      %v314 = vld [vmem:[%s196 + $0x314] sm:$0xf]
      %v315 = vld [vmem:[%s196 + $0x318] sm:$0xff]
      %v316 = vld [vmem:[%s196 + $0x320] sm:$0xff]
      %v317 = vld [vmem:[%s196 + $0x328] sm:$0xff]
      %v318 = vld [vmem:[%s196 + $0x330] sm:$0xff]
      %v319 = vld [vmem:[%s196 + $0x338] sm:$0xf]
      %v320 = vld [vmem:[%s196 + $0x33c] sm:$0xff]
      %v321 = vld [vmem:[%s196 + $0x344] sm:$0xff]
      %v322 = vld [vmem:[%s196 + $0x34c] sm:$0xff]
      %v323 = vld [vmem:[%s196 + $0x354] sm:$0xff]
      %v324 = vld [vmem:[%s196 + $0x35c] sm:$0xf]
      %v325 = vld [vmem:[%s196 + $0x360] sm:$0xff]
      %v326 = vld [vmem:[%s196 + $0x368] sm:$0xff]
      %v327 = vld [vmem:[%s196 + $0x370] sm:$0xff]
      %v328 = vld [vmem:[%s196 + $0x378] sm:$0xff]
      %v329 = vld [vmem:[%s196 + $0x380] sm:$0xf]
      %v330 = vld [vmem:[%s196 + $0x384] sm:$0xff]
      %v331 = vld [vmem:[%s196 + $0x38c] sm:$0xff]
      %v332 = vld [vmem:[%s196 + $0x394] sm:$0xff]
      %v333 = vld [vmem:[%s196 + $0x39c] sm:$0xff]
      %v334 = vld [vmem:[%s196 + $0x3a4] sm:$0xf]
      %v335 = vld [vmem:[%s196 + $0x3a8] sm:$0xff]
      %v336 = vld [vmem:[%s196 + $0x3b0] sm:$0xff]
      %v337 = vld [vmem:[%s196 + $0x3b8] sm:$0xff]
      %v338 = vld [vmem:[%s196 + $0x3c0] sm:$0xff]
      %v339 = vld [vmem:[%s196 + $0x3c8] sm:$0xf]
      %v340 = vld [vmem:[%s196 + $0x3cc] sm:$0xff]
      %v341 = vld [vmem:[%s196 + $0x3d4] sm:$0xff]
      %v342 = vld [vmem:[%s196 + $0x3dc] sm:$0xff]
      %v343 = vld [vmem:[%s196 + $0x3e4] sm:$0xff]
      %v344 = vld [vmem:[%s196 + $0x3ec] sm:$0xf]
      %v345 = vld [vmem:[%s196 + $0x3f0] sm:$0xff]
      %v346 = vld [vmem:[%s196 + $0x3f8] sm:$0xff]
      %v347 = vld [vmem:[%s196 + $0x400] sm:$0xff]
      %v348 = vld [vmem:[%s196 + $0x408] sm:$0xff]
      %v349 = vld [vmem:[%s196 + $0x410] sm:$0xf]
      %v350 = vld [vmem:[%s196 + $0x414] sm:$0xff]
      %v351 = vld [vmem:[%s196 + $0x41c] sm:$0xff]
      %v352 = vld [vmem:[%s196 + $0x424] sm:$0xff]
      %v353 = vld [vmem:[%s196 + $0x42c] sm:$0xff]
      %v354 = vld [vmem:[%s196 + $0x434] sm:$0xf]
      %v355 = vld [vmem:[%s196 + $0x438] sm:$0xff]
      %v356 = vld [vmem:[%s196 + $0x440] sm:$0xff]
      %v357 = vld [vmem:[%s196 + $0x448] sm:$0xff]
      %v358 = vld [vmem:[%s196 + $0x450] sm:$0xff]
      %v359 = vld [vmem:[%s196 + $0x458] sm:$0xf]
      %v360 = vld [vmem:[%s196 + $0x45c] sm:$0xff]
      %v361 = vld [vmem:[%s196 + $0x464] sm:$0xff]
      %v362 = vld [vmem:[%s196 + $0x46c] sm:$0xff]
      %v363 = vld [vmem:[%s196 + $0x474] sm:$0xff]
      %v364 = vld [vmem:[%s196 + $0x47c] sm:$0xf]
      %v365 = vld [vmem:[%s196 + $0x480] sm:$0xff]
      %v366 = vld [vmem:[%s196 + $0x488] sm:$0xff]
      %v367 = vld [vmem:[%s196 + $0x490] sm:$0xff]
      %v368 = vld [vmem:[%s196 + $0x498] sm:$0xff]
      %v369 = vld [vmem:[%s196 + $0x4a0] sm:$0xf]
      %v370 = vld [vmem:[%s196 + $0x4a4] sm:$0xff]
      %v371 = vld [vmem:[%s196 + $0x4ac] sm:$0xff]
      %v372 = vld [vmem:[%s196 + $0x4b4] sm:$0xff]
      %v373 = vld [vmem:[%s196 + $0x4bc] sm:$0xff]
      %v374 = vld [vmem:[%s196 + $0x4c4] sm:$0xf]
      %v375 = vld [vmem:[%s196 + $0x4c8] sm:$0xff]
      %v376 = vld [vmem:[%s196 + $0x4d0] sm:$0xff]
      %v377 = vld [vmem:[%s196 + $0x4d8] sm:$0xff]
      %v378 = vld [vmem:[%s196 + $0x4e0] sm:$0xff]
      %v379 = vld [vmem:[%s196 + $0x4e8] sm:$0xf]
      %v380 = vld [vmem:[%s196 + $0x4ec] sm:$0xff]
      %v381 = vld [vmem:[%s196 + $0x4f4] sm:$0xff]
      %v382 = vld [vmem:[%s196 + $0x4fc] sm:$0xff]
      %v383 = vld [vmem:[%s196 + $0x504] sm:$0xff]
      %v384 = vld [vmem:[%s196 + $0x50c] sm:$0xf]
      %v385 = vld [vmem:[%s196 + $0x510] sm:$0xff]
      %v386 = vld [vmem:[%s196 + $0x518] sm:$0xff]
      %v387 = vld [vmem:[%s196 + $0x520] sm:$0xff]
      %v388 = vld [vmem:[%s196 + $0x528] sm:$0xff]
      %v389 = vld [vmem:[%s196 + $0x530] sm:$0xf]
      %v390 = vld [vmem:[%s196 + $0x534] sm:$0xff]
      %v391 = vld [vmem:[%s196 + $0x53c] sm:$0xff]
      %v392 = vld [vmem:[%s196 + $0x544] sm:$0xff]
      %v393 = vld [vmem:[%s196 + $0x54c] sm:$0xff]
      %v394 = vld [vmem:[%s196 + $0x554] sm:$0xf]
      %v395 = vld [vmem:[%s196 + $0x558] sm:$0xff]
      %v396 = vld [vmem:[%s196 + $0x560] sm:$0xff]
      %v397 = vld [vmem:[%s196 + $0x568] sm:$0xff]
      %v398 = vld [vmem:[%s196 + $0x570] sm:$0xff]
      %v399 = vld [vmem:[%s196 + $0x578] sm:$0xf]
      %v400 = vld [vmem:[%s196 + $0x57c] sm:$0xff]
      %v401 = vld [vmem:[%s196 + $0x584] sm:$0xff]
      %v402 = vld [vmem:[%s196 + $0x58c] sm:$0xff]
      %v403 = vld [vmem:[%s196 + $0x594] sm:$0xff]
      %v404 = vld [vmem:[%s196 + $0x59c] sm:$0xf]
      %v405 = vld [vmem:[%s196 + $0x5a0] sm:$0xff]
      %v406 = vld [vmem:[%s196 + $0x5a8] sm:$0xff]
      %v407 = vld [vmem:[%s196 + $0x5b0] sm:$0xff]
      %v408 = vld [vmem:[%s196 + $0x5b8] sm:$0xff]
      %v409 = vld [vmem:[%s196 + $0x5c0] sm:$0xf]
      %v410 = vld [vmem:[%s196 + $0x5c4] sm:$0xff]
      %v411 = vld [vmem:[%s196 + $0x5cc] sm:$0xff]
      %v412 = vld [vmem:[%s196 + $0x5d4] sm:$0xff]
      %v413 = vld [vmem:[%s196 + $0x5dc] sm:$0xff]
      %v414 = vld [vmem:[%s196 + $0x5e4] sm:$0xf]
      %v415 = vld [vmem:[%s196 + $0x5e8] sm:$0xff]
      %v416 = vld [vmem:[%s196 + $0x5f0] sm:$0xff]
      %v417 = vld [vmem:[%s196 + $0x5f8] sm:$0xff]
      %v418 = vld [vmem:[%s196 + $0x600] sm:$0xff]
      %v419 = vld [vmem:[%s196 + $0x608] sm:$0xf]
      %v420 = vld [vmem:[%s196 + $0x60c] sm:$0xff]
      %v421 = vld [vmem:[%s196 + $0x614] sm:$0xff]
      %v422 = vld [vmem:[%s196 + $0x61c] sm:$0xff]
      %v423 = vld [vmem:[%s196 + $0x624] sm:$0xff]
      %v424 = vld [vmem:[%s196 + $0x62c] sm:$0xf]
      %v425 = vld [vmem:[%s196 + $0x630] sm:$0xff]
      %v426 = vld [vmem:[%s196 + $0x638] sm:$0xff]
      %v427 = vld [vmem:[%s196 + $0x640] sm:$0xff]
      %v428 = vld [vmem:[%s196 + $0x648] sm:$0xff]
      %v429 = vld [vmem:[%s196 + $0x650] sm:$0xf]
      %v430 = vld [vmem:[%s196 + $0x654] sm:$0xff]
      %v431 = vld [vmem:[%s196 + $0x65c] sm:$0xff]
      %v432 = vld [vmem:[%s196 + $0x664] sm:$0xff]
      %v433 = vld [vmem:[%s196 + $0x66c] sm:$0xff]
      %v434 = vld [vmem:[%s196 + $0x674] sm:$0xf]
      %v435 = vld [vmem:[%s196 + $0x678] sm:$0xff]
      %v436 = vld [vmem:[%s196 + $0x680] sm:$0xff]
      %v437 = vld [vmem:[%s196 + $0x688] sm:$0xff]
      %v438 = vld [vmem:[%s196 + $0x690] sm:$0xff]
      %v439 = vld [vmem:[%s196 + $0x698] sm:$0xf]
      %v440 = vld [vmem:[%s196 + $0x69c] sm:$0xff]
      %v441 = vld [vmem:[%s196 + $0x6a4] sm:$0xff]
      %v442 = vld [vmem:[%s196 + $0x6ac] sm:$0xff]
      %v443 = vld [vmem:[%s196 + $0x6b4] sm:$0xff]
      %v444 = vld [vmem:[%s196 + $0x6bc] sm:$0xf]
      %v445 = vld [vmem:[%s196 + $0x6c0] sm:$0xff]
      %v446 = vld [vmem:[%s196 + $0x6c8] sm:$0xff]
      %v447 = vld [vmem:[%s196 + $0x6d0] sm:$0xff]
      %v448 = vld [vmem:[%s196 + $0x6d8] sm:$0xff]
      %v449 = vld [vmem:[%s196 + $0x6e0] sm:$0xf]
      %v450 = vld [vmem:[%s196 + $0x6e4] sm:$0xff]
      %v451 = vld [vmem:[%s196 + $0x6ec] sm:$0xff]
      %v452 = vld [vmem:[%s196 + $0x6f4] sm:$0xff]
      %v453 = vld [vmem:[%s196 + $0x6fc] sm:$0xff]
      %v454 = vld [vmem:[%s196 + $0x704] sm:$0xf]
      %v455 = vld [vmem:[%s196 + $0x708] sm:$0xff]
      %v456 = vld [vmem:[%s196 + $0x710] sm:$0xff]
      %v457 = vld [vmem:[%s196 + $0x718] sm:$0xff]
      %v458 = vld [vmem:[%s196 + $0x720] sm:$0xff]
      %v459 = vld [vmem:[%s196 + $0x728] sm:$0xf]
      %v460 = vld [vmem:[%s196 + $0x72c] sm:$0xff]
      %v461 = vld [vmem:[%s196 + $0x734] sm:$0xff]
      %v462 = vld [vmem:[%s196 + $0x73c] sm:$0xff]
      %v463 = vld [vmem:[%s196 + $0x744] sm:$0xff]
      %v464 = vld [vmem:[%s196 + $0x74c] sm:$0xf]
      %v465 = vld [vmem:[%s196 + $0x750] sm:$0xff]
      %v466 = vld [vmem:[%s196 + $0x758] sm:$0xff]
      %v467 = vld [vmem:[%s196 + $0x760] sm:$0xff]
      %v468 = vld [vmem:[%s196 + $0x768] sm:$0xff]
      %v469 = vld [vmem:[%s196 + $0x770] sm:$0xf]
      %v470 = vld [vmem:[%s196 + $0x774] sm:$0xff]
      %v471 = vld [vmem:[%s196 + $0x77c] sm:$0xff]
      %v472 = vld [vmem:[%s196 + $0x784] sm:$0xff]
      %v473 = vld [vmem:[%s196 + $0x78c] sm:$0xff]
      %v474 = vld [vmem:[%s196 + $0x794] sm:$0xf]
      %v475 = vld [vmem:[%s196 + $0x798] sm:$0xff]
      %v476 = vld [vmem:[%s196 + $0x7a0] sm:$0xff]
      %v477 = vld [vmem:[%s196 + $0x7a8] sm:$0xff]
      %v478 = vld [vmem:[%s196 + $0x7b0] sm:$0xff]
      %v479 = vld [vmem:[%s196 + $0x7b8] sm:$0xf]
      %v480 = vld [vmem:[%s196 + $0x7bc] sm:$0xff]
      %v481 = vld [vmem:[%s196 + $0x7c4] sm:$0xff]
      %v482 = vld [vmem:[%s196 + $0x7cc] sm:$0xff]
      %v483 = vld [vmem:[%s196 + $0x7d4] sm:$0xff]
      %v484 = vld [vmem:[%s196 + $0x7dc] sm:$0xf]
      %v485 = vld [vmem:[%s196 + $0x7e0] sm:$0xff]
      %v486 = vld [vmem:[%s196 + $0x7e8] sm:$0xff]
      %v487 = vld [vmem:[%s196 + $0x7f0] sm:$0xff]
      %v488 = vld [vmem:[%s196 + $0x7f8] sm:$0xff]
      %v489 = vld [vmem:[%s196 + $0x800] sm:$0xf]
      %v490 = vld [vmem:[%s196 + $0x804] sm:$0xff]
      %v491 = vld [vmem:[%s196 + $0x80c] sm:$0xff]
      %v492 = vld [vmem:[%s196 + $0x814] sm:$0xff]
      %v493 = vld [vmem:[%s196 + $0x81c] sm:$0xff]
      %v494 = vld [vmem:[%s196 + $0x824] sm:$0xf]
      %v495 = vld [vmem:[%s196 + $0x828] sm:$0xff]
      %v496 = vld [vmem:[%s196 + $0x830] sm:$0xff]
      %v497 = vld [vmem:[%s196 + $0x838] sm:$0xff]
      %v498 = vld [vmem:[%s196 + $0x840] sm:$0xff]
      %v499 = vld [vmem:[%s196 + $0x848] sm:$0xf]
      %v500 = vld [vmem:[%s196 + $0x84c] sm:$0xff]
      %v501 = vld [vmem:[%s196 + $0x854] sm:$0xff]
      %v502 = vld [vmem:[%s196 + $0x85c] sm:$0xff]
      %v503 = vld [vmem:[%s196 + $0x864] sm:$0xff]
      %v504 = vld [vmem:[%s196 + $0x86c] sm:$0xf]
      %v505 = vld [vmem:[%s196 + $0x870] sm:$0xff]
      %v506 = vld [vmem:[%s196 + $0x878] sm:$0xff]
      %v507 = vld [vmem:[%s196 + $0x880] sm:$0xff]
      %v508 = vld [vmem:[%s196 + $0x888] sm:$0xff]
      %v509 = vld [vmem:[%s196 + $0x890] sm:$0xf]
      %v510 = vld [vmem:[%s196 + $0x894] sm:$0xff]
      %v511 = vld [vmem:[%s196 + $0x89c] sm:$0xff]
      %v512 = vld [vmem:[%s196 + $0x8a4] sm:$0xff]
      %v513 = vld [vmem:[%s196 + $0x8ac] sm:$0xff]
      %v514 = vld [vmem:[%s196 + $0x8b4] sm:$0xf]
      %v515 = vld [vmem:[%s196 + $0x8b8] sm:$0xff]
      %v516 = vld [vmem:[%s196 + $0x8c0] sm:$0xff]
      %v517 = vld [vmem:[%s196 + $0x8c8] sm:$0xff]
      %v518 = vld [vmem:[%s196 + $0x8d0] sm:$0xff]
      %v519 = vld [vmem:[%s196 + $0x8d8] sm:$0xf]
      %v520 = vld [vmem:[%s196 + $0x8dc] sm:$0xff]
      %v521 = vld [vmem:[%s196 + $0x8e4] sm:$0xff]
      %v522 = vld [vmem:[%s196 + $0x8ec] sm:$0xff]
      %v523 = vld [vmem:[%s196 + $0x8f4] sm:$0xff]
      %v524 = vld [vmem:[%s196 + $0x8fc] sm:$0xf]
      %v525 = vld [vmem:[%s1] sm:$0xf]
      %v526 = vld [vmem:[%s1 + $0x4] sm:$0xf]
      %v527 = vld [vmem:[%s1 + $0x8] sm:$0xf]
      %v528 = vld [vmem:[%s1 + $0xc] sm:$0xf]
      %v529 = vld [vmem:[%s1 + $0x10] sm:$0xf]
      %v530 = vld [vmem:[%s1 + $0x14] sm:$0xf]
      %v531 = vld [vmem:[%s1 + $0x18] sm:$0xf]
      %v532 = vld [vmem:[%s1 + $0x1c] sm:$0xf]
      %v533 = vld [vmem:[%s1 + $0x20] sm:$0xf]
      %v534 = vld [vmem:[%s1 + $0x24] sm:$0xf]
      %v535 = vld [vmem:[%s1 + $0x28] sm:$0xf]
      %v536 = vld [vmem:[%s1 + $0x2c] sm:$0xf]
      %v537 = vld [vmem:[%s1 + $0x30] sm:$0xf]
      %v538 = vld [vmem:[%s1 + $0x34] sm:$0xf]
      %v539 = vld [vmem:[%s1 + $0x38] sm:$0xf]
      %v540 = vld [vmem:[%s1 + $0x3c] sm:$0xf]
      %v541 = vld [vmem:[%s1 + $0x40] sm:$0xf]
      %v542 = vld [vmem:[%s1 + $0x44] sm:$0xf]
      %v543 = vld [vmem:[%s1 + $0x48] sm:$0xf]
      %v544 = vld [vmem:[%s1 + $0x4c] sm:$0xf]
      %v545 = vld [vmem:[%s1 + $0x50] sm:$0xf]
      %v546 = vld [vmem:[%s1 + $0x54] sm:$0xf]
      %v547 = vld [vmem:[%s1 + $0x58] sm:$0xf]
      %v548 = vld [vmem:[%s1 + $0x5c] sm:$0xf]
      %v549 = vld [vmem:[%s1 + $0x60] sm:$0xf]
      %v550 = vld [vmem:[%s1 + $0x64] sm:$0xf]
      %v551 = vld [vmem:[%s1 + $0x68] sm:$0xf]
      %v552 = vld [vmem:[%s1 + $0x6c] sm:$0xf]
      %v553 = vld [vmem:[%s1 + $0x70] sm:$0xf]
      %v554 = vld [vmem:[%s1 + $0x74] sm:$0xf]
      %v555 = vld [vmem:[%s1 + $0x78] sm:$0xf]
      %v556 = vld [vmem:[%s1 + $0x7c] sm:$0xf]
      %v557 = vld [vmem:[%s1 + $0x80] sm:$0xf]
      %v558 = vld [vmem:[%s1 + $0x84] sm:$0xf]
      %v559 = vld [vmem:[%s1 + $0x88] sm:$0xf]
      %v560 = vld [vmem:[%s1 + $0x8c] sm:$0xf]
      %v561 = vld [vmem:[%s1 + $0x90] sm:$0xf]
      %v562 = vld [vmem:[%s1 + $0x94] sm:$0xf]
      %v563 = vld [vmem:[%s1 + $0x98] sm:$0xf]
      %v564 = vld [vmem:[%s1 + $0x9c] sm:$0xf]
      %v565 = vld [vmem:[%s1 + $0xa0] sm:$0xf]
      %v566 = vld [vmem:[%s1 + $0xa4] sm:$0xf]
      %v567 = vld [vmem:[%s1 + $0xa8] sm:$0xf]
      %v568 = vld [vmem:[%s1 + $0xac] sm:$0xf]
      %v569 = vld [vmem:[%s1 + $0xb0] sm:$0xf]
      %v570 = vld [vmem:[%s1 + $0xb4] sm:$0xf]
      %v571 = vld [vmem:[%s1 + $0xb8] sm:$0xf]
      %v572 = vld [vmem:[%s1 + $0xbc] sm:$0xf]
      %v573 = vld [vmem:[%s1 + $0xc0] sm:$0xf]
      %v574 = vld [vmem:[%s1 + $0xc4] sm:$0xf]
      %v575 = vld [vmem:[%s1 + $0xc8] sm:$0xf]
      %v576 = vld [vmem:[%s1 + $0xcc] sm:$0xf]
      %v577 = vld [vmem:[%s1 + $0xd0] sm:$0xf]
      %v578 = vld [vmem:[%s1 + $0xd4] sm:$0xf]
      %v579 = vld [vmem:[%s1 + $0xd8] sm:$0xf]
      %v580 = vld [vmem:[%s1 + $0xdc] sm:$0xf]
      %v581 = vld [vmem:[%s1 + $0xe0] sm:$0xf]
      %v582 = vld [vmem:[%s1 + $0xe4] sm:$0xf]
      %v583 = vld [vmem:[%s1 + $0xe8] sm:$0xf]
      %v584 = vld [vmem:[%s1 + $0xec] sm:$0xf]
      %v585 = vld [vmem:[%s1 + $0xf0] sm:$0xf]
      %v586 = vld [vmem:[%s1 + $0xf4] sm:$0xf]
      %v587 = vld [vmem:[%s1 + $0xf8] sm:$0xf]
      %v588 = vld [vmem:[%s1 + $0xfc] sm:$0xf]
      %v589 = vld [vmem:[%s1 + $0x100] sm:$0xf]
      %v590 = vld [vmem:[%s1 + $0x104] sm:$0xf]
      %v591 = vld [vmem:[%s1 + $0x108] sm:$0xf]
      %v592 = vld [vmem:[%s1 + $0x10c] sm:$0xf]
      %v593 = vld [vmem:[%s1 + $0x110] sm:$0xf]
      %v594 = vld [vmem:[%s1 + $0x114] sm:$0xf]
      %v595 = vld [vmem:[%s1 + $0x118] sm:$0xf]
      %v596 = vld [vmem:[%s1 + $0x11c] sm:$0xf]
      %v597 = vld [vmem:[%s1 + $0x120] sm:$0xf]
      %v598 = vld [vmem:[%s1 + $0x124] sm:$0xf]
      %v599 = vld [vmem:[%s1 + $0x128] sm:$0xf]
      %v600 = vld [vmem:[%s1 + $0x12c] sm:$0xf]
      %v601 = vld [vmem:[%s1 + $0x130] sm:$0xf]
      %v602 = vld [vmem:[%s1 + $0x134] sm:$0xf]
      %v603 = vld [vmem:[%s1 + $0x138] sm:$0xf]
      %v604 = vld [vmem:[%s1 + $0x13c] sm:$0xf]
      %v605 = vld [vmem:[%s1 + $0x140] sm:$0xf]
      %v606 = vld [vmem:[%s1 + $0x144] sm:$0xf]
      %v607 = vld [vmem:[%s1 + $0x148] sm:$0xf]
      %v608 = vld [vmem:[%s1 + $0x14c] sm:$0xf]
      %v609 = vld [vmem:[%s1 + $0x150] sm:$0xf]
      %v610 = vld [vmem:[%s1 + $0x154] sm:$0xf]
      %v611 = vld [vmem:[%s1 + $0x158] sm:$0xf]
      %v612 = vld [vmem:[%s1 + $0x15c] sm:$0xf]
      %v613 = vld [vmem:[%s1 + $0x160] sm:$0xf]
      %v614 = vld [vmem:[%s1 + $0x164] sm:$0xf]
      %v615 = vld [vmem:[%s1 + $0x168] sm:$0xf]
      %v616 = vld [vmem:[%s1 + $0x16c] sm:$0xf]
      %v617 = vld [vmem:[%s1 + $0x170] sm:$0xf]
      %v618 = vld [vmem:[%s1 + $0x174] sm:$0xf]
      %v619 = vld [vmem:[%s1 + $0x178] sm:$0xf]
      %v620 = vld [vmem:[%s1 + $0x17c] sm:$0xf]
      %v621 = vld [vmem:[%s1 + $0x180] sm:$0xf]
      %v622 = vld [vmem:[%s1 + $0x184] sm:$0xf]
      %v623 = vld [vmem:[%s1 + $0x188] sm:$0xf]
      %v624 = vld [vmem:[%s1 + $0x18c] sm:$0xf]
      %v625 = vld [vmem:[%s1 + $0x190] sm:$0xf]
      %v626 = vld [vmem:[%s1 + $0x194] sm:$0xf]
      %v627 = vld [vmem:[%s1 + $0x198] sm:$0xf]
      %v628 = vld [vmem:[%s1 + $0x19c] sm:$0xf]
      %v629 = vld [vmem:[%s1 + $0x1a0] sm:$0xf]
      %v630 = vld [vmem:[%s1 + $0x1a4] sm:$0xf]
      %v631 = vld [vmem:[%s1 + $0x1a8] sm:$0xf]
      %v632 = vld [vmem:[%s1 + $0x1ac] sm:$0xf]
      %v633 = vld [vmem:[%s1 + $0x1b0] sm:$0xf]
      %v634 = vld [vmem:[%s1 + $0x1b4] sm:$0xf]
      %v635 = vld [vmem:[%s1 + $0x1b8] sm:$0xf]
      %v636 = vld [vmem:[%s1 + $0x1bc] sm:$0xf]
      %v637 = vld [vmem:[%s1 + $0x1c0] sm:$0xf]
      %v638 = vld [vmem:[%s1 + $0x1c4] sm:$0xf]
      %v639 = vld [vmem:[%s1 + $0x1c8] sm:$0xf]
      %v640 = vld [vmem:[%s1 + $0x1cc] sm:$0xf]
      %v641 = vld [vmem:[%s1 + $0x1d0] sm:$0xf]
      %v642 = vld [vmem:[%s1 + $0x1d4] sm:$0xf]
      %v643 = vld [vmem:[%s1 + $0x1d8] sm:$0xf]
      %v644 = vld [vmem:[%s1 + $0x1dc] sm:$0xf]
      %v645 = vld [vmem:[%s1 + $0x1e0] sm:$0xf]
      %v646 = vld [vmem:[%s1 + $0x1e4] sm:$0xf]
      %v647 = vld [vmem:[%s1 + $0x1e8] sm:$0xf]
      %v648 = vld [vmem:[%s1 + $0x1ec] sm:$0xf]
      %v649 = vld [vmem:[%s1 + $0x1f0] sm:$0xf]
      %v650 = vld [vmem:[%s1 + $0x1f4] sm:$0xf]
      %v651 = vld [vmem:[%s1 + $0x1f8] sm:$0xf]
      %v652 = vld [vmem:[%s1 + $0x1fc] sm:$0xf]
      %v653 = vld [vmem:[%s1 + $0x200] sm:$0xf]
      %v974 = vunpack.c.l.b16 %v205
      %v975 = vunpack.c.h.b16 %v205
      %v976 = vunpack.c.l.b16 %v206
      %v977 = vunpack.c.h.b16 %v206
      %v978 = vunpack.c.l.b16 %v207
      %v979 = vunpack.c.h.b16 %v207
      %v980 = vunpack.c.l.b16 %v208
      %v981 = vunpack.c.h.b16 %v208
      %v982 = vunpack.c.l.b16 %v209
      %v983 = vunpack.c.l.b16 %v210
      %v984 = vunpack.c.h.b16 %v210
      %v985 = vunpack.c.l.b16 %v211
      %v986 = vunpack.c.h.b16 %v211
      %v987 = vunpack.c.l.b16 %v212
      %v988 = vunpack.c.h.b16 %v212
      %v989 = vunpack.c.l.b16 %v213
      %v990 = vunpack.c.h.b16 %v213
      %v991 = vunpack.c.l.b16 %v214
      %v992 = vunpack.c.l.b16 %v215
      %v993 = vunpack.c.h.b16 %v215
      %v994 = vunpack.c.l.b16 %v216
      %v995 = vunpack.c.h.b16 %v216
      %v996 = vunpack.c.l.b16 %v217
      %v997 = vunpack.c.h.b16 %v217
      %v998 = vunpack.c.l.b16 %v218
      %v999 = vunpack.c.h.b16 %v218
      %v1000 = vunpack.c.l.b16 %v219
      %v1001 = vunpack.c.l.b16 %v220
      %v1002 = vunpack.c.h.b16 %v220
      %v1003 = vunpack.c.l.b16 %v221
      %v1004 = vunpack.c.h.b16 %v221
      %v1005 = vunpack.c.l.b16 %v222
      %v1006 = vunpack.c.h.b16 %v222
      %v1007 = vunpack.c.l.b16 %v223
      %v1008 = vunpack.c.h.b16 %v223
      %v1009 = vunpack.c.l.b16 %v224
      %v1010 = vunpack.c.l.b16 %v225
      %v1011 = vunpack.c.h.b16 %v225
      %v1012 = vunpack.c.l.b16 %v226
      %v1013 = vunpack.c.h.b16 %v226
      %v1014 = vunpack.c.l.b16 %v227
      %v1015 = vunpack.c.h.b16 %v227
      %v1016 = vunpack.c.l.b16 %v228
      %v1017 = vunpack.c.h.b16 %v228
      %v1018 = vunpack.c.l.b16 %v229
      %v1019 = vunpack.c.l.b16 %v230
      %v1020 = vunpack.c.h.b16 %v230
      %v1021 = vunpack.c.l.b16 %v231
      %v1022 = vunpack.c.h.b16 %v231
      %v1023 = vunpack.c.l.b16 %v232
      %v1024 = vunpack.c.h.b16 %v232
      %v1025 = vunpack.c.l.b16 %v233
      %v1026 = vunpack.c.h.b16 %v233
      %v1027 = vunpack.c.l.b16 %v234
      %v1028 = vunpack.c.l.b16 %v235
      %v1029 = vunpack.c.h.b16 %v235
      %v1030 = vunpack.c.l.b16 %v236
      %v1031 = vunpack.c.h.b16 %v236
      %v1032 = vunpack.c.l.b16 %v237
      %v1033 = vunpack.c.h.b16 %v237
      %v1034 = vunpack.c.l.b16 %v238
      %v1035 = vunpack.c.h.b16 %v238
      %v1036 = vunpack.c.l.b16 %v239
      %v1037 = vunpack.c.l.b16 %v240
      %v1038 = vunpack.c.h.b16 %v240
      %v1039 = vunpack.c.l.b16 %v241
      %v1040 = vunpack.c.h.b16 %v241
      %v1041 = vunpack.c.l.b16 %v242
      %v1042 = vunpack.c.h.b16 %v242
      %v1043 = vunpack.c.l.b16 %v243
      %v1044 = vunpack.c.h.b16 %v243
      %v1045 = vunpack.c.l.b16 %v244
      %v1046 = vunpack.c.l.b16 %v245
      %v1047 = vunpack.c.h.b16 %v245
      %v1048 = vunpack.c.l.b16 %v246
      %v1049 = vunpack.c.h.b16 %v246
      %v1050 = vunpack.c.l.b16 %v247
      %v1051 = vunpack.c.h.b16 %v247
      %v1052 = vunpack.c.l.b16 %v248
      %v1053 = vunpack.c.h.b16 %v248
      %v1054 = vunpack.c.l.b16 %v249
      %v1055 = vunpack.c.l.b16 %v250
      %v1056 = vunpack.c.h.b16 %v250
      %v1057 = vunpack.c.l.b16 %v251
      %v1058 = vunpack.c.h.b16 %v251
      %v1059 = vunpack.c.l.b16 %v252
      %v1060 = vunpack.c.h.b16 %v252
      %v1061 = vunpack.c.l.b16 %v253
      %v1062 = vunpack.c.h.b16 %v253
      %v1063 = vunpack.c.l.b16 %v254
      %v1064 = vunpack.c.l.b16 %v255
      %v1065 = vunpack.c.h.b16 %v255
      %v1066 = vunpack.c.l.b16 %v256
      %v1067 = vunpack.c.h.b16 %v256
      %v1068 = vunpack.c.l.b16 %v257
      %v1069 = vunpack.c.h.b16 %v257
      %v1070 = vunpack.c.l.b16 %v258
      %v1071 = vunpack.c.h.b16 %v258
      %v1072 = vunpack.c.l.b16 %v259
      %v1073 = vunpack.c.l.b16 %v260
      %v1074 = vunpack.c.h.b16 %v260
      %v1075 = vunpack.c.l.b16 %v261
      %v1076 = vunpack.c.h.b16 %v261
      %v1077 = vunpack.c.l.b16 %v262
      %v1078 = vunpack.c.h.b16 %v262
      %v1079 = vunpack.c.l.b16 %v263
      %v1080 = vunpack.c.h.b16 %v263
      %v1081 = vunpack.c.l.b16 %v264
      %v1082 = vunpack.c.l.b16 %v265
      %v1083 = vunpack.c.h.b16 %v265
      %v1084 = vunpack.c.l.b16 %v266
      %v1085 = vunpack.c.h.b16 %v266
      %v1086 = vunpack.c.l.b16 %v267
      %v1087 = vunpack.c.h.b16 %v267
      %v1088 = vunpack.c.l.b16 %v268
      %v1089 = vunpack.c.h.b16 %v268
      %v1090 = vunpack.c.l.b16 %v269
      %v1091 = vunpack.c.l.b16 %v270
      %v1092 = vunpack.c.h.b16 %v270
      %v1093 = vunpack.c.l.b16 %v271
      %v1094 = vunpack.c.h.b16 %v271
      %v1095 = vunpack.c.l.b16 %v272
      %v1096 = vunpack.c.h.b16 %v272
      %v1097 = vunpack.c.l.b16 %v273
      %v1098 = vunpack.c.h.b16 %v273
      %v1099 = vunpack.c.l.b16 %v274
      %v1100 = vunpack.c.l.b16 %v275
      %v1101 = vunpack.c.h.b16 %v275
      %v1102 = vunpack.c.l.b16 %v276
      %v1103 = vunpack.c.h.b16 %v276
      %v1104 = vunpack.c.l.b16 %v277
      %v1105 = vunpack.c.h.b16 %v277
      %v1106 = vunpack.c.l.b16 %v278
      %v1107 = vunpack.c.h.b16 %v278
      %v1108 = vunpack.c.l.b16 %v279
      %v1109 = vunpack.c.l.b16 %v280
      %v1110 = vunpack.c.h.b16 %v280
      %v1111 = vunpack.c.l.b16 %v281
      %v1112 = vunpack.c.h.b16 %v281
      %v1113 = vunpack.c.l.b16 %v282
      %v1114 = vunpack.c.h.b16 %v282
      %v1115 = vunpack.c.l.b16 %v283
      %v1116 = vunpack.c.h.b16 %v283
      %v1117 = vunpack.c.l.b16 %v284
      %v1118 = vunpack.c.l.b16 %v285
      %v1119 = vunpack.c.h.b16 %v285
      %v1120 = vunpack.c.l.b16 %v286
      %v1121 = vunpack.c.h.b16 %v286
      %v1122 = vunpack.c.l.b16 %v287
      %v1123 = vunpack.c.h.b16 %v287
      %v1124 = vunpack.c.l.b16 %v288
      %v1125 = vunpack.c.h.b16 %v288
      %v1126 = vunpack.c.l.b16 %v289
      %v1127 = vunpack.c.l.b16 %v290
      %v1128 = vunpack.c.h.b16 %v290
      %v1129 = vunpack.c.l.b16 %v291
      %v1130 = vunpack.c.h.b16 %v291
      %v1131 = vunpack.c.l.b16 %v292
      %v1132 = vunpack.c.h.b16 %v292
      %v1133 = vunpack.c.l.b16 %v293
      %v1134 = vunpack.c.h.b16 %v293
      %v1135 = vunpack.c.l.b16 %v294
      %v1136 = vunpack.c.l.b16 %v295
      %v1137 = vunpack.c.h.b16 %v295
      %v1138 = vunpack.c.l.b16 %v296
      %v1139 = vunpack.c.h.b16 %v296
      %v1140 = vunpack.c.l.b16 %v297
      %v1141 = vunpack.c.h.b16 %v297
      %v1142 = vunpack.c.l.b16 %v298
      %v1143 = vunpack.c.h.b16 %v298
      %v1144 = vunpack.c.l.b16 %v299
      %v1145 = vunpack.c.l.b16 %v300
      %v1146 = vunpack.c.h.b16 %v300
      %v1147 = vunpack.c.l.b16 %v301
      %v1148 = vunpack.c.h.b16 %v301
      %v1149 = vunpack.c.l.b16 %v302
      %v1150 = vunpack.c.h.b16 %v302
      %v1151 = vunpack.c.l.b16 %v303
      %v1152 = vunpack.c.h.b16 %v303
      %v1153 = vunpack.c.l.b16 %v304
      %v1154 = vunpack.c.l.b16 %v305
      %v1155 = vunpack.c.h.b16 %v305
      %v1156 = vunpack.c.l.b16 %v306
      %v1157 = vunpack.c.h.b16 %v306
      %v1158 = vunpack.c.l.b16 %v307
      %v1159 = vunpack.c.h.b16 %v307
      %v1160 = vunpack.c.l.b16 %v308
      %v1161 = vunpack.c.h.b16 %v308
      %v1162 = vunpack.c.l.b16 %v309
      %v1163 = vunpack.c.l.b16 %v310
      %v1164 = vunpack.c.h.b16 %v310
      %v1165 = vunpack.c.l.b16 %v311
      %v1166 = vunpack.c.h.b16 %v311
      %v1167 = vunpack.c.l.b16 %v312
      %v1168 = vunpack.c.h.b16 %v312
      %v1169 = vunpack.c.l.b16 %v313
      %v1170 = vunpack.c.h.b16 %v313
      %v1171 = vunpack.c.l.b16 %v314
      %v1172 = vunpack.c.l.b16 %v315
      %v1173 = vunpack.c.h.b16 %v315
      %v1174 = vunpack.c.l.b16 %v316
      %v1175 = vunpack.c.h.b16 %v316
      %v1176 = vunpack.c.l.b16 %v317
      %v1177 = vunpack.c.h.b16 %v317
      %v1178 = vunpack.c.l.b16 %v318
      %v1179 = vunpack.c.h.b16 %v318
      %v1180 = vunpack.c.l.b16 %v319
      %v1181 = vunpack.c.l.b16 %v320
      %v1182 = vunpack.c.h.b16 %v320
      %v1183 = vunpack.c.l.b16 %v321
      %v1184 = vunpack.c.h.b16 %v321
      %v1185 = vunpack.c.l.b16 %v322
      %v1186 = vunpack.c.h.b16 %v322
      %v1187 = vunpack.c.l.b16 %v323
      %v1188 = vunpack.c.h.b16 %v323
      %v1189 = vunpack.c.l.b16 %v324
      %v1190 = vunpack.c.l.b16 %v325
      %v1191 = vunpack.c.h.b16 %v325
      %v1192 = vunpack.c.l.b16 %v326
      %v1193 = vunpack.c.h.b16 %v326
      %v1194 = vunpack.c.l.b16 %v327
      %v1195 = vunpack.c.h.b16 %v327
      %v1196 = vunpack.c.l.b16 %v328
      %v1197 = vunpack.c.h.b16 %v328
      %v1198 = vunpack.c.l.b16 %v329
      %v1199 = vunpack.c.l.b16 %v330
      %v1200 = vunpack.c.h.b16 %v330
      %v1201 = vunpack.c.l.b16 %v331
      %v1202 = vunpack.c.h.b16 %v331
      %v1203 = vunpack.c.l.b16 %v332
      %v1204 = vunpack.c.h.b16 %v332
      %v1205 = vunpack.c.l.b16 %v333
      %v1206 = vunpack.c.h.b16 %v333
      %v1207 = vunpack.c.l.b16 %v334
      %v1208 = vunpack.c.l.b16 %v335
      %v1209 = vunpack.c.h.b16 %v335
      %v1210 = vunpack.c.l.b16 %v336
      %v1211 = vunpack.c.h.b16 %v336
      %v1212 = vunpack.c.l.b16 %v337
      %v1213 = vunpack.c.h.b16 %v337
      %v1214 = vunpack.c.l.b16 %v338
      %v1215 = vunpack.c.h.b16 %v338
      %v1216 = vunpack.c.l.b16 %v339
      %v1217 = vunpack.c.l.b16 %v340
      %v1218 = vunpack.c.h.b16 %v340
      %v1219 = vunpack.c.l.b16 %v341
      %v1220 = vunpack.c.h.b16 %v341
      %v1221 = vunpack.c.l.b16 %v342
      %v1222 = vunpack.c.h.b16 %v342
      %v1223 = vunpack.c.l.b16 %v343
      %v1224 = vunpack.c.h.b16 %v343
      %v1225 = vunpack.c.l.b16 %v344
      %v1226 = vunpack.c.l.b16 %v345
      %v1227 = vunpack.c.h.b16 %v345
      %v1228 = vunpack.c.l.b16 %v346
      %v1229 = vunpack.c.h.b16 %v346
      %v1230 = vunpack.c.l.b16 %v347
      %v1231 = vunpack.c.h.b16 %v347
      %v1232 = vunpack.c.l.b16 %v348
      %v1233 = vunpack.c.h.b16 %v348
      %v1234 = vunpack.c.l.b16 %v349
      %v1235 = vunpack.c.l.b16 %v350
      %v1236 = vunpack.c.h.b16 %v350
      %v1237 = vunpack.c.l.b16 %v351
      %v1238 = vunpack.c.h.b16 %v351
      %v1239 = vunpack.c.l.b16 %v352
      %v1240 = vunpack.c.h.b16 %v352
      %v1241 = vunpack.c.l.b16 %v353
      %v1242 = vunpack.c.h.b16 %v353
      %v1243 = vunpack.c.l.b16 %v354
      %v1244 = vunpack.c.l.b16 %v355
      %v1245 = vunpack.c.h.b16 %v355
      %v1246 = vunpack.c.l.b16 %v356
      %v1247 = vunpack.c.h.b16 %v356
      %v1248 = vunpack.c.l.b16 %v357
      %v1249 = vunpack.c.h.b16 %v357
      %v1250 = vunpack.c.l.b16 %v358
      %v1251 = vunpack.c.h.b16 %v358
      %v1252 = vunpack.c.l.b16 %v359
      %v1253 = vunpack.c.l.b16 %v360
      %v1254 = vunpack.c.h.b16 %v360
      %v1255 = vunpack.c.l.b16 %v361
      %v1256 = vunpack.c.h.b16 %v361
      %v1257 = vunpack.c.l.b16 %v362
      %v1258 = vunpack.c.h.b16 %v362
      %v1259 = vunpack.c.l.b16 %v363
      %v1260 = vunpack.c.h.b16 %v363
      %v1261 = vunpack.c.l.b16 %v364
      %v1262 = vunpack.c.l.b16 %v365
      %v1263 = vunpack.c.h.b16 %v365
      %v1264 = vunpack.c.l.b16 %v366
      %v1265 = vunpack.c.h.b16 %v366
      %v1266 = vunpack.c.l.b16 %v367
      %v1267 = vunpack.c.h.b16 %v367
      %v1268 = vunpack.c.l.b16 %v368
      %v1269 = vunpack.c.h.b16 %v368
      %v1270 = vunpack.c.l.b16 %v369
      %v1271 = vunpack.c.l.b16 %v370
      %v1272 = vunpack.c.h.b16 %v370
      %v1273 = vunpack.c.l.b16 %v371
      %v1274 = vunpack.c.h.b16 %v371
      %v1275 = vunpack.c.l.b16 %v372
      %v1276 = vunpack.c.h.b16 %v372
      %v1277 = vunpack.c.l.b16 %v373
      %v1278 = vunpack.c.h.b16 %v373
      %v1279 = vunpack.c.l.b16 %v374
      %v1280 = vunpack.c.l.b16 %v375
      %v1281 = vunpack.c.h.b16 %v375
      %v1282 = vunpack.c.l.b16 %v376
      %v1283 = vunpack.c.h.b16 %v376
      %v1284 = vunpack.c.l.b16 %v377
      %v1285 = vunpack.c.h.b16 %v377
      %v1286 = vunpack.c.l.b16 %v378
      %v1287 = vunpack.c.h.b16 %v378
      %v1288 = vunpack.c.l.b16 %v379
      %v1289 = vunpack.c.l.b16 %v380
      %v1290 = vunpack.c.h.b16 %v380
      %v1291 = vunpack.c.l.b16 %v381
      %v1292 = vunpack.c.h.b16 %v381
      %v1293 = vunpack.c.l.b16 %v382
      %v1294 = vunpack.c.h.b16 %v382
      %v1295 = vunpack.c.l.b16 %v383
      %v1296 = vunpack.c.h.b16 %v383
      %v1297 = vunpack.c.l.b16 %v384
      %v1298 = vunpack.c.l.b16 %v385
      %v1299 = vunpack.c.h.b16 %v385
      %v1300 = vunpack.c.l.b16 %v386
      %v1301 = vunpack.c.h.b16 %v386
      %v1302 = vunpack.c.l.b16 %v387
      %v1303 = vunpack.c.h.b16 %v387
      %v1304 = vunpack.c.l.b16 %v388
      %v1305 = vunpack.c.h.b16 %v388
      %v1306 = vunpack.c.l.b16 %v389
      %v1307 = vunpack.c.l.b16 %v390
      %v1308 = vunpack.c.h.b16 %v390
      %v1309 = vunpack.c.l.b16 %v391
      %v1310 = vunpack.c.h.b16 %v391
      %v1311 = vunpack.c.l.b16 %v392
      %v1312 = vunpack.c.h.b16 %v392
      %v1313 = vunpack.c.l.b16 %v393
      %v1314 = vunpack.c.h.b16 %v393
      %v1315 = vunpack.c.l.b16 %v394
      %v1316 = vunpack.c.l.b16 %v395
      %v1317 = vunpack.c.h.b16 %v395
      %v1318 = vunpack.c.l.b16 %v396
      %v1319 = vunpack.c.h.b16 %v396
      %v1320 = vunpack.c.l.b16 %v397
      %v1321 = vunpack.c.h.b16 %v397
      %v1322 = vunpack.c.l.b16 %v398
      %v1323 = vunpack.c.h.b16 %v398
      %v1324 = vunpack.c.l.b16 %v399
      %v1325 = vunpack.c.l.b16 %v400
      %v1326 = vunpack.c.h.b16 %v400
      %v1327 = vunpack.c.l.b16 %v401
      %v1328 = vunpack.c.h.b16 %v401
      %v1329 = vunpack.c.l.b16 %v402
      %v1330 = vunpack.c.h.b16 %v402
      %v1331 = vunpack.c.l.b16 %v403
      %v1332 = vunpack.c.h.b16 %v403
      %v1333 = vunpack.c.l.b16 %v404
      %v1334 = vunpack.c.l.b16 %v405
      %v1335 = vunpack.c.h.b16 %v405
      %v1336 = vunpack.c.l.b16 %v406
      %v1337 = vunpack.c.h.b16 %v406
      %v1338 = vunpack.c.l.b16 %v407
      %v1339 = vunpack.c.h.b16 %v407
      %v1340 = vunpack.c.l.b16 %v408
      %v1341 = vunpack.c.h.b16 %v408
      %v1342 = vunpack.c.l.b16 %v409
      %v1343 = vunpack.c.l.b16 %v410
      %v1344 = vunpack.c.h.b16 %v410
      %v1345 = vunpack.c.l.b16 %v411
      %v1346 = vunpack.c.h.b16 %v411
      %v1347 = vunpack.c.l.b16 %v412
      %v1348 = vunpack.c.h.b16 %v412
      %v1349 = vunpack.c.l.b16 %v413
      %v1350 = vunpack.c.h.b16 %v413
      %v1351 = vunpack.c.l.b16 %v414
      %v1352 = vunpack.c.l.b16 %v415
      %v1353 = vunpack.c.h.b16 %v415
      %v1354 = vunpack.c.l.b16 %v416
      %v1355 = vunpack.c.h.b16 %v416
      %v1356 = vunpack.c.l.b16 %v417
      %v1357 = vunpack.c.h.b16 %v417
      %v1358 = vunpack.c.l.b16 %v418
      %v1359 = vunpack.c.h.b16 %v418
      %v1360 = vunpack.c.l.b16 %v419
      %v1361 = vunpack.c.l.b16 %v420
      %v1362 = vunpack.c.h.b16 %v420
      %v1363 = vunpack.c.l.b16 %v421
      %v1364 = vunpack.c.h.b16 %v421
      %v1365 = vunpack.c.l.b16 %v422
      %v1366 = vunpack.c.h.b16 %v422
      %v1367 = vunpack.c.l.b16 %v423
      %v1368 = vunpack.c.h.b16 %v423
      %v1369 = vunpack.c.l.b16 %v424
      %v1370 = vunpack.c.l.b16 %v425
      %v1371 = vunpack.c.h.b16 %v425
      %v1372 = vunpack.c.l.b16 %v426
      %v1373 = vunpack.c.h.b16 %v426
      %v1374 = vunpack.c.l.b16 %v427
      %v1375 = vunpack.c.h.b16 %v427
      %v1376 = vunpack.c.l.b16 %v428
      %v1377 = vunpack.c.h.b16 %v428
      %v1378 = vunpack.c.l.b16 %v429
      %v1379 = vunpack.c.l.b16 %v430
      %v1380 = vunpack.c.h.b16 %v430
      %v1381 = vunpack.c.l.b16 %v431
      %v1382 = vunpack.c.h.b16 %v431
      %v1383 = vunpack.c.l.b16 %v432
      %v1384 = vunpack.c.h.b16 %v432
      %v1385 = vunpack.c.l.b16 %v433
      %v1386 = vunpack.c.h.b16 %v433
      %v1387 = vunpack.c.l.b16 %v434
      %v1388 = vunpack.c.l.b16 %v435
      %v1389 = vunpack.c.h.b16 %v435
      %v1390 = vunpack.c.l.b16 %v436
      %v1391 = vunpack.c.h.b16 %v436
      %v1392 = vunpack.c.l.b16 %v437
      %v1393 = vunpack.c.h.b16 %v437
      %v1394 = vunpack.c.l.b16 %v438
      %v1395 = vunpack.c.h.b16 %v438
      %v1396 = vunpack.c.l.b16 %v439
      %v1397 = vunpack.c.l.b16 %v440
      %v1398 = vunpack.c.h.b16 %v440
      %v1399 = vunpack.c.l.b16 %v441
      %v1400 = vunpack.c.h.b16 %v441
      %v1401 = vunpack.c.l.b16 %v442
      %v1402 = vunpack.c.h.b16 %v442
      %v1403 = vunpack.c.l.b16 %v443
      %v1404 = vunpack.c.h.b16 %v443
      %v1405 = vunpack.c.l.b16 %v444
      %v1406 = vunpack.c.l.b16 %v445
      %v1407 = vunpack.c.h.b16 %v445
      %v1408 = vunpack.c.l.b16 %v446
      %v1409 = vunpack.c.h.b16 %v446
      %v1410 = vunpack.c.l.b16 %v447
      %v1411 = vunpack.c.h.b16 %v447
      %v1412 = vunpack.c.l.b16 %v448
      %v1413 = vunpack.c.h.b16 %v448
      %v1414 = vunpack.c.l.b16 %v449
      %v1415 = vunpack.c.l.b16 %v450
      %v1416 = vunpack.c.h.b16 %v450
      %v1417 = vunpack.c.l.b16 %v451
      %v1418 = vunpack.c.h.b16 %v451
      %v1419 = vunpack.c.l.b16 %v452
      %v1420 = vunpack.c.h.b16 %v452
      %v1421 = vunpack.c.l.b16 %v453
      %v1422 = vunpack.c.h.b16 %v453
      %v1423 = vunpack.c.l.b16 %v454
      %v1424 = vunpack.c.l.b16 %v455
      %v1425 = vunpack.c.h.b16 %v455
      %v1426 = vunpack.c.l.b16 %v456
      %v1427 = vunpack.c.h.b16 %v456
      %v1428 = vunpack.c.l.b16 %v457
      %v1429 = vunpack.c.h.b16 %v457
      %v1430 = vunpack.c.l.b16 %v458
      %v1431 = vunpack.c.h.b16 %v458
      %v1432 = vunpack.c.l.b16 %v459
      %v1433 = vunpack.c.l.b16 %v460
      %v1434 = vunpack.c.h.b16 %v460
      %v1435 = vunpack.c.l.b16 %v461
      %v1436 = vunpack.c.h.b16 %v461
      %v1437 = vunpack.c.l.b16 %v462
      %v1438 = vunpack.c.h.b16 %v462
      %v1439 = vunpack.c.l.b16 %v463
      %v1440 = vunpack.c.h.b16 %v463
      %v1441 = vunpack.c.l.b16 %v464
      %v1442 = vunpack.c.l.b16 %v465
      %v1443 = vunpack.c.h.b16 %v465
      %v1444 = vunpack.c.l.b16 %v466
      %v1445 = vunpack.c.h.b16 %v466
      %v1446 = vunpack.c.l.b16 %v467
      %v1447 = vunpack.c.h.b16 %v467
      %v1448 = vunpack.c.l.b16 %v468
      %v1449 = vunpack.c.h.b16 %v468
      %v1450 = vunpack.c.l.b16 %v469
      %v1451 = vunpack.c.l.b16 %v470
      %v1452 = vunpack.c.h.b16 %v470
      %v1453 = vunpack.c.l.b16 %v471
      %v1454 = vunpack.c.h.b16 %v471
      %v1455 = vunpack.c.l.b16 %v472
      %v1456 = vunpack.c.h.b16 %v472
      %v1457 = vunpack.c.l.b16 %v473
      %v1458 = vunpack.c.h.b16 %v473
      %v1459 = vunpack.c.l.b16 %v474
      %v1460 = vunpack.c.l.b16 %v475
      %v1461 = vunpack.c.h.b16 %v475
      %v1462 = vunpack.c.l.b16 %v476
      %v1463 = vunpack.c.h.b16 %v476
      %v1464 = vunpack.c.l.b16 %v477
      %v1465 = vunpack.c.h.b16 %v477
      %v1466 = vunpack.c.l.b16 %v478
      %v1467 = vunpack.c.h.b16 %v478
      %v1468 = vunpack.c.l.b16 %v479
      %v1469 = vunpack.c.l.b16 %v480
      %v1470 = vunpack.c.h.b16 %v480
      %v1471 = vunpack.c.l.b16 %v481
      %v1472 = vunpack.c.h.b16 %v481
      %v1473 = vunpack.c.l.b16 %v482
      %v1474 = vunpack.c.h.b16 %v482
      %v1475 = vunpack.c.l.b16 %v483
      %v1476 = vunpack.c.h.b16 %v483
      %v1477 = vunpack.c.l.b16 %v484
      %v1478 = vunpack.c.l.b16 %v485
      %v1479 = vunpack.c.h.b16 %v485
      %v1480 = vunpack.c.l.b16 %v486
      %v1481 = vunpack.c.h.b16 %v486
      %v1482 = vunpack.c.l.b16 %v487
      %v1483 = vunpack.c.h.b16 %v487
      %v1484 = vunpack.c.l.b16 %v488
      %v1485 = vunpack.c.h.b16 %v488
      %v1486 = vunpack.c.l.b16 %v489
      %v1487 = vunpack.c.l.b16 %v490
      %v1488 = vunpack.c.h.b16 %v490
      %v1489 = vunpack.c.l.b16 %v491
      %v1490 = vunpack.c.h.b16 %v491
      %v1491 = vunpack.c.l.b16 %v492
      %v1492 = vunpack.c.h.b16 %v492
      %v1493 = vunpack.c.l.b16 %v493
      %v1494 = vunpack.c.h.b16 %v493
      %v1495 = vunpack.c.l.b16 %v494
      %v1496 = vunpack.c.l.b16 %v495
      %v1497 = vunpack.c.h.b16 %v495
      %v1498 = vunpack.c.l.b16 %v496
      %v1499 = vunpack.c.h.b16 %v496
      %v1500 = vunpack.c.l.b16 %v497
      %v1501 = vunpack.c.h.b16 %v497
      %v1502 = vunpack.c.l.b16 %v498
      %v1503 = vunpack.c.h.b16 %v498
      %v1504 = vunpack.c.l.b16 %v499
      %v1505 = vunpack.c.l.b16 %v500
      %v1506 = vunpack.c.h.b16 %v500
      %v1507 = vunpack.c.l.b16 %v501
      %v1508 = vunpack.c.h.b16 %v501
      %v1509 = vunpack.c.l.b16 %v502
      %v1510 = vunpack.c.h.b16 %v502
      %v1511 = vunpack.c.l.b16 %v503
      %v1512 = vunpack.c.h.b16 %v503
      %v1513 = vunpack.c.l.b16 %v504
      %v1514 = vunpack.c.l.b16 %v505
      %v1515 = vunpack.c.h.b16 %v505
      %v1516 = vunpack.c.l.b16 %v506
      %v1517 = vunpack.c.h.b16 %v506
      %v1518 = vunpack.c.l.b16 %v507
      %v1519 = vunpack.c.h.b16 %v507
      %v1520 = vunpack.c.l.b16 %v508
      %v1521 = vunpack.c.h.b16 %v508
      %v1522 = vunpack.c.l.b16 %v509
      %v1523 = vunpack.c.l.b16 %v510
      %v1524 = vunpack.c.h.b16 %v510
      %v1525 = vunpack.c.l.b16 %v511
      %v1526 = vunpack.c.h.b16 %v511
      %v1527 = vunpack.c.l.b16 %v512
      %v1528 = vunpack.c.h.b16 %v512
      %v1529 = vunpack.c.l.b16 %v513
      %v1530 = vunpack.c.h.b16 %v513
      %v1531 = vunpack.c.l.b16 %v514
      %v1532 = vunpack.c.l.b16 %v515
      %v1533 = vunpack.c.h.b16 %v515
      %v1534 = vunpack.c.l.b16 %v516
      %v1535 = vunpack.c.h.b16 %v516
      %v1536 = vunpack.c.l.b16 %v517
      %v1537 = vunpack.c.h.b16 %v517
      %v1538 = vunpack.c.l.b16 %v518
      %v1539 = vunpack.c.h.b16 %v518
      %v1540 = vunpack.c.l.b16 %v519
      %v1541 = vunpack.c.l.b16 %v520
      %v1542 = vunpack.c.h.b16 %v520
      %v1543 = vunpack.c.l.b16 %v521
      %v1544 = vunpack.c.h.b16 %v521
      %v1545 = vunpack.c.l.b16 %v522
      %v1546 = vunpack.c.h.b16 %v522
      %v1547 = vunpack.c.l.b16 %v523
      %v1548 = vunpack.c.h.b16 %v523
      %v1549 = vunpack.c.l.b16 %v524
      %v1550 = vpack.c.b16 %v983, %v974
      %v1551 = vpack.c.b16 %v984, %v975
      %v1552 = vpack.c.b16 %v985, %v976
      %v1553 = vpack.c.b16 %v986, %v977
      %v1554 = vpack.c.b16 %v987, %v978
      %v1555 = vpack.c.b16 %v988, %v979
      %v1556 = vpack.c.b16 %v989, %v980
      %v1557 = vpack.c.b16 %v990, %v981
      %v1558 = vpack.c.b16 %v991, %v982
      %v1559 = vpack.c.b16 %v1001, %v992
      %v1560 = vpack.c.b16 %v1002, %v993
      %v1561 = vpack.c.b16 %v1003, %v994
      %v1562 = vpack.c.b16 %v1004, %v995
      %v1563 = vpack.c.b16 %v1005, %v996
      %v1564 = vpack.c.b16 %v1006, %v997
      %v1565 = vpack.c.b16 %v1007, %v998
      %v1566 = vpack.c.b16 %v1008, %v999
      %v1567 = vpack.c.b16 %v1009, %v1000
      %v1568 = vpack.c.b16 %v1019, %v1010
      %v1569 = vpack.c.b16 %v1020, %v1011
      %v1570 = vpack.c.b16 %v1021, %v1012
      %v1571 = vpack.c.b16 %v1022, %v1013
      %v1572 = vpack.c.b16 %v1023, %v1014
      %v1573 = vpack.c.b16 %v1024, %v1015
      %v1574 = vpack.c.b16 %v1025, %v1016
      %v1575 = vpack.c.b16 %v1026, %v1017
      %v1576 = vpack.c.b16 %v1027, %v1018
      %v1577 = vpack.c.b16 %v1037, %v1028
      %v1578 = vpack.c.b16 %v1038, %v1029
      %v1579 = vpack.c.b16 %v1039, %v1030
      %v1580 = vpack.c.b16 %v1040, %v1031
      %v1581 = vpack.c.b16 %v1041, %v1032
      %v1582 = vpack.c.b16 %v1042, %v1033
      %v1583 = vpack.c.b16 %v1043, %v1034
      %v1584 = vpack.c.b16 %v1044, %v1035
      %v1585 = vpack.c.b16 %v1045, %v1036
      %v1586 = vpack.c.b16 %v1055, %v1046
      %v1587 = vpack.c.b16 %v1056, %v1047
      %v1588 = vpack.c.b16 %v1057, %v1048
      %v1589 = vpack.c.b16 %v1058, %v1049
      %v1590 = vpack.c.b16 %v1059, %v1050
      %v1591 = vpack.c.b16 %v1060, %v1051
      %v1592 = vpack.c.b16 %v1061, %v1052
      %v1593 = vpack.c.b16 %v1062, %v1053
      %v1594 = vpack.c.b16 %v1063, %v1054
      %v1595 = vpack.c.b16 %v1073, %v1064
      %v1596 = vpack.c.b16 %v1074, %v1065
      %v1597 = vpack.c.b16 %v1075, %v1066
      %v1598 = vpack.c.b16 %v1076, %v1067
      %v1599 = vpack.c.b16 %v1077, %v1068
      %v1600 = vpack.c.b16 %v1078, %v1069
      %v1601 = vpack.c.b16 %v1079, %v1070
      %v1602 = vpack.c.b16 %v1080, %v1071
      %v1603 = vpack.c.b16 %v1081, %v1072
      %v1604 = vpack.c.b16 %v1091, %v1082
      %v1605 = vpack.c.b16 %v1092, %v1083
      %v1606 = vpack.c.b16 %v1093, %v1084
      %v1607 = vpack.c.b16 %v1094, %v1085
      %v1608 = vpack.c.b16 %v1095, %v1086
      %v1609 = vpack.c.b16 %v1096, %v1087
      %v1610 = vpack.c.b16 %v1097, %v1088
      %v1611 = vpack.c.b16 %v1098, %v1089
      %v1612 = vpack.c.b16 %v1099, %v1090
      %v1613 = vpack.c.b16 %v1109, %v1100
      %v1614 = vpack.c.b16 %v1110, %v1101
      %v1615 = vpack.c.b16 %v1111, %v1102
      %v1616 = vpack.c.b16 %v1112, %v1103
      %v1617 = vpack.c.b16 %v1113, %v1104
      %v1618 = vpack.c.b16 %v1114, %v1105
      %v1619 = vpack.c.b16 %v1115, %v1106
      %v1620 = vpack.c.b16 %v1116, %v1107
      %v1621 = vpack.c.b16 %v1117, %v1108
      %v1622 = vpack.c.b16 %v1127, %v1118
      %v1623 = vpack.c.b16 %v1128, %v1119
      %v1624 = vpack.c.b16 %v1129, %v1120
      %v1625 = vpack.c.b16 %v1130, %v1121
      %v1626 = vpack.c.b16 %v1131, %v1122
      %v1627 = vpack.c.b16 %v1132, %v1123
      %v1628 = vpack.c.b16 %v1133, %v1124
      %v1629 = vpack.c.b16 %v1134, %v1125
      %v1630 = vpack.c.b16 %v1135, %v1126
      %v1631 = vpack.c.b16 %v1145, %v1136
      %v1632 = vpack.c.b16 %v1146, %v1137
      %v1633 = vpack.c.b16 %v1147, %v1138
      %v1634 = vpack.c.b16 %v1148, %v1139
      %v1635 = vpack.c.b16 %v1149, %v1140
      %v1636 = vpack.c.b16 %v1150, %v1141
      %v1637 = vpack.c.b16 %v1151, %v1142
      %v1638 = vpack.c.b16 %v1152, %v1143
      %v1639 = vpack.c.b16 %v1153, %v1144
      %v1640 = vpack.c.b16 %v1163, %v1154
      %v1641 = vpack.c.b16 %v1164, %v1155
      %v1642 = vpack.c.b16 %v1165, %v1156
      %v1643 = vpack.c.b16 %v1166, %v1157
      %v1644 = vpack.c.b16 %v1167, %v1158
      %v1645 = vpack.c.b16 %v1168, %v1159
      %v1646 = vpack.c.b16 %v1169, %v1160
      %v1647 = vpack.c.b16 %v1170, %v1161
      %v1648 = vpack.c.b16 %v1171, %v1162
      %v1649 = vpack.c.b16 %v1181, %v1172
      %v1650 = vpack.c.b16 %v1182, %v1173
      %v1651 = vpack.c.b16 %v1183, %v1174
      %v1652 = vpack.c.b16 %v1184, %v1175
      %v1653 = vpack.c.b16 %v1185, %v1176
      %v1654 = vpack.c.b16 %v1186, %v1177
      %v1655 = vpack.c.b16 %v1187, %v1178
      %v1656 = vpack.c.b16 %v1188, %v1179
      %v1657 = vpack.c.b16 %v1189, %v1180
      %v1658 = vpack.c.b16 %v1199, %v1190
      %v1659 = vpack.c.b16 %v1200, %v1191
      %v1660 = vpack.c.b16 %v1201, %v1192
      %v1661 = vpack.c.b16 %v1202, %v1193
      %v1662 = vpack.c.b16 %v1203, %v1194
      %v1663 = vpack.c.b16 %v1204, %v1195
      %v1664 = vpack.c.b16 %v1205, %v1196
      %v1665 = vpack.c.b16 %v1206, %v1197
      %v1666 = vpack.c.b16 %v1207, %v1198
      %v1667 = vpack.c.b16 %v1217, %v1208
      %v1668 = vpack.c.b16 %v1218, %v1209
      %v1669 = vpack.c.b16 %v1219, %v1210
      %v1670 = vpack.c.b16 %v1220, %v1211
      %v1671 = vpack.c.b16 %v1221, %v1212
      %v1672 = vpack.c.b16 %v1222, %v1213
      %v1673 = vpack.c.b16 %v1223, %v1214
      %v1674 = vpack.c.b16 %v1224, %v1215
      %v1675 = vpack.c.b16 %v1225, %v1216
      %v1676 = vpack.c.b16 %v1235, %v1226
      %v1677 = vpack.c.b16 %v1236, %v1227
      %v1678 = vpack.c.b16 %v1237, %v1228
      %v1679 = vpack.c.b16 %v1238, %v1229
      %v1680 = vpack.c.b16 %v1239, %v1230
      %v1681 = vpack.c.b16 %v1240, %v1231
      %v1682 = vpack.c.b16 %v1241, %v1232
      %v1683 = vpack.c.b16 %v1242, %v1233
      %v1684 = vpack.c.b16 %v1243, %v1234
      %v1685 = vpack.c.b16 %v1253, %v1244
      %v1686 = vpack.c.b16 %v1254, %v1245
      %v1687 = vpack.c.b16 %v1255, %v1246
      %v1688 = vpack.c.b16 %v1256, %v1247
      %v1689 = vpack.c.b16 %v1257, %v1248
      %v1690 = vpack.c.b16 %v1258, %v1249
      %v1691 = vpack.c.b16 %v1259, %v1250
      %v1692 = vpack.c.b16 %v1260, %v1251
      %v1693 = vpack.c.b16 %v1261, %v1252
      %v1694 = vpack.c.b16 %v1271, %v1262
      %v1695 = vpack.c.b16 %v1272, %v1263
      %v1696 = vpack.c.b16 %v1273, %v1264
      %v1697 = vpack.c.b16 %v1274, %v1265
      %v1698 = vpack.c.b16 %v1275, %v1266
      %v1699 = vpack.c.b16 %v1276, %v1267
      %v1700 = vpack.c.b16 %v1277, %v1268
      %v1701 = vpack.c.b16 %v1278, %v1269
      %v1702 = vpack.c.b16 %v1279, %v1270
      %v1703 = vpack.c.b16 %v1289, %v1280
      %v1704 = vpack.c.b16 %v1290, %v1281
      %v1705 = vpack.c.b16 %v1291, %v1282
      %v1706 = vpack.c.b16 %v1292, %v1283
      %v1707 = vpack.c.b16 %v1293, %v1284
      %v1708 = vpack.c.b16 %v1294, %v1285
      %v1709 = vpack.c.b16 %v1295, %v1286
      %v1710 = vpack.c.b16 %v1296, %v1287
      %v1711 = vpack.c.b16 %v1297, %v1288
      %v1712 = vpack.c.b16 %v1307, %v1298
      %v1713 = vpack.c.b16 %v1308, %v1299
      %v1714 = vpack.c.b16 %v1309, %v1300
      %v1715 = vpack.c.b16 %v1310, %v1301
      %v1716 = vpack.c.b16 %v1311, %v1302
      %v1717 = vpack.c.b16 %v1312, %v1303
      %v1718 = vpack.c.b16 %v1313, %v1304
      %v1719 = vpack.c.b16 %v1314, %v1305
      %v1720 = vpack.c.b16 %v1315, %v1306
      %v1721 = vpack.c.b16 %v1325, %v1316
      %v1722 = vpack.c.b16 %v1326, %v1317
      %v1723 = vpack.c.b16 %v1327, %v1318
      %v1724 = vpack.c.b16 %v1328, %v1319
      %v1725 = vpack.c.b16 %v1329, %v1320
      %v1726 = vpack.c.b16 %v1330, %v1321
      %v1727 = vpack.c.b16 %v1331, %v1322
      %v1728 = vpack.c.b16 %v1332, %v1323
      %v1729 = vpack.c.b16 %v1333, %v1324
      %v1730 = vpack.c.b16 %v1343, %v1334
      %v1731 = vpack.c.b16 %v1344, %v1335
      %v1732 = vpack.c.b16 %v1345, %v1336
      %v1733 = vpack.c.b16 %v1346, %v1337
      %v1734 = vpack.c.b16 %v1347, %v1338
      %v1735 = vpack.c.b16 %v1348, %v1339
      %v1736 = vpack.c.b16 %v1349, %v1340
      %v1737 = vpack.c.b16 %v1350, %v1341
      %v1738 = vpack.c.b16 %v1351, %v1342
      %v1739 = vpack.c.b16 %v1361, %v1352
      %v1740 = vpack.c.b16 %v1362, %v1353
      %v1741 = vpack.c.b16 %v1363, %v1354
      %v1742 = vpack.c.b16 %v1364, %v1355
      %v1743 = vpack.c.b16 %v1365, %v1356
      %v1744 = vpack.c.b16 %v1366, %v1357
      %v1745 = vpack.c.b16 %v1367, %v1358
      %v1746 = vpack.c.b16 %v1368, %v1359
      %v1747 = vpack.c.b16 %v1369, %v1360
      %v1748 = vpack.c.b16 %v1379, %v1370
      %v1749 = vpack.c.b16 %v1380, %v1371
      %v1750 = vpack.c.b16 %v1381, %v1372
      %v1751 = vpack.c.b16 %v1382, %v1373
      %v1752 = vpack.c.b16 %v1383, %v1374
      %v1753 = vpack.c.b16 %v1384, %v1375
      %v1754 = vpack.c.b16 %v1385, %v1376
      %v1755 = vpack.c.b16 %v1386, %v1377
      %v1756 = vpack.c.b16 %v1387, %v1378
      %v1757 = vpack.c.b16 %v1397, %v1388
      %v1758 = vpack.c.b16 %v1398, %v1389
      %v1759 = vpack.c.b16 %v1399, %v1390
      %v1760 = vpack.c.b16 %v1400, %v1391
      %v1761 = vpack.c.b16 %v1401, %v1392
      %v1762 = vpack.c.b16 %v1402, %v1393
      %v1763 = vpack.c.b16 %v1403, %v1394
      %v1764 = vpack.c.b16 %v1404, %v1395
      %v1765 = vpack.c.b16 %v1405, %v1396
      %v1766 = vpack.c.b16 %v1415, %v1406
      %v1767 = vpack.c.b16 %v1416, %v1407
      %v1768 = vpack.c.b16 %v1417, %v1408
      %v1769 = vpack.c.b16 %v1418, %v1409
      %v1770 = vpack.c.b16 %v1419, %v1410
      %v1771 = vpack.c.b16 %v1420, %v1411
      %v1772 = vpack.c.b16 %v1421, %v1412
      %v1773 = vpack.c.b16 %v1422, %v1413
      %v1774 = vpack.c.b16 %v1423, %v1414
      %v1775 = vpack.c.b16 %v1433, %v1424
      %v1776 = vpack.c.b16 %v1434, %v1425
      %v1777 = vpack.c.b16 %v1435, %v1426
      %v1778 = vpack.c.b16 %v1436, %v1427
      %v1779 = vpack.c.b16 %v1437, %v1428
      %v1780 = vpack.c.b16 %v1438, %v1429
      %v1781 = vpack.c.b16 %v1439, %v1430
      %v1782 = vpack.c.b16 %v1440, %v1431
      %v1783 = vpack.c.b16 %v1441, %v1432
      %v1784 = vpack.c.b16 %v1451, %v1442
      %v1785 = vpack.c.b16 %v1452, %v1443
      %v1786 = vpack.c.b16 %v1453, %v1444
      %v1787 = vpack.c.b16 %v1454, %v1445
      %v1788 = vpack.c.b16 %v1455, %v1446
      %v1789 = vpack.c.b16 %v1456, %v1447
      %v1790 = vpack.c.b16 %v1457, %v1448
      %v1791 = vpack.c.b16 %v1458, %v1449
      %v1792 = vpack.c.b16 %v1459, %v1450
      %v1793 = vpack.c.b16 %v1469, %v1460
      %v1794 = vpack.c.b16 %v1470, %v1461
      %v1795 = vpack.c.b16 %v1471, %v1462
      %v1796 = vpack.c.b16 %v1472, %v1463
      %v1797 = vpack.c.b16 %v1473, %v1464
      %v1798 = vpack.c.b16 %v1474, %v1465
      %v1799 = vpack.c.b16 %v1475, %v1466
      %v1800 = vpack.c.b16 %v1476, %v1467
      %v1801 = vpack.c.b16 %v1477, %v1468
      %v1802 = vpack.c.b16 %v1487, %v1478
      %v1803 = vpack.c.b16 %v1488, %v1479
      %v1804 = vpack.c.b16 %v1489, %v1480
      %v1805 = vpack.c.b16 %v1490, %v1481
      %v1806 = vpack.c.b16 %v1491, %v1482
      %v1807 = vpack.c.b16 %v1492, %v1483
      %v1808 = vpack.c.b16 %v1493, %v1484
      %v1809 = vpack.c.b16 %v1494, %v1485
      %v1810 = vpack.c.b16 %v1495, %v1486
      %v1811 = vpack.c.b16 %v1505, %v1496
      %v1812 = vpack.c.b16 %v1506, %v1497
      %v1813 = vpack.c.b16 %v1507, %v1498
      %v1814 = vpack.c.b16 %v1508, %v1499
      %v1815 = vpack.c.b16 %v1509, %v1500
      %v1816 = vpack.c.b16 %v1510, %v1501
      %v1817 = vpack.c.b16 %v1511, %v1502
      %v1818 = vpack.c.b16 %v1512, %v1503
      %v1819 = vpack.c.b16 %v1513, %v1504
      %v1820 = vpack.c.b16 %v1523, %v1514
      %v1821 = vpack.c.b16 %v1524, %v1515
      %v1822 = vpack.c.b16 %v1525, %v1516
      %v1823 = vpack.c.b16 %v1526, %v1517
      %v1824 = vpack.c.b16 %v1527, %v1518
      %v1825 = vpack.c.b16 %v1528, %v1519
      %v1826 = vpack.c.b16 %v1529, %v1520
      %v1827 = vpack.c.b16 %v1530, %v1521
      %v1828 = vpack.c.b16 %v1531, %v1522
      %v1829 = vpack.c.b16 %v1541, %v1532
      %v1830 = vpack.c.b16 %v1542, %v1533
      %v1831 = vpack.c.b16 %v1543, %v1534
      %v1832 = vpack.c.b16 %v1544, %v1535
      %v1833 = vpack.c.b16 %v1545, %v1536
      %v1834 = vpack.c.b16 %v1546, %v1537
      %v1835 = vpack.c.b16 %v1547, %v1538
      %v1836 = vpack.c.b16 %v1548, %v1539
      %v1837 = vpack.c.b16 %v1549, %v1540
      %v2223 = vunpack.c.l.b16 %v525
      %v2224 = vunpack.c.l.b16 %v526
      %v2225 = vunpack.c.l.b16 %v527
      %v2226 = vunpack.c.l.b16 %v528
      %v2227 = vunpack.c.l.b16 %v529
      %v2228 = vunpack.c.l.b16 %v530
      %v2229 = vunpack.c.l.b16 %v531
      %v2230 = vunpack.c.l.b16 %v532
      %v2231 = vunpack.c.l.b16 %v533
      %v2232 = vunpack.c.l.b16 %v534
      %v2233 = vunpack.c.l.b16 %v535
      %v2234 = vunpack.c.l.b16 %v536
      %v2235 = vunpack.c.l.b16 %v537
      %v2236 = vunpack.c.l.b16 %v538
      %v2237 = vunpack.c.l.b16 %v539
      %v2238 = vunpack.c.l.b16 %v540
      %v2239 = vunpack.c.l.b16 %v541
      %v2240 = vunpack.c.l.b16 %v542
      %v2241 = vunpack.c.l.b16 %v543
      %v2242 = vunpack.c.l.b16 %v544
      %v2243 = vunpack.c.l.b16 %v545
      %v2244 = vunpack.c.l.b16 %v546
      %v2245 = vunpack.c.l.b16 %v547
      %v2246 = vunpack.c.l.b16 %v548
      %v2247 = vunpack.c.l.b16 %v549
      %v2248 = vunpack.c.l.b16 %v550
      %v2249 = vunpack.c.l.b16 %v551
      %v2250 = vunpack.c.l.b16 %v552
      %v2251 = vunpack.c.l.b16 %v553
      %v2252 = vunpack.c.l.b16 %v554
      %v2253 = vunpack.c.l.b16 %v555
      %v2254 = vunpack.c.l.b16 %v556
      %v2255 = vunpack.c.l.b16 %v557
      %v2256 = vunpack.c.l.b16 %v558
      %v2257 = vunpack.c.l.b16 %v559
      %v2258 = vunpack.c.l.b16 %v560
      %v2259 = vunpack.c.l.b16 %v561
      %v2260 = vunpack.c.l.b16 %v562
      %v2261 = vunpack.c.l.b16 %v563
      %v2262 = vunpack.c.l.b16 %v564
      %v2263 = vunpack.c.l.b16 %v565
      %v2264 = vunpack.c.l.b16 %v566
      %v2265 = vunpack.c.l.b16 %v567
      %v2266 = vunpack.c.l.b16 %v568
      %v2267 = vunpack.c.l.b16 %v569
      %v2268 = vunpack.c.l.b16 %v570
      %v2269 = vunpack.c.l.b16 %v571
      %v2270 = vunpack.c.l.b16 %v572
      %v2271 = vunpack.c.l.b16 %v573
      %v2272 = vunpack.c.l.b16 %v574
      %v2273 = vunpack.c.l.b16 %v575
      %v2274 = vunpack.c.l.b16 %v576
      %v2275 = vunpack.c.l.b16 %v577
      %v2276 = vunpack.c.l.b16 %v578
      %v2277 = vunpack.c.l.b16 %v579
      %v2278 = vunpack.c.l.b16 %v580
      %v2279 = vunpack.c.l.b16 %v581
      %v2280 = vunpack.c.l.b16 %v582
      %v2281 = vunpack.c.l.b16 %v583
      %v2282 = vunpack.c.l.b16 %v584
      %v2283 = vunpack.c.l.b16 %v585
      %v2284 = vunpack.c.l.b16 %v586
      %v2285 = vunpack.c.l.b16 %v587
      %v2286 = vunpack.c.l.b16 %v588
      %v2287 = vunpack.c.l.b16 %v589
      %v2288 = vunpack.c.l.b16 %v590
      %v2289 = vunpack.c.l.b16 %v591
      %v2290 = vunpack.c.l.b16 %v592
      %v2291 = vunpack.c.l.b16 %v593
      %v2292 = vunpack.c.l.b16 %v594
      %v2293 = vunpack.c.l.b16 %v595
      %v2294 = vunpack.c.l.b16 %v596
      %v2295 = vunpack.c.l.b16 %v597
      %v2296 = vunpack.c.l.b16 %v598
      %v2297 = vunpack.c.l.b16 %v599
      %v2298 = vunpack.c.l.b16 %v600
      %v2299 = vunpack.c.l.b16 %v601
      %v2300 = vunpack.c.l.b16 %v602
      %v2301 = vunpack.c.l.b16 %v603
      %v2302 = vunpack.c.l.b16 %v604
      %v2303 = vunpack.c.l.b16 %v605
      %v2304 = vunpack.c.l.b16 %v606
      %v2305 = vunpack.c.l.b16 %v607
      %v2306 = vunpack.c.l.b16 %v608
      %v2307 = vunpack.c.l.b16 %v609
      %v2308 = vunpack.c.l.b16 %v610
      %v2309 = vunpack.c.l.b16 %v611
      %v2310 = vunpack.c.l.b16 %v612
      %v2311 = vunpack.c.l.b16 %v613
      %v2312 = vunpack.c.l.b16 %v614
      %v2313 = vunpack.c.l.b16 %v615
      %v2314 = vunpack.c.l.b16 %v616
      %v2315 = vunpack.c.l.b16 %v617
      %v2316 = vunpack.c.l.b16 %v618
      %v2317 = vunpack.c.l.b16 %v619
      %v2318 = vunpack.c.l.b16 %v620
      %v2319 = vunpack.c.l.b16 %v621
      %v2320 = vunpack.c.l.b16 %v622
      %v2321 = vunpack.c.l.b16 %v623
      %v2322 = vunpack.c.l.b16 %v624
      %v2323 = vunpack.c.l.b16 %v625
      %v2324 = vunpack.c.l.b16 %v626
      %v2325 = vunpack.c.l.b16 %v627
      %v2326 = vunpack.c.l.b16 %v628
      %v2327 = vunpack.c.l.b16 %v629
      %v2328 = vunpack.c.l.b16 %v630
      %v2329 = vunpack.c.l.b16 %v631
      %v2330 = vunpack.c.l.b16 %v632
      %v2331 = vunpack.c.l.b16 %v633
      %v2332 = vunpack.c.l.b16 %v634
      %v2333 = vunpack.c.l.b16 %v635
      %v2334 = vunpack.c.l.b16 %v636
      %v2335 = vunpack.c.l.b16 %v637
      %v2336 = vunpack.c.l.b16 %v638
      %v2337 = vunpack.c.l.b16 %v639
      %v2338 = vunpack.c.l.b16 %v640
      %v2339 = vunpack.c.l.b16 %v641
      %v2340 = vunpack.c.l.b16 %v642
      %v2341 = vunpack.c.l.b16 %v643
      %v2342 = vunpack.c.l.b16 %v644
      %v2343 = vunpack.c.l.b16 %v645
      %v2344 = vunpack.c.l.b16 %v646
      %v2345 = vunpack.c.l.b16 %v647
      %v2346 = vunpack.c.l.b16 %v648
      %v2347 = vunpack.c.l.b16 %v649
      %v2348 = vunpack.c.l.b16 %v650
      %v2349 = vunpack.c.l.b16 %v651
      %v2350 = vunpack.c.l.b16 %v652
      %v2351 = vunpack.c.l.b16 %v653
      %v2352 = vpack.c.b16 %v2224, %v2223
      %v2353 = vpack.c.b16 %v2226, %v2225
      %v2354 = vpack.c.b16 %v2228, %v2227
      %v2355 = vpack.c.b16 %v2230, %v2229
      %v2356 = vpack.c.b16 %v2232, %v2231
      %v2357 = vpack.c.b16 %v2234, %v2233
      %v2358 = vpack.c.b16 %v2236, %v2235
      %v2359 = vpack.c.b16 %v2238, %v2237
      %v2360 = vpack.c.b16 %v2240, %v2239
      %v2361 = vpack.c.b16 %v2242, %v2241
      %v2362 = vpack.c.b16 %v2244, %v2243
      %v2363 = vpack.c.b16 %v2246, %v2245
      %v2364 = vpack.c.b16 %v2248, %v2247
      %v2365 = vpack.c.b16 %v2250, %v2249
      %v2366 = vpack.c.b16 %v2252, %v2251
      %v2367 = vpack.c.b16 %v2254, %v2253
      %v2368 = vpack.c.b16 %v2256, %v2255
      %v2369 = vpack.c.b16 %v2258, %v2257
      %v2370 = vpack.c.b16 %v2260, %v2259
      %v2371 = vpack.c.b16 %v2262, %v2261
      %v2372 = vpack.c.b16 %v2264, %v2263
      %v2373 = vpack.c.b16 %v2266, %v2265
      %v2374 = vpack.c.b16 %v2268, %v2267
      %v2375 = vpack.c.b16 %v2270, %v2269
      %v2376 = vpack.c.b16 %v2272, %v2271
      %v2377 = vpack.c.b16 %v2274, %v2273
      %v2378 = vpack.c.b16 %v2276, %v2275
      %v2379 = vpack.c.b16 %v2278, %v2277
      %v2380 = vpack.c.b16 %v2280, %v2279
      %v2381 = vpack.c.b16 %v2282, %v2281
      %v2382 = vpack.c.b16 %v2284, %v2283
      %v2383 = vpack.c.b16 %v2286, %v2285
      %v2384 = vpack.c.b16 %v2288, %v2287
      %v2385 = vpack.c.b16 %v2290, %v2289
      %v2386 = vpack.c.b16 %v2292, %v2291
      %v2387 = vpack.c.b16 %v2294, %v2293
      %v2388 = vpack.c.b16 %v2296, %v2295
      %v2389 = vpack.c.b16 %v2298, %v2297
      %v2390 = vpack.c.b16 %v2300, %v2299
      %v2391 = vpack.c.b16 %v2302, %v2301
      %v2392 = vpack.c.b16 %v2304, %v2303
      %v2393 = vpack.c.b16 %v2306, %v2305
      %v2394 = vpack.c.b16 %v2308, %v2307
      %v2395 = vpack.c.b16 %v2310, %v2309
      %v2396 = vpack.c.b16 %v2312, %v2311
      %v2397 = vpack.c.b16 %v2314, %v2313
      %v2398 = vpack.c.b16 %v2316, %v2315
      %v2399 = vpack.c.b16 %v2318, %v2317
      %v2400 = vpack.c.b16 %v2320, %v2319
      %v2401 = vpack.c.b16 %v2322, %v2321
      %v2402 = vpack.c.b16 %v2324, %v2323
      %v2403 = vpack.c.b16 %v2326, %v2325
      %v2404 = vpack.c.b16 %v2328, %v2327
      %v2405 = vpack.c.b16 %v2330, %v2329
      %v2406 = vpack.c.b16 %v2332, %v2331
      %v2407 = vpack.c.b16 %v2334, %v2333
      %v2408 = vpack.c.b16 %v2336, %v2335
      %v2409 = vpack.c.b16 %v2338, %v2337
      %v2410 = vpack.c.b16 %v2340, %v2339
      %v2411 = vpack.c.b16 %v2342, %v2341
      %v2412 = vpack.c.b16 %v2344, %v2343
      %v2413 = vpack.c.b16 %v2346, %v2345
      %v2414 = vpack.c.b16 %v2348, %v2347
      %v2415 = vpack.c.b16 %v2350, %v2349
      %v2416 = vpack.c.b16 %v2351, %v2351
      %vm2481 = vcmask 64512
      %v2483 = vsel %vm2481, %v1558, 0
      %v2486 = vsel %vm2481, %v1567, 0
      %v2489 = vsel %vm2481, %v1576, 0
      %v2492 = vsel %vm2481, %v1585, 0
      %v2495 = vsel %vm2481, %v1594, 0
      %v2498 = vsel %vm2481, %v1603, 0
      %v2501 = vsel %vm2481, %v1612, 0
      %v2504 = vsel %vm2481, %v1621, 0
      %v2507 = vsel %vm2481, %v1630, 0
      %v2510 = vsel %vm2481, %v1639, 0
      %v2513 = vsel %vm2481, %v1648, 0
      %v2516 = vsel %vm2481, %v1657, 0
      %v2519 = vsel %vm2481, %v1666, 0
      %v2522 = vsel %vm2481, %v1675, 0
      %v2525 = vsel %vm2481, %v1684, 0
      %v2528 = vsel %vm2481, %v1693, 0
      %v2531 = vsel %vm2481, %v1702, 0
      %v2534 = vsel %vm2481, %v1711, 0
      %v2537 = vsel %vm2481, %v1720, 0
      %v2540 = vsel %vm2481, %v1729, 0
      %v2543 = vsel %vm2481, %v1738, 0
      %v2546 = vsel %vm2481, %v1747, 0
      %v2549 = vsel %vm2481, %v1756, 0
      %v2552 = vsel %vm2481, %v1765, 0
      %v2555 = vsel %vm2481, %v1774, 0
      %v2558 = vsel %vm2481, %v1783, 0
      %v2561 = vsel %vm2481, %v1792, 0
      %v2564 = vsel %vm2481, %v1801, 0
      %v2567 = vsel %vm2481, %v1810, 0
      %v2570 = vsel %vm2481, %v1819, 0
      %v2573 = vsel %vm2481, %v1828, 0
      %v2576 = vsel %vm2481, %v1837, 0
      %vm2578 = vcmask 1043456
      %v2580 = vsel %vm2578, %v2416, 0
      %2582 = vmatprep.subr.bf16.mxu0 0
      %2583 = vmatpush1.bf16.msra.mxu0 %v2352
      %2584 = vmatprep.subr.bf16.mxu0 0
      %2585 = vmatpush1.bf16.msra.mxu0 %v2353
      %2586 = vmatprep.subr.bf16.mxu0 0
      %2587 = vmatpush1.bf16.msra.mxu0 %v2354
      %2588 = vmatprep.subr.bf16.mxu0 0
      %2589 = vmatpush1.bf16.msra.mxu0 %v2355
      %2590 = vmatprep.subr.bf16.mxu0 0
      %2591 = vmatpush1.bf16.msra.mxu0 %v2356
      %2592 = vmatprep.subr.bf16.mxu0 0
      %2593 = vmatpush1.bf16.msra.mxu0 %v2357
      %2594 = vmatprep.subr.bf16.mxu0 0
      %2595 = vmatpush1.bf16.msra.mxu0 %v2358
      %2596 = vmatprep.subr.bf16.mxu0 0
      %2597 = vmatpush1.bf16.msra.mxu0 %v2359
      %2598 = vmatprep.subr.bf16.mxu0 0
      %2599 = vmatpush1.bf16.msra.mxu0 %v2360
      %2600 = vmatprep.subr.bf16.mxu0 0
      %2601 = vmatpush1.bf16.msra.mxu0 %v2361
      %2602 = vmatprep.subr.bf16.mxu0 0
      %2603 = vmatpush1.bf16.msra.mxu0 %v2362
      %2604 = vmatprep.subr.bf16.mxu0 0
      %2605 = vmatpush1.bf16.msra.mxu0 %v2363
      %2606 = vmatprep.subr.bf16.mxu0 0
      %2607 = vmatpush1.bf16.msra.mxu0 %v2364
      %2608 = vmatprep.subr.bf16.mxu0 0
      %2609 = vmatpush1.bf16.msra.mxu0 %v2365
      %2610 = vmatprep.subr.bf16.mxu0 0
      %2611 = vmatpush1.bf16.msra.mxu0 %v2366
      %2612 = vmatprep.subr.bf16.mxu0 0
      %2613 = vmatpush1.bf16.msra.mxu0 %v2367
      %2614 = vmatprep.mubr.bf16.mxu0 %v1551
      %2615 = vmatmul.mubr.bf16.gmra.mrb[0].mxu0 %v1550
      %v2616 = vpop.f32.mrb[0].mxu0
      %v2617 = vadd.f32 0.0, %v2616
      %v2618 = vpop.f32.mrb[0].mxu0
      %v2619 = vpop.f32.mrb[0].mxu0
      %v2620 = vadd.f32 0.0, %v2619
      %v2621 = vpop.f32.mrb[0].mxu0
      %2622 = vmatprep.mubr.bf16.mxu0 %v1560
      %2623 = vmatmul.mubr.bf16.gmra.mrb[0].mxu0 %v1559
      %v2624 = vpop.f32.mrb[0].mxu0
      %v2625 = vadd.f32 0.0, %v2624
      %v2626 = vpop.f32.mrb[0].mxu0
      %v2627 = vpop.f32.mrb[0].mxu0
      %v2628 = vadd.f32 0.0, %v2627
      %v2629 = vpop.f32.mrb[0].mxu0
      %2630 = vmatprep.mubr.bf16.mxu0 %v1569
      %2631 = vmatmul.mubr.bf16.gmra.mrb[0].mxu0 %v1568
      %v2632 = vpop.f32.mrb[0].mxu0
      %v2633 = vadd.f32 0.0, %v2632
      %v2634 = vpop.f32.mrb[0].mxu0
      %v2635 = vpop.f32.mrb[0].mxu0
      %v2636 = vadd.f32 0.0, %v2635
      %v2637 = vpop.f32.mrb[0].mxu0
      %2638 = vmatprep.mubr.bf16.mxu0 %v1578
      %2639 = vmatmul.mubr.bf16.gmra.mrb[0].mxu0 %v1577
      %v2640 = vpop.f32.mrb[0].mxu0
      %v2641 = vadd.f32 0.0, %v2640
      %v2642 = vpop.f32.mrb[0].mxu0
      %v2643 = vpop.f32.mrb[0].mxu0
      %v2644 = vadd.f32 0.0, %v2643
      %v2645 = vpop.f32.mrb[0].mxu0
      %2646 = vmatprep.mubr.bf16.mxu0 %v1587
      %2647 = vmatmul.mubr.bf16.gmra.mrb[0].mxu0 %v1586
      %v2648 = vpop.f32.mrb[0].mxu0
      %v2649 = vadd.f32 0.0, %v2648
      %v2650 = vpop.f32.mrb[0].mxu0
      %v2651 = vpop.f32.mrb[0].mxu0
      %v2652 = vadd.f32 0.0, %v2651
      %v2653 = vpop.f32.mrb[0].mxu0
      %2654 = vmatprep.mubr.bf16.mxu0 %v1596
      %2655 = vmatmul.mubr.bf16.gmra.mrb[0].mxu0 %v1595
      %v2656 = vpop.f32.mrb[0].mxu0
      %v2657 = vadd.f32 0.0, %v2656
      %v2658 = vpop.f32.mrb[0].mxu0
      %v2659 = vpop.f32.mrb[0].mxu0
      %v2660 = vadd.f32 0.0, %v2659
      %v2661 = vpop.f32.mrb[0].mxu0
      %2662 = vmatprep.mubr.bf16.mxu0 %v1605
      %2663 = vmatmul.mubr.bf16.gmra.mrb[0].mxu0 %v1604
      %v2664 = vpop.f32.mrb[0].mxu0
      %v2665 = vadd.f32 0.0, %v2664
      %v2666 = vpop.f32.mrb[0].mxu0
      %v2667 = vpop.f32.mrb[0].mxu0
      %v2668 = vadd.f32 0.0, %v2667
      %v2669 = vpop.f32.mrb[0].mxu0
      %2670 = vmatprep.mubr.bf16.mxu0 %v1614
      %2671 = vmatmul.mubr.bf16.gmra.mrb[0].mxu0 %v1613
      %v2672 = vpop.f32.mrb[0].mxu0
      %v2673 = vadd.f32 0.0, %v2672
      %v2674 = vpop.f32.mrb[0].mxu0
      %v2675 = vpop.f32.mrb[0].mxu0
      %v2676 = vadd.f32 0.0, %v2675
      %v2677 = vpop.f32.mrb[0].mxu0
      %2678 = vmatprep.mubr.bf16.mxu0 %v1623
      %2679 = vmatmul.mubr.bf16.gmra.mrb[0].mxu0 %v1622
      %v2680 = vpop.f32.mrb[0].mxu0
      %v2681 = vadd.f32 0.0, %v2680
      %v2682 = vpop.f32.mrb[0].mxu0
      %v2683 = vpop.f32.mrb[0].mxu0
      %v2684 = vadd.f32 0.0, %v2683
      %v2685 = vpop.f32.mrb[0].mxu0
      %2686 = vmatprep.mubr.bf16.mxu0 %v1632
      %2687 = vmatmul.mubr.bf16.gmra.mrb[0].mxu0 %v1631
      %v2688 = vpop.f32.mrb[0].mxu0
      %v2689 = vadd.f32 0.0, %v2688
      %v2690 = vpop.f32.mrb[0].mxu0
      %v2691 = vpop.f32.mrb[0].mxu0
      %v2692 = vadd.f32 0.0, %v2691
      %v2693 = vpop.f32.mrb[0].mxu0
      %2694 = vmatprep.mubr.bf16.mxu0 %v1641
      %2695 = vmatmul.mubr.bf16.gmra.mrb[0].mxu0 %v1640
      %v2696 = vpop.f32.mrb[0].mxu0
      %v2697 = vadd.f32 0.0, %v2696
      %v2698 = vpop.f32.mrb[0].mxu0
      %v2699 = vpop.f32.mrb[0].mxu0
      %v2700 = vadd.f32 0.0, %v2699
      %v2701 = vpop.f32.mrb[0].mxu0
      %2702 = vmatprep.mubr.bf16.mxu0 %v1650
      %2703 = vmatmul.mubr.bf16.gmra.mrb[0].mxu0 %v1649
      %v2704 = vpop.f32.mrb[0].mxu0
      %v2705 = vadd.f32 0.0, %v2704
      %v2706 = vpop.f32.mrb[0].mxu0
      %v2707 = vpop.f32.mrb[0].mxu0
      %v2708 = vadd.f32 0.0, %v2707
      %v2709 = vpop.f32.mrb[0].mxu0
      %2710 = vmatprep.mubr.bf16.mxu0 %v1659
      %2711 = vmatmul.mubr.bf16.gmra.mrb[0].mxu0 %v1658
      %v2712 = vpop.f32.mrb[0].mxu0
      %v2713 = vadd.f32 0.0, %v2712
      %v2714 = vpop.f32.mrb[0].mxu0
      %v2715 = vpop.f32.mrb[0].mxu0
      %v2716 = vadd.f32 0.0, %v2715
      %v2717 = vpop.f32.mrb[0].mxu0
      %2718 = vmatprep.mubr.bf16.mxu0 %v1668
      %2719 = vmatmul.mubr.bf16.gmra.mrb[0].mxu0 %v1667
      %v2720 = vpop.f32.mrb[0].mxu0
      %v2721 = vadd.f32 0.0, %v2720
      %v2722 = vpop.f32.mrb[0].mxu0
      %v2723 = vpop.f32.mrb[0].mxu0
      %v2724 = vadd.f32 0.0, %v2723
      %v2725 = vpop.f32.mrb[0].mxu0
      %2726 = vmatprep.mubr.bf16.mxu0 %v1677
      %2727 = vmatmul.mubr.bf16.gmra.mrb[0].mxu0 %v1676
      %v2728 = vpop.f32.mrb[0].mxu0
      %v2729 = vadd.f32 0.0, %v2728
      %v2730 = vpop.f32.mrb[0].mxu0
      %v2731 = vpop.f32.mrb[0].mxu0
      %v2732 = vadd.f32 0.0, %v2731
      %v2733 = vpop.f32.mrb[0].mxu0
      %2734 = vmatprep.mubr.bf16.mxu0 %v1686
      %2735 = vmatmul.mubr.bf16.gmra.mrb[0].mxu0 %v1685
      %v2736 = vpop.f32.mrb[0].mxu0
      %v2737 = vadd.f32 0.0, %v2736
      %v2738 = vpop.f32.mrb[0].mxu0
      %v2739 = vpop.f32.mrb[0].mxu0
      %v2740 = vadd.f32 0.0, %v2739
      %v2741 = vpop.f32.mrb[0].mxu0
      %2742 = vmatprep.mubr.bf16.mxu0 %v1695
      %2743 = vmatmul.mubr.bf16.gmra.mrb[0].mxu0 %v1694
      %v2744 = vpop.f32.mrb[0].mxu0
      %v2745 = vadd.f32 0.0, %v2744
      %v2746 = vpop.f32.mrb[0].mxu0
      %v2747 = vpop.f32.mrb[0].mxu0
      %v2748 = vadd.f32 0.0, %v2747
      %v2749 = vpop.f32.mrb[0].mxu0
      %2750 = vmatprep.mubr.bf16.mxu0 %v1704
      %2751 = vmatmul.mubr.bf16.gmra.mrb[0].mxu0 %v1703
      %v2752 = vpop.f32.mrb[0].mxu0
      %v2753 = vadd.f32 0.0, %v2752
      %v2754 = vpop.f32.mrb[0].mxu0
      %v2755 = vpop.f32.mrb[0].mxu0
      %v2756 = vadd.f32 0.0, %v2755
      %v2757 = vpop.f32.mrb[0].mxu0
      %2758 = vmatprep.mubr.bf16.mxu0 %v1713
      %2759 = vmatmul.mubr.bf16.gmra.mrb[0].mxu0 %v1712
      %v2760 = vpop.f32.mrb[0].mxu0
      %v2761 = vadd.f32 0.0, %v2760
      %v2762 = vpop.f32.mrb[0].mxu0
      %v2763 = vpop.f32.mrb[0].mxu0
      %v2764 = vadd.f32 0.0, %v2763
      %v2765 = vpop.f32.mrb[0].mxu0
      %2766 = vmatprep.mubr.bf16.mxu0 %v1722
      %2767 = vmatmul.mubr.bf16.gmra.mrb[0].mxu0 %v1721
      %v2768 = vpop.f32.mrb[0].mxu0
      %v2769 = vadd.f32 0.0, %v2768
      %v2770 = vpop.f32.mrb[0].mxu0
      %v2771 = vpop.f32.mrb[0].mxu0
      %v2772 = vadd.f32 0.0, %v2771
      %v2773 = vpop.f32.mrb[0].mxu0
      %2774 = vmatprep.mubr.bf16.mxu0 %v1731
      %2775 = vmatmul.mubr.bf16.gmra.mrb[0].mxu0 %v1730
      %v2776 = vpop.f32.mrb[0].mxu0
      %v2777 = vadd.f32 0.0, %v2776
      %v2778 = vpop.f32.mrb[0].mxu0
      %v2779 = vpop.f32.mrb[0].mxu0
      %v2780 = vadd.f32 0.0, %v2779
      %v2781 = vpop.f32.mrb[0].mxu0
      %2782 = vmatprep.mubr.bf16.mxu0 %v1740
      %2783 = vmatmul.mubr.bf16.gmra.mrb[0].mxu0 %v1739
      %v2784 = vpop.f32.mrb[0].mxu0
      %v2785 = vadd.f32 0.0, %v2784
      %v2786 = vpop.f32.mrb[0].mxu0
      %v2787 = vpop.f32.mrb[0].mxu0
      %v2788 = vadd.f32 0.0, %v2787
      %v2789 = vpop.f32.mrb[0].mxu0
      %2790 = vmatprep.mubr.bf16.mxu0 %v1749
      %2791 = vmatmul.mubr.bf16.gmra.mrb[0].mxu0 %v1748
      %v2792 = vpop.f32.mrb[0].mxu0
      %v2793 = vadd.f32 0.0, %v2792
      %v2794 = vpop.f32.mrb[0].mxu0
      %v2795 = vpop.f32.mrb[0].mxu0
      %v2796 = vadd.f32 0.0, %v2795
      %v2797 = vpop.f32.mrb[0].mxu0
      %2798 = vmatprep.mubr.bf16.mxu0 %v1758
      %2799 = vmatmul.mubr.bf16.gmra.mrb[0].mxu0 %v1757
      %v2800 = vpop.f32.mrb[0].mxu0
      %v2801 = vadd.f32 0.0, %v2800
      %v2802 = vpop.f32.mrb[0].mxu0
      %v2803 = vpop.f32.mrb[0].mxu0
      %v2804 = vadd.f32 0.0, %v2803
      %v2805 = vpop.f32.mrb[0].mxu0
      %2806 = vmatprep.mubr.bf16.mxu0 %v1767
      %2807 = vmatmul.mubr.bf16.gmra.mrb[0].mxu0 %v1766
      %v2808 = vpop.f32.mrb[0].mxu0
      %v2809 = vadd.f32 0.0, %v2808
      %v2810 = vpop.f32.mrb[0].mxu0
      %v2811 = vpop.f32.mrb[0].mxu0
      %v2812 = vadd.f32 0.0, %v2811
      %v2813 = vpop.f32.mrb[0].mxu0
      %2814 = vmatprep.mubr.bf16.mxu0 %v1776
      %2815 = vmatmul.mubr.bf16.gmra.mrb[0].mxu0 %v1775
      %v2816 = vpop.f32.mrb[0].mxu0
      %v2817 = vadd.f32 0.0, %v2816
      %v2818 = vpop.f32.mrb[0].mxu0
      %v2819 = vpop.f32.mrb[0].mxu0
      %v2820 = vadd.f32 0.0, %v2819
      %v2821 = vpop.f32.mrb[0].mxu0
      %2822 = vmatprep.mubr.bf16.mxu0 %v1785
      %2823 = vmatmul.mubr.bf16.gmra.mrb[0].mxu0 %v1784
      %v2824 = vpop.f32.mrb[0].mxu0
      %v2825 = vadd.f32 0.0, %v2824
      %v2826 = vpop.f32.mrb[0].mxu0
      %v2827 = vpop.f32.mrb[0].mxu0
      %v2828 = vadd.f32 0.0, %v2827
      %v2829 = vpop.f32.mrb[0].mxu0
      %2830 = vmatprep.mubr.bf16.mxu0 %v1794
      %2831 = vmatmul.mubr.bf16.gmra.mrb[0].mxu0 %v1793
      %v2832 = vpop.f32.mrb[0].mxu0
      %v2833 = vadd.f32 0.0, %v2832
      %v2834 = vpop.f32.mrb[0].mxu0
      %v2835 = vpop.f32.mrb[0].mxu0
      %v2836 = vadd.f32 0.0, %v2835
      %v2837 = vpop.f32.mrb[0].mxu0
      %2838 = vmatprep.mubr.bf16.mxu0 %v1803
      %2839 = vmatmul.mubr.bf16.gmra.mrb[0].mxu0 %v1802
      %v2840 = vpop.f32.mrb[0].mxu0
      %v2841 = vadd.f32 0.0, %v2840
      %v2842 = vpop.f32.mrb[0].mxu0
      %v2843 = vpop.f32.mrb[0].mxu0
      %v2844 = vadd.f32 0.0, %v2843
      %v2845 = vpop.f32.mrb[0].mxu0
      %2846 = vmatprep.mubr.bf16.mxu0 %v1812
      %2847 = vmatmul.mubr.bf16.gmra.mrb[0].mxu0 %v1811
      %v2848 = vpop.f32.mrb[0].mxu0
      %v2849 = vadd.f32 0.0, %v2848
      %v2850 = vpop.f32.mrb[0].mxu0
      %v2851 = vpop.f32.mrb[0].mxu0
      %v2852 = vadd.f32 0.0, %v2851
      %v2853 = vpop.f32.mrb[0].mxu0
      %2854 = vmatprep.mubr.bf16.mxu0 %v1821
      %2855 = vmatmul.mubr.bf16.gmra.mrb[0].mxu0 %v1820
      %v2856 = vpop.f32.mrb[0].mxu0
      %v2857 = vadd.f32 0.0, %v2856
      %v2858 = vpop.f32.mrb[0].mxu0
      %v2859 = vpop.f32.mrb[0].mxu0
      %v2860 = vadd.f32 0.0, %v2859
      %v2861 = vpop.f32.mrb[0].mxu0
      %2862 = vmatprep.mubr.bf16.mxu0 %v1830
      %2863 = vmatmul.mubr.bf16.gmra.mrb[0].mxu0 %v1829
      %v2864 = vpop.f32.mrb[0].mxu0
      %v2865 = vadd.f32 0.0, %v2864
      %v2866 = vpop.f32.mrb[0].mxu0
      %v2867 = vpop.f32.mrb[0].mxu0
      %v2868 = vadd.f32 0.0, %v2867
      %v2869 = vpop.f32.mrb[0].mxu0
      %2870 = vdwg.mxu0
      %2871 = vmatprep.subr.bf16.mxu0 0
      %2872 = vmatpush1.bf16.msra.mxu0 %v2368
      %2873 = vmatprep.subr.bf16.mxu0 0
      %2874 = vmatpush1.bf16.msra.mxu0 %v2369
      %2875 = vmatprep.subr.bf16.mxu0 0
      %2876 = vmatpush1.bf16.msra.mxu0 %v2370
      %2877 = vmatprep.subr.bf16.mxu0 0
      %2878 = vmatpush1.bf16.msra.mxu0 %v2371
      %2879 = vmatprep.subr.bf16.mxu0 0
      %2880 = vmatpush1.bf16.msra.mxu0 %v2372
      %2881 = vmatprep.subr.bf16.mxu0 0
      %2882 = vmatpush1.bf16.msra.mxu0 %v2373
      %2883 = vmatprep.subr.bf16.mxu0 0
      %2884 = vmatpush1.bf16.msra.mxu0 %v2374
      %2885 = vmatprep.subr.bf16.mxu0 0
      %2886 = vmatpush1.bf16.msra.mxu0 %v2375
      %2887 = vmatprep.subr.bf16.mxu0 0
      %2888 = vmatpush1.bf16.msra.mxu0 %v2376
      %2889 = vmatprep.subr.bf16.mxu0 0
      %2890 = vmatpush1.bf16.msra.mxu0 %v2377
      %2891 = vmatprep.subr.bf16.mxu0 0
      %2892 = vmatpush1.bf16.msra.mxu0 %v2378
      %2893 = vmatprep.subr.bf16.mxu0 0
      %2894 = vmatpush1.bf16.msra.mxu0 %v2379
      %2895 = vmatprep.subr.bf16.mxu0 0
      %2896 = vmatpush1.bf16.msra.mxu0 %v2380
      %2897 = vmatprep.subr.bf16.mxu0 0
      %2898 = vmatpush1.bf16.msra.mxu0 %v2381
      %2899 = vmatprep.subr.bf16.mxu0 0
      %2900 = vmatpush1.bf16.msra.mxu0 %v2382
      %2901 = vmatprep.subr.bf16.mxu0 0
      %2902 = vmatpush1.bf16.msra.mxu0 %v2383
      %2903 = vmatprep.mubr.bf16.mxu0 %v1553
      %2904 = vmatmul.mubr.bf16.gmra.mrb[0].mxu0 %v1552
      %v2905 = vpop.f32.mrb[0].mxu0
      %v2906 = vadd.f32 %v2617, %v2905
      %v2907 = vpop.f32.mrb[0].mxu0
      %v2908 = vpop.f32.mrb[0].mxu0
      %v2909 = vadd.f32 %v2620, %v2908
      %v2910 = vpop.f32.mrb[0].mxu0
      %2911 = vmatprep.mubr.bf16.mxu0 %v1562
      %2912 = vmatmul.mubr.bf16.gmra.mrb[0].mxu0 %v1561
      %v2913 = vpop.f32.mrb[0].mxu0
      %v2914 = vadd.f32 %v2625, %v2913
      %v2915 = vpop.f32.mrb[0].mxu0
      %v2916 = vpop.f32.mrb[0].mxu0
      %v2917 = vadd.f32 %v2628, %v2916
      %v2918 = vpop.f32.mrb[0].mxu0
      %2919 = vmatprep.mubr.bf16.mxu0 %v1571
      %2920 = vmatmul.mubr.bf16.gmra.mrb[0].mxu0 %v1570
      %v2921 = vpop.f32.mrb[0].mxu0
      %v2922 = vadd.f32 %v2633, %v2921
      %v2923 = vpop.f32.mrb[0].mxu0
      %v2924 = vpop.f32.mrb[0].mxu0
      %v2925 = vadd.f32 %v2636, %v2924
      %v2926 = vpop.f32.mrb[0].mxu0
      %2927 = vmatprep.mubr.bf16.mxu0 %v1580
      %2928 = vmatmul.mubr.bf16.gmra.mrb[0].mxu0 %v1579
      %v2929 = vpop.f32.mrb[0].mxu0
      %v2930 = vadd.f32 %v2641, %v2929
      %v2931 = vpop.f32.mrb[0].mxu0
      %v2932 = vpop.f32.mrb[0].mxu0
      %v2933 = vadd.f32 %v2644, %v2932
      %v2934 = vpop.f32.mrb[0].mxu0
      %2935 = vmatprep.mubr.bf16.mxu0 %v1589
      %2936 = vmatmul.mubr.bf16.gmra.mrb[0].mxu0 %v1588
      %v2937 = vpop.f32.mrb[0].mxu0
      %v2938 = vadd.f32 %v2649, %v2937
      %v2939 = vpop.f32.mrb[0].mxu0
      %v2940 = vpop.f32.mrb[0].mxu0
      %v2941 = vadd.f32 %v2652, %v2940
      %v2942 = vpop.f32.mrb[0].mxu0
      %2943 = vmatprep.mubr.bf16.mxu0 %v1598
      %2944 = vmatmul.mubr.bf16.gmra.mrb[0].mxu0 %v1597
      %v2945 = vpop.f32.mrb[0].mxu0
      %v2946 = vadd.f32 %v2657, %v2945
      %v2947 = vpop.f32.mrb[0].mxu0
      %v2948 = vpop.f32.mrb[0].mxu0
      %v2949 = vadd.f32 %v2660, %v2948
      %v2950 = vpop.f32.mrb[0].mxu0
      %2951 = vmatprep.mubr.bf16.mxu0 %v1607
      %2952 = vmatmul.mubr.bf16.gmra.mrb[0].mxu0 %v1606
      %v2953 = vpop.f32.mrb[0].mxu0
      %v2954 = vadd.f32 %v2665, %v2953
      %v2955 = vpop.f32.mrb[0].mxu0
      %v2956 = vpop.f32.mrb[0].mxu0
      %v2957 = vadd.f32 %v2668, %v2956
      %v2958 = vpop.f32.mrb[0].mxu0
      %2959 = vmatprep.mubr.bf16.mxu0 %v1616
      %2960 = vmatmul.mubr.bf16.gmra.mrb[0].mxu0 %v1615
      %v2961 = vpop.f32.mrb[0].mxu0
      %v2962 = vadd.f32 %v2673, %v2961
      %v2963 = vpop.f32.mrb[0].mxu0
      %v2964 = vpop.f32.mrb[0].mxu0
      %v2965 = vadd.f32 %v2676, %v2964
      %v2966 = vpop.f32.mrb[0].mxu0
      %2967 = vmatprep.mubr.bf16.mxu0 %v1625
      %2968 = vmatmul.mubr.bf16.gmra.mrb[0].mxu0 %v1624
      %v2969 = vpop.f32.mrb[0].mxu0
      %v2970 = vadd.f32 %v2681, %v2969
      %v2971 = vpop.f32.mrb[0].mxu0
      %v2972 = vpop.f32.mrb[0].mxu0
      %v2973 = vadd.f32 %v2684, %v2972
      %v2974 = vpop.f32.mrb[0].mxu0
      %2975 = vmatprep.mubr.bf16.mxu0 %v1634
      %2976 = vmatmul.mubr.bf16.gmra.mrb[0].mxu0 %v1633
      %v2977 = vpop.f32.mrb[0].mxu0
      %v2978 = vadd.f32 %v2689, %v2977
      %v2979 = vpop.f32.mrb[0].mxu0
      %v2980 = vpop.f32.mrb[0].mxu0
      %v2981 = vadd.f32 %v2692, %v2980
      %v2982 = vpop.f32.mrb[0].mxu0
      %2983 = vmatprep.mubr.bf16.mxu0 %v1643
      %2984 = vmatmul.mubr.bf16.gmra.mrb[0].mxu0 %v1642
      %v2985 = vpop.f32.mrb[0].mxu0
      %v2986 = vadd.f32 %v2697, %v2985
      %v2987 = vpop.f32.mrb[0].mxu0
      %v2988 = vpop.f32.mrb[0].mxu0
      %v2989 = vadd.f32 %v2700, %v2988
      %v2990 = vpop.f32.mrb[0].mxu0
      %2991 = vmatprep.mubr.bf16.mxu0 %v1652
      %2992 = vmatmul.mubr.bf16.gmra.mrb[0].mxu0 %v1651
      %v2993 = vpop.f32.mrb[0].mxu0
      %v2994 = vadd.f32 %v2705, %v2993
      %v2995 = vpop.f32.mrb[0].mxu0
      %v2996 = vpop.f32.mrb[0].mxu0
      %v2997 = vadd.f32 %v2708, %v2996
      %v2998 = vpop.f32.mrb[0].mxu0
      %2999 = vmatprep.mubr.bf16.mxu0 %v1661
      %3000 = vmatmul.mubr.bf16.gmra.mrb[0].mxu0 %v1660
      %v3001 = vpop.f32.mrb[0].mxu0
      %v3002 = vadd.f32 %v2713, %v3001
      %v3003 = vpop.f32.mrb[0].mxu0
      %v3004 = vpop.f32.mrb[0].mxu0
      %v3005 = vadd.f32 %v2716, %v3004
      %v3006 = vpop.f32.mrb[0].mxu0
      %3007 = vmatprep.mubr.bf16.mxu0 %v1670
      %3008 = vmatmul.mubr.bf16.gmra.mrb[0].mxu0 %v1669
      %v3009 = vpop.f32.mrb[0].mxu0
      %v3010 = vadd.f32 %v2721, %v3009
      %v3011 = vpop.f32.mrb[0].mxu0
      %v3012 = vpop.f32.mrb[0].mxu0
      %v3013 = vadd.f32 %v2724, %v3012
      %v3014 = vpop.f32.mrb[0].mxu0
      %3015 = vmatprep.mubr.bf16.mxu0 %v1679
      %3016 = vmatmul.mubr.bf16.gmra.mrb[0].mxu0 %v1678
      %v3017 = vpop.f32.mrb[0].mxu0
      %v3018 = vadd.f32 %v2729, %v3017
      %v3019 = vpop.f32.mrb[0].mxu0
      %v3020 = vpop.f32.mrb[0].mxu0
      %v3021 = vadd.f32 %v2732, %v3020
      %v3022 = vpop.f32.mrb[0].mxu0
      %3023 = vmatprep.mubr.bf16.mxu0 %v1688
      %3024 = vmatmul.mubr.bf16.gmra.mrb[0].mxu0 %v1687
      %v3025 = vpop.f32.mrb[0].mxu0
      %v3026 = vadd.f32 %v2737, %v3025
      %v3027 = vpop.f32.mrb[0].mxu0
      %v3028 = vpop.f32.mrb[0].mxu0
      %v3029 = vadd.f32 %v2740, %v3028
      %v3030 = vpop.f32.mrb[0].mxu0
      %3031 = vmatprep.mubr.bf16.mxu0 %v1697
      %3032 = vmatmul.mubr.bf16.gmra.mrb[0].mxu0 %v1696
      %v3033 = vpop.f32.mrb[0].mxu0
      %v3034 = vadd.f32 %v2745, %v3033
      %v3035 = vpop.f32.mrb[0].mxu0
      %v3036 = vpop.f32.mrb[0].mxu0
      %v3037 = vadd.f32 %v2748, %v3036
      %v3038 = vpop.f32.mrb[0].mxu0
      %3039 = vmatprep.mubr.bf16.mxu0 %v1706
      %3040 = vmatmul.mubr.bf16.gmra.mrb[0].mxu0 %v1705
      %v3041 = vpop.f32.mrb[0].mxu0
      %v3042 = vadd.f32 %v2753, %v3041
      %v3043 = vpop.f32.mrb[0].mxu0
      %v3044 = vpop.f32.mrb[0].mxu0
      %v3045 = vadd.f32 %v2756, %v3044
      %v3046 = vpop.f32.mrb[0].mxu0
      %3047 = vmatprep.mubr.bf16.mxu0 %v1715
      %3048 = vmatmul.mubr.bf16.gmra.mrb[0].mxu0 %v1714
      %v3049 = vpop.f32.mrb[0].mxu0
      %v3050 = vadd.f32 %v2761, %v3049
      %v3051 = vpop.f32.mrb[0].mxu0
      %v3052 = vpop.f32.mrb[0].mxu0
      %v3053 = vadd.f32 %v2764, %v3052
      %v3054 = vpop.f32.mrb[0].mxu0
      %3055 = vmatprep.mubr.bf16.mxu0 %v1724
      %3056 = vmatmul.mubr.bf16.gmra.mrb[0].mxu0 %v1723
      %v3057 = vpop.f32.mrb[0].mxu0
      %v3058 = vadd.f32 %v2769, %v3057
      %v3059 = vpop.f32.mrb[0].mxu0
      %v3060 = vpop.f32.mrb[0].mxu0
      %v3061 = vadd.f32 %v2772, %v3060
      %v3062 = vpop.f32.mrb[0].mxu0
      %3063 = vmatprep.mubr.bf16.mxu0 %v1733
      %3064 = vmatmul.mubr.bf16.gmra.mrb[0].mxu0 %v1732
      %v3065 = vpop.f32.mrb[0].mxu0
      %v3066 = vadd.f32 %v2777, %v3065
      %v3067 = vpop.f32.mrb[0].mxu0
      %v3068 = vpop.f32.mrb[0].mxu0
      %v3069 = vadd.f32 %v2780, %v3068
      %v3070 = vpop.f32.mrb[0].mxu0
      %3071 = vmatprep.mubr.bf16.mxu0 %v1742
      %3072 = vmatmul.mubr.bf16.gmra.mrb[0].mxu0 %v1741
      %v3073 = vpop.f32.mrb[0].mxu0
      %v3074 = vadd.f32 %v2785, %v3073
      %v3075 = vpop.f32.mrb[0].mxu0
      %v3076 = vpop.f32.mrb[0].mxu0
      %v3077 = vadd.f32 %v2788, %v3076
      %v3078 = vpop.f32.mrb[0].mxu0
      %3079 = vmatprep.mubr.bf16.mxu0 %v1751
      %3080 = vmatmul.mubr.bf16.gmra.mrb[0].mxu0 %v1750
      %v3081 = vpop.f32.mrb[0].mxu0
      %v3082 = vadd.f32 %v2793, %v3081
      %v3083 = vpop.f32.mrb[0].mxu0
      %v3084 = vpop.f32.mrb[0].mxu0
      %v3085 = vadd.f32 %v2796, %v3084
      %v3086 = vpop.f32.mrb[0].mxu0
      %3087 = vmatprep.mubr.bf16.mxu0 %v1760
      %3088 = vmatmul.mubr.bf16.gmra.mrb[0].mxu0 %v1759
      %v3089 = vpop.f32.mrb[0].mxu0
      %v3090 = vadd.f32 %v2801, %v3089
      %v3091 = vpop.f32.mrb[0].mxu0
      %v3092 = vpop.f32.mrb[0].mxu0
      %v3093 = vadd.f32 %v2804, %v3092
      %v3094 = vpop.f32.mrb[0].mxu0
      %3095 = vmatprep.mubr.bf16.mxu0 %v1769
      %3096 = vmatmul.mubr.bf16.gmra.mrb[0].mxu0 %v1768
      %v3097 = vpop.f32.mrb[0].mxu0
      %v3098 = vadd.f32 %v2809, %v3097
      %v3099 = vpop.f32.mrb[0].mxu0
      %v3100 = vpop.f32.mrb[0].mxu0
      %v3101 = vadd.f32 %v2812, %v3100
      %v3102 = vpop.f32.mrb[0].mxu0
      %3103 = vmatprep.mubr.bf16.mxu0 %v1778
      %3104 = vmatmul.mubr.bf16.gmra.mrb[0].mxu0 %v1777
      %v3105 = vpop.f32.mrb[0].mxu0
      %v3106 = vadd.f32 %v2817, %v3105
      %v3107 = vpop.f32.mrb[0].mxu0
      %v3108 = vpop.f32.mrb[0].mxu0
      %v3109 = vadd.f32 %v2820, %v3108
      %v3110 = vpop.f32.mrb[0].mxu0
      %3111 = vmatprep.mubr.bf16.mxu0 %v1787
      %3112 = vmatmul.mubr.bf16.gmra.mrb[0].mxu0 %v1786
      %v3113 = vpop.f32.mrb[0].mxu0
      %v3114 = vadd.f32 %v2825, %v3113
      %v3115 = vpop.f32.mrb[0].mxu0
      %v3116 = vpop.f32.mrb[0].mxu0
      %v3117 = vadd.f32 %v2828, %v3116
      %v3118 = vpop.f32.mrb[0].mxu0
      %3119 = vmatprep.mubr.bf16.mxu0 %v1796
      %3120 = vmatmul.mubr.bf16.gmra.mrb[0].mxu0 %v1795
      %v3121 = vpop.f32.mrb[0].mxu0
      %v3122 = vadd.f32 %v2833, %v3121
      %v3123 = vpop.f32.mrb[0].mxu0
      %v3124 = vpop.f32.mrb[0].mxu0
      %v3125 = vadd.f32 %v2836, %v3124
      %v3126 = vpop.f32.mrb[0].mxu0
      %3127 = vmatprep.mubr.bf16.mxu0 %v1805
      %3128 = vmatmul.mubr.bf16.gmra.mrb[0].mxu0 %v1804
      %v3129 = vpop.f32.mrb[0].mxu0
      %v3130 = vadd.f32 %v2841, %v3129
      %v3131 = vpop.f32.mrb[0].mxu0
      %v3132 = vpop.f32.mrb[0].mxu0
      %v3133 = vadd.f32 %v2844, %v3132
      %v3134 = vpop.f32.mrb[0].mxu0
      %3135 = vmatprep.mubr.bf16.mxu0 %v1814
      %3136 = vmatmul.mubr.bf16.gmra.mrb[0].mxu0 %v1813
      %v3137 = vpop.f32.mrb[0].mxu0
      %v3138 = vadd.f32 %v2849, %v3137
      %v3139 = vpop.f32.mrb[0].mxu0
      %v3140 = vpop.f32.mrb[0].mxu0
      %v3141 = vadd.f32 %v2852, %v3140
      %v3142 = vpop.f32.mrb[0].mxu0
      %3143 = vmatprep.mubr.bf16.mxu0 %v1823
      %3144 = vmatmul.mubr.bf16.gmra.mrb[0].mxu0 %v1822
      %v3145 = vpop.f32.mrb[0].mxu0
      %v3146 = vadd.f32 %v2857, %v3145
      %v3147 = vpop.f32.mrb[0].mxu0
      %v3148 = vpop.f32.mrb[0].mxu0
      %v3149 = vadd.f32 %v2860, %v3148
      %v3150 = vpop.f32.mrb[0].mxu0
      %3151 = vmatprep.mubr.bf16.mxu0 %v1832
      %3152 = vmatmul.mubr.bf16.gmra.mrb[0].mxu0 %v1831
      %v3153 = vpop.f32.mrb[0].mxu0
      %v3154 = vadd.f32 %v2865, %v3153
      %v3155 = vpop.f32.mrb[0].mxu0
      %v3156 = vpop.f32.mrb[0].mxu0
      %v3157 = vadd.f32 %v2868, %v3156
      %v3158 = vpop.f32.mrb[0].mxu0
      %3159 = vdwg.mxu0
      %3160 = vmatprep.subr.bf16.mxu0 0
      %3161 = vmatpush1.bf16.msra.mxu0 %v2384
      %3162 = vmatprep.subr.bf16.mxu0 0
      %3163 = vmatpush1.bf16.msra.mxu0 %v2385
      %3164 = vmatprep.subr.bf16.mxu0 0
      %3165 = vmatpush1.bf16.msra.mxu0 %v2386
      %3166 = vmatprep.subr.bf16.mxu0 0
      %3167 = vmatpush1.bf16.msra.mxu0 %v2387
      %3168 = vmatprep.subr.bf16.mxu0 0
      %3169 = vmatpush1.bf16.msra.mxu0 %v2388
      %3170 = vmatprep.subr.bf16.mxu0 0
      %3171 = vmatpush1.bf16.msra.mxu0 %v2389
      %3172 = vmatprep.subr.bf16.mxu0 0
      %3173 = vmatpush1.bf16.msra.mxu0 %v2390
      %3174 = vmatprep.subr.bf16.mxu0 0
      %3175 = vmatpush1.bf16.msra.mxu0 %v2391
      %3176 = vmatprep.subr.bf16.mxu0 0
      %3177 = vmatpush1.bf16.msra.mxu0 %v2392
      %3178 = vmatprep.subr.bf16.mxu0 0
      %3179 = vmatpush1.bf16.msra.mxu0 %v2393
      %3180 = vmatprep.subr.bf16.mxu0 0
      %3181 = vmatpush1.bf16.msra.mxu0 %v2394
      %3182 = vmatprep.subr.bf16.mxu0 0
      %3183 = vmatpush1.bf16.msra.mxu0 %v2395
      %3184 = vmatprep.subr.bf16.mxu0 0
      %3185 = vmatpush1.bf16.msra.mxu0 %v2396
      %3186 = vmatprep.subr.bf16.mxu0 0
      %3187 = vmatpush1.bf16.msra.mxu0 %v2397
      %3188 = vmatprep.subr.bf16.mxu0 0
      %3189 = vmatpush1.bf16.msra.mxu0 %v2398
      %3190 = vmatprep.subr.bf16.mxu0 0
      %3191 = vmatpush1.bf16.msra.mxu0 %v2399
      %3192 = vmatprep.mubr.bf16.mxu0 %v1555
      %3193 = vmatmul.mubr.bf16.gmra.mrb[0].mxu0 %v1554
      %v3194 = vpop.f32.mrb[0].mxu0
      %v3195 = vadd.f32 %v2906, %v3194
      %v3196 = vpop.f32.mrb[0].mxu0
      %v3197 = vpop.f32.mrb[0].mxu0
      %v3198 = vadd.f32 %v2909, %v3197
      %v3199 = vpop.f32.mrb[0].mxu0
      %3200 = vmatprep.mubr.bf16.mxu0 %v1564
      %3201 = vmatmul.mubr.bf16.gmra.mrb[0].mxu0 %v1563
      %v3202 = vpop.f32.mrb[0].mxu0
      %v3203 = vadd.f32 %v2914, %v3202
      %v3204 = vpop.f32.mrb[0].mxu0
      %v3205 = vpop.f32.mrb[0].mxu0
      %v3206 = vadd.f32 %v2917, %v3205
      %v3207 = vpop.f32.mrb[0].mxu0
      %3208 = vmatprep.mubr.bf16.mxu0 %v1573
      %3209 = vmatmul.mubr.bf16.gmra.mrb[0].mxu0 %v1572
      %v3210 = vpop.f32.mrb[0].mxu0
      %v3211 = vadd.f32 %v2922, %v3210
      %v3212 = vpop.f32.mrb[0].mxu0
      %v3213 = vpop.f32.mrb[0].mxu0
      %v3214 = vadd.f32 %v2925, %v3213
      %v3215 = vpop.f32.mrb[0].mxu0
      %3216 = vmatprep.mubr.bf16.mxu0 %v1582
      %3217 = vmatmul.mubr.bf16.gmra.mrb[0].mxu0 %v1581
      %v3218 = vpop.f32.mrb[0].mxu0
      %v3219 = vadd.f32 %v2930, %v3218
      %v3220 = vpop.f32.mrb[0].mxu0
      %v3221 = vpop.f32.mrb[0].mxu0
      %v3222 = vadd.f32 %v2933, %v3221
      %v3223 = vpop.f32.mrb[0].mxu0
      %3224 = vmatprep.mubr.bf16.mxu0 %v1591
      %3225 = vmatmul.mubr.bf16.gmra.mrb[0].mxu0 %v1590
      %v3226 = vpop.f32.mrb[0].mxu0
      %v3227 = vadd.f32 %v2938, %v3226
      %v3228 = vpop.f32.mrb[0].mxu0
      %v3229 = vpop.f32.mrb[0].mxu0
      %v3230 = vadd.f32 %v2941, %v3229
      %v3231 = vpop.f32.mrb[0].mxu0
      %3232 = vmatprep.mubr.bf16.mxu0 %v1600
      %3233 = vmatmul.mubr.bf16.gmra.mrb[0].mxu0 %v1599
      %v3234 = vpop.f32.mrb[0].mxu0
      %v3235 = vadd.f32 %v2946, %v3234
      %v3236 = vpop.f32.mrb[0].mxu0
      %v3237 = vpop.f32.mrb[0].mxu0
      %v3238 = vadd.f32 %v2949, %v3237
      %v3239 = vpop.f32.mrb[0].mxu0
      %3240 = vmatprep.mubr.bf16.mxu0 %v1609
      %3241 = vmatmul.mubr.bf16.gmra.mrb[0].mxu0 %v1608
      %v3242 = vpop.f32.mrb[0].mxu0
      %v3243 = vadd.f32 %v2954, %v3242
      %v3244 = vpop.f32.mrb[0].mxu0
      %v3245 = vpop.f32.mrb[0].mxu0
      %v3246 = vadd.f32 %v2957, %v3245
      %v3247 = vpop.f32.mrb[0].mxu0
      %3248 = vmatprep.mubr.bf16.mxu0 %v1618
      %3249 = vmatmul.mubr.bf16.gmra.mrb[0].mxu0 %v1617
      %v3250 = vpop.f32.mrb[0].mxu0
      %v3251 = vadd.f32 %v2962, %v3250
      %v3252 = vpop.f32.mrb[0].mxu0
      %v3253 = vpop.f32.mrb[0].mxu0
      %v3254 = vadd.f32 %v2965, %v3253
      %v3255 = vpop.f32.mrb[0].mxu0
      %3256 = vmatprep.mubr.bf16.mxu0 %v1627
      %3257 = vmatmul.mubr.bf16.gmra.mrb[0].mxu0 %v1626
      %v3258 = vpop.f32.mrb[0].mxu0
      %v3259 = vadd.f32 %v2970, %v3258
      %v3260 = vpop.f32.mrb[0].mxu0
      %v3261 = vpop.f32.mrb[0].mxu0
      %v3262 = vadd.f32 %v2973, %v3261
      %v3263 = vpop.f32.mrb[0].mxu0
      %3264 = vmatprep.mubr.bf16.mxu0 %v1636
      %3265 = vmatmul.mubr.bf16.gmra.mrb[0].mxu0 %v1635
      %v3266 = vpop.f32.mrb[0].mxu0
      %v3267 = vadd.f32 %v2978, %v3266
      %v3268 = vpop.f32.mrb[0].mxu0
      %v3269 = vpop.f32.mrb[0].mxu0
      %v3270 = vadd.f32 %v2981, %v3269
      %v3271 = vpop.f32.mrb[0].mxu0
      %3272 = vmatprep.mubr.bf16.mxu0 %v1645
      %3273 = vmatmul.mubr.bf16.gmra.mrb[0].mxu0 %v1644
      %v3274 = vpop.f32.mrb[0].mxu0
      %v3275 = vadd.f32 %v2986, %v3274
      %v3276 = vpop.f32.mrb[0].mxu0
      %v3277 = vpop.f32.mrb[0].mxu0
      %v3278 = vadd.f32 %v2989, %v3277
      %v3279 = vpop.f32.mrb[0].mxu0
      %3280 = vmatprep.mubr.bf16.mxu0 %v1654
      %3281 = vmatmul.mubr.bf16.gmra.mrb[0].mxu0 %v1653
      %v3282 = vpop.f32.mrb[0].mxu0
      %v3283 = vadd.f32 %v2994, %v3282
      %v3284 = vpop.f32.mrb[0].mxu0
      %v3285 = vpop.f32.mrb[0].mxu0
      %v3286 = vadd.f32 %v2997, %v3285
      %v3287 = vpop.f32.mrb[0].mxu0
      %3288 = vmatprep.mubr.bf16.mxu0 %v1663
      %3289 = vmatmul.mubr.bf16.gmra.mrb[0].mxu0 %v1662
      %v3290 = vpop.f32.mrb[0].mxu0
      %v3291 = vadd.f32 %v3002, %v3290
      %v3292 = vpop.f32.mrb[0].mxu0
      %v3293 = vpop.f32.mrb[0].mxu0
      %v3294 = vadd.f32 %v3005, %v3293
      %v3295 = vpop.f32.mrb[0].mxu0
      %3296 = vmatprep.mubr.bf16.mxu0 %v1672
      %3297 = vmatmul.mubr.bf16.gmra.mrb[0].mxu0 %v1671
      %v3298 = vpop.f32.mrb[0].mxu0
      %v3299 = vadd.f32 %v3010, %v3298
      %v3300 = vpop.f32.mrb[0].mxu0
      %v3301 = vpop.f32.mrb[0].mxu0
      %v3302 = vadd.f32 %v3013, %v3301
      %v3303 = vpop.f32.mrb[0].mxu0
      %3304 = vmatprep.mubr.bf16.mxu0 %v1681
      %3305 = vmatmul.mubr.bf16.gmra.mrb[0].mxu0 %v1680
      %v3306 = vpop.f32.mrb[0].mxu0
      %v3307 = vadd.f32 %v3018, %v3306
      %v3308 = vpop.f32.mrb[0].mxu0
      %v3309 = vpop.f32.mrb[0].mxu0
      %v3310 = vadd.f32 %v3021, %v3309
      %v3311 = vpop.f32.mrb[0].mxu0
      %3312 = vmatprep.mubr.bf16.mxu0 %v1690
      %3313 = vmatmul.mubr.bf16.gmra.mrb[0].mxu0 %v1689
      %v3314 = vpop.f32.mrb[0].mxu0
      %v3315 = vadd.f32 %v3026, %v3314
      %v3316 = vpop.f32.mrb[0].mxu0
      %v3317 = vpop.f32.mrb[0].mxu0
      %v3318 = vadd.f32 %v3029, %v3317
      %v3319 = vpop.f32.mrb[0].mxu0
      %3320 = vmatprep.mubr.bf16.mxu0 %v1699
      %3321 = vmatmul.mubr.bf16.gmra.mrb[0].mxu0 %v1698
      %v3322 = vpop.f32.mrb[0].mxu0
      %v3323 = vadd.f32 %v3034, %v3322
      %v3324 = vpop.f32.mrb[0].mxu0
      %v3325 = vpop.f32.mrb[0].mxu0
      %v3326 = vadd.f32 %v3037, %v3325
      %v3327 = vpop.f32.mrb[0].mxu0
      %3328 = vmatprep.mubr.bf16.mxu0 %v1708
      %3329 = vmatmul.mubr.bf16.gmra.mrb[0].mxu0 %v1707
      %v3330 = vpop.f32.mrb[0].mxu0
      %v3331 = vadd.f32 %v3042, %v3330
      %v3332 = vpop.f32.mrb[0].mxu0
      %v3333 = vpop.f32.mrb[0].mxu0
      %v3334 = vadd.f32 %v3045, %v3333
      %v3335 = vpop.f32.mrb[0].mxu0
      %3336 = vmatprep.mubr.bf16.mxu0 %v1717
      %3337 = vmatmul.mubr.bf16.gmra.mrb[0].mxu0 %v1716
      %v3338 = vpop.f32.mrb[0].mxu0
      %v3339 = vadd.f32 %v3050, %v3338
      %v3340 = vpop.f32.mrb[0].mxu0
      %v3341 = vpop.f32.mrb[0].mxu0
      %v3342 = vadd.f32 %v3053, %v3341
      %v3343 = vpop.f32.mrb[0].mxu0
      %3344 = vmatprep.mubr.bf16.mxu0 %v1726
      %3345 = vmatmul.mubr.bf16.gmra.mrb[0].mxu0 %v1725
      %v3346 = vpop.f32.mrb[0].mxu0
      %v3347 = vadd.f32 %v3058, %v3346
      %v3348 = vpop.f32.mrb[0].mxu0
      %v3349 = vpop.f32.mrb[0].mxu0
      %v3350 = vadd.f32 %v3061, %v3349
      %v3351 = vpop.f32.mrb[0].mxu0
      %3352 = vmatprep.mubr.bf16.mxu0 %v1735
      %3353 = vmatmul.mubr.bf16.gmra.mrb[0].mxu0 %v1734
      %v3354 = vpop.f32.mrb[0].mxu0
      %v3355 = vadd.f32 %v3066, %v3354
      %v3356 = vpop.f32.mrb[0].mxu0
      %v3357 = vpop.f32.mrb[0].mxu0
      %v3358 = vadd.f32 %v3069, %v3357
      %v3359 = vpop.f32.mrb[0].mxu0
      %3360 = vmatprep.mubr.bf16.mxu0 %v1744
      %3361 = vmatmul.mubr.bf16.gmra.mrb[0].mxu0 %v1743
      %v3362 = vpop.f32.mrb[0].mxu0
      %v3363 = vadd.f32 %v3074, %v3362
      %v3364 = vpop.f32.mrb[0].mxu0
      %v3365 = vpop.f32.mrb[0].mxu0
      %v3366 = vadd.f32 %v3077, %v3365
      %v3367 = vpop.f32.mrb[0].mxu0
      %3368 = vmatprep.mubr.bf16.mxu0 %v1753
      %3369 = vmatmul.mubr.bf16.gmra.mrb[0].mxu0 %v1752
      %v3370 = vpop.f32.mrb[0].mxu0
      %v3371 = vadd.f32 %v3082, %v3370
      %v3372 = vpop.f32.mrb[0].mxu0
      %v3373 = vpop.f32.mrb[0].mxu0
      %v3374 = vadd.f32 %v3085, %v3373
      %v3375 = vpop.f32.mrb[0].mxu0
      %3376 = vmatprep.mubr.bf16.mxu0 %v1762
      %3377 = vmatmul.mubr.bf16.gmra.mrb[0].mxu0 %v1761
      %v3378 = vpop.f32.mrb[0].mxu0
      %v3379 = vadd.f32 %v3090, %v3378
      %v3380 = vpop.f32.mrb[0].mxu0
      %v3381 = vpop.f32.mrb[0].mxu0
      %v3382 = vadd.f32 %v3093, %v3381
      %v3383 = vpop.f32.mrb[0].mxu0
      %3384 = vmatprep.mubr.bf16.mxu0 %v1771
      %3385 = vmatmul.mubr.bf16.gmra.mrb[0].mxu0 %v1770
      %v3386 = vpop.f32.mrb[0].mxu0
      %v3387 = vadd.f32 %v3098, %v3386
      %v3388 = vpop.f32.mrb[0].mxu0
      %v3389 = vpop.f32.mrb[0].mxu0
      %v3390 = vadd.f32 %v3101, %v3389
      %v3391 = vpop.f32.mrb[0].mxu0
      %3392 = vmatprep.mubr.bf16.mxu0 %v1780
      %3393 = vmatmul.mubr.bf16.gmra.mrb[0].mxu0 %v1779
      %v3394 = vpop.f32.mrb[0].mxu0
      %v3395 = vadd.f32 %v3106, %v3394
      %v3396 = vpop.f32.mrb[0].mxu0
      %v3397 = vpop.f32.mrb[0].mxu0
      %v3398 = vadd.f32 %v3109, %v3397
      %v3399 = vpop.f32.mrb[0].mxu0
      %3400 = vmatprep.mubr.bf16.mxu0 %v1789
      %3401 = vmatmul.mubr.bf16.gmra.mrb[0].mxu0 %v1788
      %v3402 = vpop.f32.mrb[0].mxu0
      %v3403 = vadd.f32 %v3114, %v3402
      %v3404 = vpop.f32.mrb[0].mxu0
      %v3405 = vpop.f32.mrb[0].mxu0
      %v3406 = vadd.f32 %v3117, %v3405
      %v3407 = vpop.f32.mrb[0].mxu0
      %3408 = vmatprep.mubr.bf16.mxu0 %v1798
      %3409 = vmatmul.mubr.bf16.gmra.mrb[0].mxu0 %v1797
      %v3410 = vpop.f32.mrb[0].mxu0
      %v3411 = vadd.f32 %v3122, %v3410
      %v3412 = vpop.f32.mrb[0].mxu0
      %v3413 = vpop.f32.mrb[0].mxu0
      %v3414 = vadd.f32 %v3125, %v3413
      %v3415 = vpop.f32.mrb[0].mxu0
      %3416 = vmatprep.mubr.bf16.mxu0 %v1807
      %3417 = vmatmul.mubr.bf16.gmra.mrb[0].mxu0 %v1806
      %v3418 = vpop.f32.mrb[0].mxu0
      %v3419 = vadd.f32 %v3130, %v3418
      %v3420 = vpop.f32.mrb[0].mxu0
      %v3421 = vpop.f32.mrb[0].mxu0
      %v3422 = vadd.f32 %v3133, %v3421
      %v3423 = vpop.f32.mrb[0].mxu0
      %3424 = vmatprep.mubr.bf16.mxu0 %v1816
      %3425 = vmatmul.mubr.bf16.gmra.mrb[0].mxu0 %v1815
      %v3426 = vpop.f32.mrb[0].mxu0
      %v3427 = vadd.f32 %v3138, %v3426
      %v3428 = vpop.f32.mrb[0].mxu0
      %v3429 = vpop.f32.mrb[0].mxu0
      %v3430 = vadd.f32 %v3141, %v3429
      %v3431 = vpop.f32.mrb[0].mxu0
      %3432 = vmatprep.mubr.bf16.mxu0 %v1825
      %3433 = vmatmul.mubr.bf16.gmra.mrb[0].mxu0 %v1824
      %v3434 = vpop.f32.mrb[0].mxu0
      %v3435 = vadd.f32 %v3146, %v3434
      %v3436 = vpop.f32.mrb[0].mxu0
      %v3437 = vpop.f32.mrb[0].mxu0
      %v3438 = vadd.f32 %v3149, %v3437
      %v3439 = vpop.f32.mrb[0].mxu0
      %3440 = vmatprep.mubr.bf16.mxu0 %v1834
      %3441 = vmatmul.mubr.bf16.gmra.mrb[0].mxu0 %v1833
      %v3442 = vpop.f32.mrb[0].mxu0
      %v3443 = vadd.f32 %v3154, %v3442
      %v3444 = vpop.f32.mrb[0].mxu0
      %v3445 = vpop.f32.mrb[0].mxu0
      %v3446 = vadd.f32 %v3157, %v3445
      %v3447 = vpop.f32.mrb[0].mxu0
      %3448 = vdwg.mxu0
      %3449 = vmatprep.subr.bf16.mxu0 0
      %3450 = vmatpush1.bf16.msra.mxu0 %v2400
      %3451 = vmatprep.subr.bf16.mxu0 0
      %3452 = vmatpush1.bf16.msra.mxu0 %v2401
      %3453 = vmatprep.subr.bf16.mxu0 0
      %3454 = vmatpush1.bf16.msra.mxu0 %v2402
      %3455 = vmatprep.subr.bf16.mxu0 0
      %3456 = vmatpush1.bf16.msra.mxu0 %v2403
      %3457 = vmatprep.subr.bf16.mxu0 0
      %3458 = vmatpush1.bf16.msra.mxu0 %v2404
      %3459 = vmatprep.subr.bf16.mxu0 0
      %3460 = vmatpush1.bf16.msra.mxu0 %v2405
      %3461 = vmatprep.subr.bf16.mxu0 0
      %3462 = vmatpush1.bf16.msra.mxu0 %v2406
      %3463 = vmatprep.subr.bf16.mxu0 0
      %3464 = vmatpush1.bf16.msra.mxu0 %v2407
      %3465 = vmatprep.subr.bf16.mxu0 0
      %3466 = vmatpush1.bf16.msra.mxu0 %v2408
      %3467 = vmatprep.subr.bf16.mxu0 0
      %3468 = vmatpush1.bf16.msra.mxu0 %v2409
      %3469 = vmatprep.subr.bf16.mxu0 0
      %3470 = vmatpush1.bf16.msra.mxu0 %v2410
      %3471 = vmatprep.subr.bf16.mxu0 0
      %3472 = vmatpush1.bf16.msra.mxu0 %v2411
      %3473 = vmatprep.subr.bf16.mxu0 0
      %3474 = vmatpush1.bf16.msra.mxu0 %v2412
      %3475 = vmatprep.subr.bf16.mxu0 0
      %3476 = vmatpush1.bf16.msra.mxu0 %v2413
      %3477 = vmatprep.subr.bf16.mxu0 0
      %3478 = vmatpush1.bf16.msra.mxu0 %v2414
      %3479 = vmatprep.subr.bf16.mxu0 0
      %3480 = vmatpush1.bf16.msra.mxu0 %v2415
      %3481 = vmatprep.mubr.bf16.mxu0 %v1557
      %3482 = vmatmul.mubr.bf16.gmra.mrb[0].mxu0 %v1556
      %v3483 = vpop.f32.mrb[0].mxu0
      %v3484 = vadd.f32 %v3195, %v3483
      %v3485 = vpop.f32.mrb[0].mxu0
      %v3486 = vpop.f32.mrb[0].mxu0
      %v3487 = vadd.f32 %v3198, %v3486
      %v3488 = vpop.f32.mrb[0].mxu0
      %3489 = vmatprep.mubr.bf16.mxu0 %v1566
      %3490 = vmatmul.mubr.bf16.gmra.mrb[0].mxu0 %v1565
      %v3491 = vpop.f32.mrb[0].mxu0
      %v3492 = vadd.f32 %v3203, %v3491
      %v3493 = vpop.f32.mrb[0].mxu0
      %v3494 = vpop.f32.mrb[0].mxu0
      %v3495 = vadd.f32 %v3206, %v3494
      %v3496 = vpop.f32.mrb[0].mxu0
      %3497 = vmatprep.mubr.bf16.mxu0 %v1575
      %3498 = vmatmul.mubr.bf16.gmra.mrb[0].mxu0 %v1574
      %v3499 = vpop.f32.mrb[0].mxu0
      %v3500 = vadd.f32 %v3211, %v3499
      %v3501 = vpop.f32.mrb[0].mxu0
      %v3502 = vpop.f32.mrb[0].mxu0
      %v3503 = vadd.f32 %v3214, %v3502
      %v3504 = vpop.f32.mrb[0].mxu0
      %3505 = vmatprep.mubr.bf16.mxu0 %v1584
      %3506 = vmatmul.mubr.bf16.gmra.mrb[0].mxu0 %v1583
      %v3507 = vpop.f32.mrb[0].mxu0
      %v3508 = vadd.f32 %v3219, %v3507
      %v3509 = vpop.f32.mrb[0].mxu0
      %v3510 = vpop.f32.mrb[0].mxu0
      %v3511 = vadd.f32 %v3222, %v3510
      %v3512 = vpop.f32.mrb[0].mxu0
      %3513 = vmatprep.mubr.bf16.mxu0 %v1593
      %3514 = vmatmul.mubr.bf16.gmra.mrb[0].mxu0 %v1592
      %v3515 = vpop.f32.mrb[0].mxu0
      %v3516 = vadd.f32 %v3227, %v3515
      %v3517 = vpop.f32.mrb[0].mxu0
      %v3518 = vpop.f32.mrb[0].mxu0
      %v3519 = vadd.f32 %v3230, %v3518
      %v3520 = vpop.f32.mrb[0].mxu0
      %3521 = vmatprep.mubr.bf16.mxu0 %v1602
      %3522 = vmatmul.mubr.bf16.gmra.mrb[0].mxu0 %v1601
      %v3523 = vpop.f32.mrb[0].mxu0
      %v3524 = vadd.f32 %v3235, %v3523
      %v3525 = vpop.f32.mrb[0].mxu0
      %v3526 = vpop.f32.mrb[0].mxu0
      %v3527 = vadd.f32 %v3238, %v3526
      %v3528 = vpop.f32.mrb[0].mxu0
      %3529 = vmatprep.mubr.bf16.mxu0 %v1611
      %3530 = vmatmul.mubr.bf16.gmra.mrb[0].mxu0 %v1610
      %v3531 = vpop.f32.mrb[0].mxu0
      %v3532 = vadd.f32 %v3243, %v3531
      %v3533 = vpop.f32.mrb[0].mxu0
      %v3534 = vpop.f32.mrb[0].mxu0
      %v3535 = vadd.f32 %v3246, %v3534
      %v3536 = vpop.f32.mrb[0].mxu0
      %3537 = vmatprep.mubr.bf16.mxu0 %v1620
      %3538 = vmatmul.mubr.bf16.gmra.mrb[0].mxu0 %v1619
      %v3539 = vpop.f32.mrb[0].mxu0
      %v3540 = vadd.f32 %v3251, %v3539
      %v3541 = vpop.f32.mrb[0].mxu0
      %v3542 = vpop.f32.mrb[0].mxu0
      %v3543 = vadd.f32 %v3254, %v3542
      %v3544 = vpop.f32.mrb[0].mxu0
      %3545 = vmatprep.mubr.bf16.mxu0 %v1629
      %3546 = vmatmul.mubr.bf16.gmra.mrb[0].mxu0 %v1628
      %v3547 = vpop.f32.mrb[0].mxu0
      %v3548 = vadd.f32 %v3259, %v3547
      %v3549 = vpop.f32.mrb[0].mxu0
      %v3550 = vpop.f32.mrb[0].mxu0
      %v3551 = vadd.f32 %v3262, %v3550
      %v3552 = vpop.f32.mrb[0].mxu0
      %3553 = vmatprep.mubr.bf16.mxu0 %v1638
      %3554 = vmatmul.mubr.bf16.gmra.mrb[0].mxu0 %v1637
      %v3555 = vpop.f32.mrb[0].mxu0
      %v3556 = vadd.f32 %v3267, %v3555
      %v3557 = vpop.f32.mrb[0].mxu0
      %v3558 = vpop.f32.mrb[0].mxu0
      %v3559 = vadd.f32 %v3270, %v3558
      %v3560 = vpop.f32.mrb[0].mxu0
      %3561 = vmatprep.mubr.bf16.mxu0 %v1647
      %3562 = vmatmul.mubr.bf16.gmra.mrb[0].mxu0 %v1646
      %v3563 = vpop.f32.mrb[0].mxu0
      %v3564 = vadd.f32 %v3275, %v3563
      %v3565 = vpop.f32.mrb[0].mxu0
      %v3566 = vpop.f32.mrb[0].mxu0
      %v3567 = vadd.f32 %v3278, %v3566
      %v3568 = vpop.f32.mrb[0].mxu0
      %3569 = vmatprep.mubr.bf16.mxu0 %v1656
      %3570 = vmatmul.mubr.bf16.gmra.mrb[0].mxu0 %v1655
      %v3571 = vpop.f32.mrb[0].mxu0
      %v3572 = vadd.f32 %v3283, %v3571
      %v3573 = vpop.f32.mrb[0].mxu0
      %v3574 = vpop.f32.mrb[0].mxu0
      %v3575 = vadd.f32 %v3286, %v3574
      %v3576 = vpop.f32.mrb[0].mxu0
      %3577 = vmatprep.mubr.bf16.mxu0 %v1665
      %3578 = vmatmul.mubr.bf16.gmra.mrb[0].mxu0 %v1664
      %v3579 = vpop.f32.mrb[0].mxu0
      %v3580 = vadd.f32 %v3291, %v3579
      %v3581 = vpop.f32.mrb[0].mxu0
      %v3582 = vpop.f32.mrb[0].mxu0
      %v3583 = vadd.f32 %v3294, %v3582
      %v3584 = vpop.f32.mrb[0].mxu0
      %3585 = vmatprep.mubr.bf16.mxu0 %v1674
      %3586 = vmatmul.mubr.bf16.gmra.mrb[0].mxu0 %v1673
      %v3587 = vpop.f32.mrb[0].mxu0
      %v3588 = vadd.f32 %v3299, %v3587
      %v3589 = vpop.f32.mrb[0].mxu0
      %v3590 = vpop.f32.mrb[0].mxu0
      %v3591 = vadd.f32 %v3302, %v3590
      %v3592 = vpop.f32.mrb[0].mxu0
      %3593 = vmatprep.mubr.bf16.mxu0 %v1683
      %3594 = vmatmul.mubr.bf16.gmra.mrb[0].mxu0 %v1682
      %v3595 = vpop.f32.mrb[0].mxu0
      %v3596 = vadd.f32 %v3307, %v3595
      %v3597 = vpop.f32.mrb[0].mxu0
      %v3598 = vpop.f32.mrb[0].mxu0
      %v3599 = vadd.f32 %v3310, %v3598
      %v3600 = vpop.f32.mrb[0].mxu0
      %3601 = vmatprep.mubr.bf16.mxu0 %v1692
      %3602 = vmatmul.mubr.bf16.gmra.mrb[0].mxu0 %v1691
      %v3603 = vpop.f32.mrb[0].mxu0
      %v3604 = vadd.f32 %v3315, %v3603
      %v3605 = vpop.f32.mrb[0].mxu0
      %v3606 = vpop.f32.mrb[0].mxu0
      %v3607 = vadd.f32 %v3318, %v3606
      %v3608 = vpop.f32.mrb[0].mxu0
      %3609 = vmatprep.mubr.bf16.mxu0 %v1701
      %3610 = vmatmul.mubr.bf16.gmra.mrb[0].mxu0 %v1700
      %v3611 = vpop.f32.mrb[0].mxu0
      %v3612 = vadd.f32 %v3323, %v3611
      %v3613 = vpop.f32.mrb[0].mxu0
      %v3614 = vpop.f32.mrb[0].mxu0
      %v3615 = vadd.f32 %v3326, %v3614
      %v3616 = vpop.f32.mrb[0].mxu0
      %3617 = vmatprep.mubr.bf16.mxu0 %v1710
      %3618 = vmatmul.mubr.bf16.gmra.mrb[0].mxu0 %v1709
      %v3619 = vpop.f32.mrb[0].mxu0
      %v3620 = vadd.f32 %v3331, %v3619
      %v3621 = vpop.f32.mrb[0].mxu0
      %v3622 = vpop.f32.mrb[0].mxu0
      %v3623 = vadd.f32 %v3334, %v3622
      %v3624 = vpop.f32.mrb[0].mxu0
      %3625 = vmatprep.mubr.bf16.mxu0 %v1719
      %3626 = vmatmul.mubr.bf16.gmra.mrb[0].mxu0 %v1718
      %v3627 = vpop.f32.mrb[0].mxu0
      %v3628 = vadd.f32 %v3339, %v3627
      %v3629 = vpop.f32.mrb[0].mxu0
      %v3630 = vpop.f32.mrb[0].mxu0
      %v3631 = vadd.f32 %v3342, %v3630
      %v3632 = vpop.f32.mrb[0].mxu0
      %3633 = vmatprep.mubr.bf16.mxu0 %v1728
      %3634 = vmatmul.mubr.bf16.gmra.mrb[0].mxu0 %v1727
      %v3635 = vpop.f32.mrb[0].mxu0
      %v3636 = vadd.f32 %v3347, %v3635
      %v3637 = vpop.f32.mrb[0].mxu0
      %v3638 = vpop.f32.mrb[0].mxu0
      %v3639 = vadd.f32 %v3350, %v3638
      %v3640 = vpop.f32.mrb[0].mxu0
      %3641 = vmatprep.mubr.bf16.mxu0 %v1737
      %3642 = vmatmul.mubr.bf16.gmra.mrb[0].mxu0 %v1736
      %v3643 = vpop.f32.mrb[0].mxu0
      %v3644 = vadd.f32 %v3355, %v3643
      %v3645 = vpop.f32.mrb[0].mxu0
      %v3646 = vpop.f32.mrb[0].mxu0
      %v3647 = vadd.f32 %v3358, %v3646
      %v3648 = vpop.f32.mrb[0].mxu0
      %3649 = vmatprep.mubr.bf16.mxu0 %v1746
      %3650 = vmatmul.mubr.bf16.gmra.mrb[0].mxu0 %v1745
      %v3651 = vpop.f32.mrb[0].mxu0
      %v3652 = vadd.f32 %v3363, %v3651
      %v3653 = vpop.f32.mrb[0].mxu0
      %v3654 = vpop.f32.mrb[0].mxu0
      %v3655 = vadd.f32 %v3366, %v3654
      %v3656 = vpop.f32.mrb[0].mxu0
      %3657 = vmatprep.mubr.bf16.mxu0 %v1755
      %3658 = vmatmul.mubr.bf16.gmra.mrb[0].mxu0 %v1754
      %v3659 = vpop.f32.mrb[0].mxu0
      %v3660 = vadd.f32 %v3371, %v3659
      %v3661 = vpop.f32.mrb[0].mxu0
      %v3662 = vpop.f32.mrb[0].mxu0
      %v3663 = vadd.f32 %v3374, %v3662
      %v3664 = vpop.f32.mrb[0].mxu0
      %3665 = vmatprep.mubr.bf16.mxu0 %v1764
      %3666 = vmatmul.mubr.bf16.gmra.mrb[0].mxu0 %v1763
      %v3667 = vpop.f32.mrb[0].mxu0
      %v3668 = vadd.f32 %v3379, %v3667
      %v3669 = vpop.f32.mrb[0].mxu0
      %v3670 = vpop.f32.mrb[0].mxu0
      %v3671 = vadd.f32 %v3382, %v3670
      %v3672 = vpop.f32.mrb[0].mxu0
      %3673 = vmatprep.mubr.bf16.mxu0 %v1773
      %3674 = vmatmul.mubr.bf16.gmra.mrb[0].mxu0 %v1772
      %v3675 = vpop.f32.mrb[0].mxu0
      %v3676 = vadd.f32 %v3387, %v3675
      %v3677 = vpop.f32.mrb[0].mxu0
      %v3678 = vpop.f32.mrb[0].mxu0
      %v3679 = vadd.f32 %v3390, %v3678
      %v3680 = vpop.f32.mrb[0].mxu0
      %3681 = vmatprep.mubr.bf16.mxu0 %v1782
      %3682 = vmatmul.mubr.bf16.gmra.mrb[0].mxu0 %v1781
      %v3683 = vpop.f32.mrb[0].mxu0
      %v3684 = vadd.f32 %v3395, %v3683
      %v3685 = vpop.f32.mrb[0].mxu0
      %v3686 = vpop.f32.mrb[0].mxu0
      %v3687 = vadd.f32 %v3398, %v3686
      %v3688 = vpop.f32.mrb[0].mxu0
      %3689 = vmatprep.mubr.bf16.mxu0 %v1791
      %3690 = vmatmul.mubr.bf16.gmra.mrb[0].mxu0 %v1790
      %v3691 = vpop.f32.mrb[0].mxu0
      %v3692 = vadd.f32 %v3403, %v3691
      %v3693 = vpop.f32.mrb[0].mxu0
      %v3694 = vpop.f32.mrb[0].mxu0
      %v3695 = vadd.f32 %v3406, %v3694
      %v3696 = vpop.f32.mrb[0].mxu0
      %3697 = vmatprep.mubr.bf16.mxu0 %v1800
      %3698 = vmatmul.mubr.bf16.gmra.mrb[0].mxu0 %v1799
      %v3699 = vpop.f32.mrb[0].mxu0
      %v3700 = vadd.f32 %v3411, %v3699
      %v3701 = vpop.f32.mrb[0].mxu0
      %v3702 = vpop.f32.mrb[0].mxu0
      %v3703 = vadd.f32 %v3414, %v3702
      %v3704 = vpop.f32.mrb[0].mxu0
      %3705 = vmatprep.mubr.bf16.mxu0 %v1809
      %3706 = vmatmul.mubr.bf16.gmra.mrb[0].mxu0 %v1808
      %v3707 = vpop.f32.mrb[0].mxu0
      %v3708 = vadd.f32 %v3419, %v3707
      %v3709 = vpop.f32.mrb[0].mxu0
      %v3710 = vpop.f32.mrb[0].mxu0
      %v3711 = vadd.f32 %v3422, %v3710
      %v3712 = vpop.f32.mrb[0].mxu0
      %3713 = vmatprep.mubr.bf16.mxu0 %v1818
      %3714 = vmatmul.mubr.bf16.gmra.mrb[0].mxu0 %v1817
      %v3715 = vpop.f32.mrb[0].mxu0
      %v3716 = vadd.f32 %v3427, %v3715
      %v3717 = vpop.f32.mrb[0].mxu0
      %v3718 = vpop.f32.mrb[0].mxu0
      %v3719 = vadd.f32 %v3430, %v3718
      %v3720 = vpop.f32.mrb[0].mxu0
      %3721 = vmatprep.mubr.bf16.mxu0 %v1827
      %3722 = vmatmul.mubr.bf16.gmra.mrb[0].mxu0 %v1826
      %v3723 = vpop.f32.mrb[0].mxu0
      %v3724 = vadd.f32 %v3435, %v3723
      %v3725 = vpop.f32.mrb[0].mxu0
      %v3726 = vpop.f32.mrb[0].mxu0
      %v3727 = vadd.f32 %v3438, %v3726
      %v3728 = vpop.f32.mrb[0].mxu0
      %3729 = vmatprep.mubr.bf16.mxu0 %v1836
      %3730 = vmatmul.mubr.bf16.gmra.mrb[0].mxu0 %v1835
      %v3731 = vpop.f32.mrb[0].mxu0
      %v3732 = vadd.f32 %v3443, %v3731
      %v3733 = vpop.f32.mrb[0].mxu0
      %v3734 = vpop.f32.mrb[0].mxu0
      %v3735 = vadd.f32 %v3446, %v3734
      %v3736 = vpop.f32.mrb[0].mxu0
      %3737 = vdwg.mxu0
      %3738 = vmatprep.subr.bf16.mxu0 0
      %3739 = vmatpush1.bf16.msra.mxu0 %v2580
      %3740 = vmatprep.subr.bf16.mxu0 0
      %3741 = vmatpush1.bf16.msra.mxu0 0
      %3742 = vmatprep.subr.bf16.mxu0 0
      %3743 = vmatpush1.bf16.msra.mxu0 0
      %3744 = vmatprep.subr.bf16.mxu0 0
      %3745 = vmatpush1.bf16.msra.mxu0 0
      %3746 = vmatprep.subr.bf16.mxu0 0
      %3747 = vmatpush1.bf16.msra.mxu0 0
      %3748 = vmatprep.subr.bf16.mxu0 0
      %3749 = vmatpush1.bf16.msra.mxu0 0
      %3750 = vmatprep.subr.bf16.mxu0 0
      %3751 = vmatpush1.bf16.msra.mxu0 0
      %3752 = vmatprep.subr.bf16.mxu0 0
      %3753 = vmatpush1.bf16.msra.mxu0 0
      %3754 = vmatprep.subr.bf16.mxu0 0
      %3755 = vmatpush1.bf16.msra.mxu0 0
      %3756 = vmatprep.subr.bf16.mxu0 0
      %3757 = vmatpush1.bf16.msra.mxu0 0
      %3758 = vmatprep.subr.bf16.mxu0 0
      %3759 = vmatpush1.bf16.msra.mxu0 0
      %3760 = vmatprep.subr.bf16.mxu0 0
      %3761 = vmatpush1.bf16.msra.mxu0 0
      %3762 = vmatprep.subr.bf16.mxu0 0
      %3763 = vmatpush1.bf16.msra.mxu0 0
      %3764 = vmatprep.subr.bf16.mxu0 0
      %3765 = vmatpush1.bf16.msra.mxu0 0
      %3766 = vmatprep.subr.bf16.mxu0 0
      %3767 = vmatpush1.bf16.msra.mxu0 0
      %3768 = vmatprep.subr.bf16.mxu0 0
      %3769 = vmatpush1.bf16.msra.mxu0 0
      %3770 = vmatprep.mubr.bf16.mxu0 0
      %3771 = vmatmul.mubr.bf16.gmra.mrb[0].mxu0 %v2483
      %v3772 = vpop.f32.mrb[0].mxu0
      %v3773 = vadd.f32 %v3484, %v3772
      %v3774 = vpop.f32.mrb[0].mxu0
      %v3775 = vpop.f32.mrb[0].mxu0
      %v3776 = vadd.f32 %v3487, %v3775
      %v3777 = vpop.f32.mrb[0].mxu0
      %3778 = vmatprep.mubr.bf16.mxu0 0
      %3779 = vmatmul.mubr.bf16.gmra.mrb[0].mxu0 %v2486
      %v3780 = vpop.f32.mrb[0].mxu0
      %v3781 = vadd.f32 %v3492, %v3780
      %v3782 = vpop.f32.mrb[0].mxu0
      %v3783 = vpop.f32.mrb[0].mxu0
      %v3784 = vadd.f32 %v3495, %v3783
      %v3785 = vpop.f32.mrb[0].mxu0
      %3786 = vmatprep.mubr.bf16.mxu0 0
      %3787 = vmatmul.mubr.bf16.gmra.mrb[0].mxu0 %v2489
      %v3788 = vpop.f32.mrb[0].mxu0
      %v3789 = vadd.f32 %v3500, %v3788
      %v3790 = vpop.f32.mrb[0].mxu0
      %v3791 = vpop.f32.mrb[0].mxu0
      %v3792 = vadd.f32 %v3503, %v3791
      %v3793 = vpop.f32.mrb[0].mxu0
      %3794 = vmatprep.mubr.bf16.mxu0 0
      %3795 = vmatmul.mubr.bf16.gmra.mrb[0].mxu0 %v2492
      %v3796 = vpop.f32.mrb[0].mxu0
      %v3797 = vadd.f32 %v3508, %v3796
      %v3798 = vpop.f32.mrb[0].mxu0
      %v3799 = vpop.f32.mrb[0].mxu0
      %v3800 = vadd.f32 %v3511, %v3799
      %v3801 = vpop.f32.mrb[0].mxu0
      %3802 = vmatprep.mubr.bf16.mxu0 0
      %3803 = vmatmul.mubr.bf16.gmra.mrb[0].mxu0 %v2495
      %v3804 = vpop.f32.mrb[0].mxu0
      %v3805 = vadd.f32 %v3516, %v3804
      %v3806 = vpop.f32.mrb[0].mxu0
      %v3807 = vpop.f32.mrb[0].mxu0
      %v3808 = vadd.f32 %v3519, %v3807
      %v3809 = vpop.f32.mrb[0].mxu0
      %3810 = vmatprep.mubr.bf16.mxu0 0
      %3811 = vmatmul.mubr.bf16.gmra.mrb[0].mxu0 %v2498
      %v3812 = vpop.f32.mrb[0].mxu0
      %v3813 = vadd.f32 %v3524, %v3812
      %v3814 = vpop.f32.mrb[0].mxu0
      %v3815 = vpop.f32.mrb[0].mxu0
      %v3816 = vadd.f32 %v3527, %v3815
      %v3817 = vpop.f32.mrb[0].mxu0
      %3818 = vmatprep.mubr.bf16.mxu0 0
      %3819 = vmatmul.mubr.bf16.gmra.mrb[0].mxu0 %v2501
      %v3820 = vpop.f32.mrb[0].mxu0
      %v3821 = vadd.f32 %v3532, %v3820
      %v3822 = vpop.f32.mrb[0].mxu0
      %v3823 = vpop.f32.mrb[0].mxu0
      %v3824 = vadd.f32 %v3535, %v3823
      %v3825 = vpop.f32.mrb[0].mxu0
      %3826 = vmatprep.mubr.bf16.mxu0 0
      %3827 = vmatmul.mubr.bf16.gmra.mrb[0].mxu0 %v2504
      %v3828 = vpop.f32.mrb[0].mxu0
      %v3829 = vadd.f32 %v3540, %v3828
      %v3830 = vpop.f32.mrb[0].mxu0
      %v3831 = vpop.f32.mrb[0].mxu0
      %v3832 = vadd.f32 %v3543, %v3831
      %v3833 = vpop.f32.mrb[0].mxu0
      %3834 = vmatprep.mubr.bf16.mxu0 0
      %3835 = vmatmul.mubr.bf16.gmra.mrb[0].mxu0 %v2507
      %v3836 = vpop.f32.mrb[0].mxu0
      %v3837 = vadd.f32 %v3548, %v3836
      %v3838 = vpop.f32.mrb[0].mxu0
      %v3839 = vpop.f32.mrb[0].mxu0
      %v3840 = vadd.f32 %v3551, %v3839
      %v3841 = vpop.f32.mrb[0].mxu0
      %3842 = vmatprep.mubr.bf16.mxu0 0
      %3843 = vmatmul.mubr.bf16.gmra.mrb[0].mxu0 %v2510
      %v3844 = vpop.f32.mrb[0].mxu0
      %v3845 = vadd.f32 %v3556, %v3844
      %v3846 = vpop.f32.mrb[0].mxu0
      %v3847 = vpop.f32.mrb[0].mxu0
      %v3848 = vadd.f32 %v3559, %v3847
      %v3849 = vpop.f32.mrb[0].mxu0
      %3850 = vmatprep.mubr.bf16.mxu0 0
      %3851 = vmatmul.mubr.bf16.gmra.mrb[0].mxu0 %v2513
      %v3852 = vpop.f32.mrb[0].mxu0
      %v3853 = vadd.f32 %v3564, %v3852
      %v3854 = vpop.f32.mrb[0].mxu0
      %v3855 = vpop.f32.mrb[0].mxu0
      %v3856 = vadd.f32 %v3567, %v3855
      %v3857 = vpop.f32.mrb[0].mxu0
      %3858 = vmatprep.mubr.bf16.mxu0 0
      %3859 = vmatmul.mubr.bf16.gmra.mrb[0].mxu0 %v2516
      %v3860 = vpop.f32.mrb[0].mxu0
      %v3861 = vadd.f32 %v3572, %v3860
      %v3862 = vpop.f32.mrb[0].mxu0
      %v3863 = vpop.f32.mrb[0].mxu0
      %v3864 = vadd.f32 %v3575, %v3863
      %v3865 = vpop.f32.mrb[0].mxu0
      %3866 = vmatprep.mubr.bf16.mxu0 0
      %3867 = vmatmul.mubr.bf16.gmra.mrb[0].mxu0 %v2519
      %v3868 = vpop.f32.mrb[0].mxu0
      %v3869 = vadd.f32 %v3580, %v3868
      %v3870 = vpop.f32.mrb[0].mxu0
      %v3871 = vpop.f32.mrb[0].mxu0
      %v3872 = vadd.f32 %v3583, %v3871
      %v3873 = vpop.f32.mrb[0].mxu0
      %3874 = vmatprep.mubr.bf16.mxu0 0
      %3875 = vmatmul.mubr.bf16.gmra.mrb[0].mxu0 %v2522
      %v3876 = vpop.f32.mrb[0].mxu0
      %v3877 = vadd.f32 %v3588, %v3876
      %v3878 = vpop.f32.mrb[0].mxu0
      %v3879 = vpop.f32.mrb[0].mxu0
      %v3880 = vadd.f32 %v3591, %v3879
      %v3881 = vpop.f32.mrb[0].mxu0
      %3882 = vmatprep.mubr.bf16.mxu0 0
      %3883 = vmatmul.mubr.bf16.gmra.mrb[0].mxu0 %v2525
      %v3884 = vpop.f32.mrb[0].mxu0
      %v3885 = vadd.f32 %v3596, %v3884
      %v3886 = vpop.f32.mrb[0].mxu0
      %v3887 = vpop.f32.mrb[0].mxu0
      %v3888 = vadd.f32 %v3599, %v3887
      %v3889 = vpop.f32.mrb[0].mxu0
      %3890 = vmatprep.mubr.bf16.mxu0 0
      %3891 = vmatmul.mubr.bf16.gmra.mrb[0].mxu0 %v2528
      %v3892 = vpop.f32.mrb[0].mxu0
      %v3893 = vadd.f32 %v3604, %v3892
      %v3894 = vpop.f32.mrb[0].mxu0
      %v3895 = vpop.f32.mrb[0].mxu0
      %v3896 = vadd.f32 %v3607, %v3895
      %v3897 = vpop.f32.mrb[0].mxu0
      %3898 = vmatprep.mubr.bf16.mxu0 0
      %3899 = vmatmul.mubr.bf16.gmra.mrb[0].mxu0 %v2531
      %v3900 = vpop.f32.mrb[0].mxu0
      %v3901 = vadd.f32 %v3612, %v3900
      %v3902 = vpop.f32.mrb[0].mxu0
      %v3903 = vpop.f32.mrb[0].mxu0
      %v3904 = vadd.f32 %v3615, %v3903
      %v3905 = vpop.f32.mrb[0].mxu0
      %3906 = vmatprep.mubr.bf16.mxu0 0
      %3907 = vmatmul.mubr.bf16.gmra.mrb[0].mxu0 %v2534
      %v3908 = vpop.f32.mrb[0].mxu0
      %v3909 = vadd.f32 %v3620, %v3908
      %v3910 = vpop.f32.mrb[0].mxu0
      %v3911 = vpop.f32.mrb[0].mxu0
      %v3912 = vadd.f32 %v3623, %v3911
      %v3913 = vpop.f32.mrb[0].mxu0
      %3914 = vmatprep.mubr.bf16.mxu0 0
      %3915 = vmatmul.mubr.bf16.gmra.mrb[0].mxu0 %v2537
      %v3916 = vpop.f32.mrb[0].mxu0
      %v3917 = vadd.f32 %v3628, %v3916
      %v3918 = vpop.f32.mrb[0].mxu0
      %v3919 = vpop.f32.mrb[0].mxu0
      %v3920 = vadd.f32 %v3631, %v3919
      %v3921 = vpop.f32.mrb[0].mxu0
      %3922 = vmatprep.mubr.bf16.mxu0 0
      %3923 = vmatmul.mubr.bf16.gmra.mrb[0].mxu0 %v2540
      %v3924 = vpop.f32.mrb[0].mxu0
      %v3925 = vadd.f32 %v3636, %v3924
      %v3926 = vpop.f32.mrb[0].mxu0
      %v3927 = vpop.f32.mrb[0].mxu0
      %v3928 = vadd.f32 %v3639, %v3927
      %v3929 = vpop.f32.mrb[0].mxu0
      %3930 = vmatprep.mubr.bf16.mxu0 0
      %3931 = vmatmul.mubr.bf16.gmra.mrb[0].mxu0 %v2543
      %v3932 = vpop.f32.mrb[0].mxu0
      %v3933 = vadd.f32 %v3644, %v3932
      %v3934 = vpop.f32.mrb[0].mxu0
      %v3935 = vpop.f32.mrb[0].mxu0
      %v3936 = vadd.f32 %v3647, %v3935
      %v3937 = vpop.f32.mrb[0].mxu0
      %3938 = vmatprep.mubr.bf16.mxu0 0
      %3939 = vmatmul.mubr.bf16.gmra.mrb[0].mxu0 %v2546
      %v3940 = vpop.f32.mrb[0].mxu0
      %v3941 = vadd.f32 %v3652, %v3940
      %v3942 = vpop.f32.mrb[0].mxu0
      %v3943 = vpop.f32.mrb[0].mxu0
      %v3944 = vadd.f32 %v3655, %v3943
      %v3945 = vpop.f32.mrb[0].mxu0
      %3946 = vmatprep.mubr.bf16.mxu0 0
      %3947 = vmatmul.mubr.bf16.gmra.mrb[0].mxu0 %v2549
      %v3948 = vpop.f32.mrb[0].mxu0
      %v3949 = vadd.f32 %v3660, %v3948
      %v3950 = vpop.f32.mrb[0].mxu0
      %v3951 = vpop.f32.mrb[0].mxu0
      %v3952 = vadd.f32 %v3663, %v3951
      %v3953 = vpop.f32.mrb[0].mxu0
      %3954 = vmatprep.mubr.bf16.mxu0 0
      %3955 = vmatmul.mubr.bf16.gmra.mrb[0].mxu0 %v2552
      %v3956 = vpop.f32.mrb[0].mxu0
      %v3957 = vadd.f32 %v3668, %v3956
      %v3958 = vpop.f32.mrb[0].mxu0
      %v3959 = vpop.f32.mrb[0].mxu0
      %v3960 = vadd.f32 %v3671, %v3959
      %v3961 = vpop.f32.mrb[0].mxu0
      %3962 = vmatprep.mubr.bf16.mxu0 0
      %3963 = vmatmul.mubr.bf16.gmra.mrb[0].mxu0 %v2555
      %v3964 = vpop.f32.mrb[0].mxu0
      %v3965 = vadd.f32 %v3676, %v3964
      %v3966 = vpop.f32.mrb[0].mxu0
      %v3967 = vpop.f32.mrb[0].mxu0
      %v3968 = vadd.f32 %v3679, %v3967
      %v3969 = vpop.f32.mrb[0].mxu0
      %3970 = vmatprep.mubr.bf16.mxu0 0
      %3971 = vmatmul.mubr.bf16.gmra.mrb[0].mxu0 %v2558
      %v3972 = vpop.f32.mrb[0].mxu0
      %v3973 = vadd.f32 %v3684, %v3972
      %v3974 = vpop.f32.mrb[0].mxu0
      %v3975 = vpop.f32.mrb[0].mxu0
      %v3976 = vadd.f32 %v3687, %v3975
      %v3977 = vpop.f32.mrb[0].mxu0
      %3978 = vmatprep.mubr.bf16.mxu0 0
      %3979 = vmatmul.mubr.bf16.gmra.mrb[0].mxu0 %v2561
      %v3980 = vpop.f32.mrb[0].mxu0
      %v3981 = vadd.f32 %v3692, %v3980
      %v3982 = vpop.f32.mrb[0].mxu0
      %v3983 = vpop.f32.mrb[0].mxu0
      %v3984 = vadd.f32 %v3695, %v3983
      %v3985 = vpop.f32.mrb[0].mxu0
      %3986 = vmatprep.mubr.bf16.mxu0 0
      %3987 = vmatmul.mubr.bf16.gmra.mrb[0].mxu0 %v2564
      %v3988 = vpop.f32.mrb[0].mxu0
      %v3989 = vadd.f32 %v3700, %v3988
      %v3990 = vpop.f32.mrb[0].mxu0
      %v3991 = vpop.f32.mrb[0].mxu0
      %v3992 = vadd.f32 %v3703, %v3991
      %v3993 = vpop.f32.mrb[0].mxu0
      %3994 = vmatprep.mubr.bf16.mxu0 0
      %3995 = vmatmul.mubr.bf16.gmra.mrb[0].mxu0 %v2567
      %v3996 = vpop.f32.mrb[0].mxu0
      %v3997 = vadd.f32 %v3708, %v3996
      %v3998 = vpop.f32.mrb[0].mxu0
      %v3999 = vpop.f32.mrb[0].mxu0
      %v4000 = vadd.f32 %v3711, %v3999
      %v4001 = vpop.f32.mrb[0].mxu0
      %4002 = vmatprep.mubr.bf16.mxu0 0
      %4003 = vmatmul.mubr.bf16.gmra.mrb[0].mxu0 %v2570
      %v4004 = vpop.f32.mrb[0].mxu0
      %v4005 = vadd.f32 %v3716, %v4004
      %v4006 = vpop.f32.mrb[0].mxu0
      %v4007 = vpop.f32.mrb[0].mxu0
      %v4008 = vadd.f32 %v3719, %v4007
      %v4009 = vpop.f32.mrb[0].mxu0
      %4010 = vmatprep.mubr.bf16.mxu0 0
      %4011 = vmatmul.mubr.bf16.gmra.mrb[0].mxu0 %v2573
      %v4012 = vpop.f32.mrb[0].mxu0
      %v4013 = vadd.f32 %v3724, %v4012
      %v4014 = vpop.f32.mrb[0].mxu0
      %v4015 = vpop.f32.mrb[0].mxu0
      %v4016 = vadd.f32 %v3727, %v4015
      %v4017 = vpop.f32.mrb[0].mxu0
      %4018 = vmatprep.mubr.bf16.mxu0 0
      %4019 = vmatmul.mubr.bf16.gmra.mrb[0].mxu0 %v2576
      %v4020 = vpop.f32.mrb[0].mxu0
      %v4021 = vadd.f32 %v3732, %v4020
      %v4022 = vpop.f32.mrb[0].mxu0
      %v4023 = vpop.f32.mrb[0].mxu0
      %v4024 = vadd.f32 %v3735, %v4023
      %v4025 = vpop.f32.mrb[0].mxu0
      %4026 = vdwg.mxu0
      %v4027 = vld [vmem:[%s2] sm:$0x1]
      %v4029 = vlaneseq
      %v4030 = vshrl.u32 %v4029, 7
      %v4031 = vsub.s32 0, %v4030
      %v4032 = vrot.slane %v4027, %v4031
      %v4034 = vmul.f32 %v3773, %v4032
      %v4035 = vmul.f32 %v3776, %v4032
      %v4036 = vmul.f32 %v3781, %v4032
      %v4037 = vmul.f32 %v3784, %v4032
      %v4038 = vmul.f32 %v3789, %v4032
      %v4039 = vmul.f32 %v3792, %v4032
      %v4040 = vmul.f32 %v3797, %v4032
      %v4041 = vmul.f32 %v3800, %v4032
      %v4042 = vmul.f32 %v3805, %v4032
      %v4043 = vmul.f32 %v3808, %v4032
      %v4044 = vmul.f32 %v3813, %v4032
      %v4045 = vmul.f32 %v3816, %v4032
      %v4046 = vmul.f32 %v3821, %v4032
      %v4047 = vmul.f32 %v3824, %v4032
      %v4048 = vmul.f32 %v3829, %v4032
      %v4049 = vmul.f32 %v3832, %v4032
      %v4050 = vmul.f32 %v3837, %v4032
      %v4051 = vmul.f32 %v3840, %v4032
      %v4052 = vmul.f32 %v3845, %v4032
      %v4053 = vmul.f32 %v3848, %v4032
      %v4054 = vmul.f32 %v3853, %v4032
      %v4055 = vmul.f32 %v3856, %v4032
      %v4056 = vmul.f32 %v3861, %v4032
      %v4057 = vmul.f32 %v3864, %v4032
      %v4058 = vmul.f32 %v3869, %v4032
      %v4059 = vmul.f32 %v3872, %v4032
      %v4060 = vmul.f32 %v3877, %v4032
      %v4061 = vmul.f32 %v3880, %v4032
      %v4062 = vmul.f32 %v3885, %v4032
      %v4063 = vmul.f32 %v3888, %v4032
      %v4064 = vmul.f32 %v3893, %v4032
      %v4065 = vmul.f32 %v3896, %v4032
      %v4066 = vmul.f32 %v3901, %v4032
      %v4067 = vmul.f32 %v3904, %v4032
      %v4068 = vmul.f32 %v3909, %v4032
      %v4069 = vmul.f32 %v3912, %v4032
      %v4070 = vmul.f32 %v3917, %v4032
      %v4071 = vmul.f32 %v3920, %v4032
      %v4072 = vmul.f32 %v3925, %v4032
      %v4073 = vmul.f32 %v3928, %v4032
      %v4074 = vmul.f32 %v3933, %v4032
      %v4075 = vmul.f32 %v3936, %v4032
      %v4076 = vmul.f32 %v3941, %v4032
      %v4077 = vmul.f32 %v3944, %v4032
      %v4078 = vmul.f32 %v3949, %v4032
      %v4079 = vmul.f32 %v3952, %v4032
      %v4080 = vmul.f32 %v3957, %v4032
      %v4081 = vmul.f32 %v3960, %v4032
      %v4082 = vmul.f32 %v3965, %v4032
      %v4083 = vmul.f32 %v3968, %v4032
      %v4084 = vmul.f32 %v3973, %v4032
      %v4085 = vmul.f32 %v3976, %v4032
      %v4086 = vmul.f32 %v3981, %v4032
      %v4087 = vmul.f32 %v3984, %v4032
      %v4088 = vmul.f32 %v3989, %v4032
      %v4089 = vmul.f32 %v3992, %v4032
      %v4090 = vmul.f32 %v3997, %v4032
      %v4091 = vmul.f32 %v4000, %v4032
      %v4092 = vmul.f32 %v4005, %v4032
      %v4093 = vmul.f32 %v4008, %v4032
      %v4094 = vmul.f32 %v4013, %v4032
      %v4095 = vmul.f32 %v4016, %v4032
      %v4096 = vmul.f32 %v4021, %v4032
      %v4097 = vmul.f32 %v4024, %v4032
      %v4098 = vld [vmem:[%s3] sm:$0x1]
      %v4100 = vlaneseq
      %v4101 = vshrl.u32 %v4100, 7
      %v4102 = vsub.s32 0, %v4101
      %v4103 = vrot.slane %v4098, %v4102
      %v4105 = vadd.f32 %v4034, %v4103
      %v4106 = vadd.f32 %v4035, %v4103
      %v4107 = vadd.f32 %v4036, %v4103
      %v4108 = vadd.f32 %v4037, %v4103
      %v4109 = vadd.f32 %v4038, %v4103
      %v4110 = vadd.f32 %v4039, %v4103
      %v4111 = vadd.f32 %v4040, %v4103
      %v4112 = vadd.f32 %v4041, %v4103
      %v4113 = vadd.f32 %v4042, %v4103
      %v4114 = vadd.f32 %v4043, %v4103
      %v4115 = vadd.f32 %v4044, %v4103
      %v4116 = vadd.f32 %v4045, %v4103
      %v4117 = vadd.f32 %v4046, %v4103
      %v4118 = vadd.f32 %v4047, %v4103
      %v4119 = vadd.f32 %v4048, %v4103
      %v4120 = vadd.f32 %v4049, %v4103
      %v4121 = vadd.f32 %v4050, %v4103
      %v4122 = vadd.f32 %v4051, %v4103
      %v4123 = vadd.f32 %v4052, %v4103
      %v4124 = vadd.f32 %v4053, %v4103
      %v4125 = vadd.f32 %v4054, %v4103
      %v4126 = vadd.f32 %v4055, %v4103
      %v4127 = vadd.f32 %v4056, %v4103
      %v4128 = vadd.f32 %v4057, %v4103
      %v4129 = vadd.f32 %v4058, %v4103
      %v4130 = vadd.f32 %v4059, %v4103
      %v4131 = vadd.f32 %v4060, %v4103
      %v4132 = vadd.f32 %v4061, %v4103
      %v4133 = vadd.f32 %v4062, %v4103
      %v4134 = vadd.f32 %v4063, %v4103
      %v4135 = vadd.f32 %v4064, %v4103
      %v4136 = vadd.f32 %v4065, %v4103
      %v4137 = vadd.f32 %v4066, %v4103
      %v4138 = vadd.f32 %v4067, %v4103
      %v4139 = vadd.f32 %v4068, %v4103
      %v4140 = vadd.f32 %v4069, %v4103
      %v4141 = vadd.f32 %v4070, %v4103
      %v4142 = vadd.f32 %v4071, %v4103
      %v4143 = vadd.f32 %v4072, %v4103
      %v4144 = vadd.f32 %v4073, %v4103
      %v4145 = vadd.f32 %v4074, %v4103
      %v4146 = vadd.f32 %v4075, %v4103
      %v4147 = vadd.f32 %v4076, %v4103
      %v4148 = vadd.f32 %v4077, %v4103
      %v4149 = vadd.f32 %v4078, %v4103
      %v4150 = vadd.f32 %v4079, %v4103
      %v4151 = vadd.f32 %v4080, %v4103
      %v4152 = vadd.f32 %v4081, %v4103
      %v4153 = vadd.f32 %v4082, %v4103
      %v4154 = vadd.f32 %v4083, %v4103
      %v4155 = vadd.f32 %v4084, %v4103
      %v4156 = vadd.f32 %v4085, %v4103
      %v4157 = vadd.f32 %v4086, %v4103
      %v4158 = vadd.f32 %v4087, %v4103
      %v4159 = vadd.f32 %v4088, %v4103
      %v4160 = vadd.f32 %v4089, %v4103
      %v4161 = vadd.f32 %v4090, %v4103
      %v4162 = vadd.f32 %v4091, %v4103
      %v4163 = vadd.f32 %v4092, %v4103
      %v4164 = vadd.f32 %v4093, %v4103
      %v4165 = vadd.f32 %v4094, %v4103
      %v4166 = vadd.f32 %v4095, %v4103
      %v4167 = vadd.f32 %v4096, %v4103
      %v4168 = vadd.f32 %v4097, %v4103
      %v4169 = vmax.f32 %v4105, 0.0
      %v4170 = vmax.f32 %v4106, 0.0
      %v4171 = vmax.f32 %v4107, 0.0
      %v4172 = vmax.f32 %v4108, 0.0
      %v4173 = vmax.f32 %v4109, 0.0
      %v4174 = vmax.f32 %v4110, 0.0
      %v4175 = vmax.f32 %v4111, 0.0
      %v4176 = vmax.f32 %v4112, 0.0
      %v4177 = vmax.f32 %v4113, 0.0
      %v4178 = vmax.f32 %v4114, 0.0
      %v4179 = vmax.f32 %v4115, 0.0
      %v4180 = vmax.f32 %v4116, 0.0
      %v4181 = vmax.f32 %v4117, 0.0
      %v4182 = vmax.f32 %v4118, 0.0
      %v4183 = vmax.f32 %v4119, 0.0
      %v4184 = vmax.f32 %v4120, 0.0
      %v4185 = vmax.f32 %v4121, 0.0
      %v4186 = vmax.f32 %v4122, 0.0
      %v4187 = vmax.f32 %v4123, 0.0
      %v4188 = vmax.f32 %v4124, 0.0
      %v4189 = vmax.f32 %v4125, 0.0
      %v4190 = vmax.f32 %v4126, 0.0
      %v4191 = vmax.f32 %v4127, 0.0
      %v4192 = vmax.f32 %v4128, 0.0
      %v4193 = vmax.f32 %v4129, 0.0
      %v4194 = vmax.f32 %v4130, 0.0
      %v4195 = vmax.f32 %v4131, 0.0
      %v4196 = vmax.f32 %v4132, 0.0
      %v4197 = vmax.f32 %v4133, 0.0
      %v4198 = vmax.f32 %v4134, 0.0
      %v4199 = vmax.f32 %v4135, 0.0
      %v4200 = vmax.f32 %v4136, 0.0
      %v4201 = vmax.f32 %v4137, 0.0
      %v4202 = vmax.f32 %v4138, 0.0
      %v4203 = vmax.f32 %v4139, 0.0
      %v4204 = vmax.f32 %v4140, 0.0
      %v4205 = vmax.f32 %v4141, 0.0
      %v4206 = vmax.f32 %v4142, 0.0
      %v4207 = vmax.f32 %v4143, 0.0
      %v4208 = vmax.f32 %v4144, 0.0
      %v4209 = vmax.f32 %v4145, 0.0
      %v4210 = vmax.f32 %v4146, 0.0
      %v4211 = vmax.f32 %v4147, 0.0
      %v4212 = vmax.f32 %v4148, 0.0
      %v4213 = vmax.f32 %v4149, 0.0
      %v4214 = vmax.f32 %v4150, 0.0
      %v4215 = vmax.f32 %v4151, 0.0
      %v4216 = vmax.f32 %v4152, 0.0
      %v4217 = vmax.f32 %v4153, 0.0
      %v4218 = vmax.f32 %v4154, 0.0
      %v4219 = vmax.f32 %v4155, 0.0
      %v4220 = vmax.f32 %v4156, 0.0
      %v4221 = vmax.f32 %v4157, 0.0
      %v4222 = vmax.f32 %v4158, 0.0
      %v4223 = vmax.f32 %v4159, 0.0
      %v4224 = vmax.f32 %v4160, 0.0
      %v4225 = vmax.f32 %v4161, 0.0
      %v4226 = vmax.f32 %v4162, 0.0
      %v4227 = vmax.f32 %v4163, 0.0
      %v4228 = vmax.f32 %v4164, 0.0
      %v4229 = vmax.f32 %v4165, 0.0
      %v4230 = vmax.f32 %v4166, 0.0
      %v4231 = vmax.f32 %v4167, 0.0
      %v4232 = vmax.f32 %v4168, 0.0
      %v4233 = vpack.c.bf16 %v4170, %v4169
      %v4234 = vpack.c.bf16 %v4172, %v4171
      %v4235 = vpack.c.bf16 %v4174, %v4173
      %v4236 = vpack.c.bf16 %v4176, %v4175
      %v4237 = vpack.c.bf16 %v4178, %v4177
      %v4238 = vpack.c.bf16 %v4180, %v4179
      %v4239 = vpack.c.bf16 %v4182, %v4181
      %v4240 = vpack.c.bf16 %v4184, %v4183
      %v4241 = vpack.c.bf16 %v4186, %v4185
      %v4242 = vpack.c.bf16 %v4188, %v4187
      %v4243 = vpack.c.bf16 %v4190, %v4189
      %v4244 = vpack.c.bf16 %v4192, %v4191
      %v4245 = vpack.c.bf16 %v4194, %v4193
      %v4246 = vpack.c.bf16 %v4196, %v4195
      %v4247 = vpack.c.bf16 %v4198, %v4197
      %v4248 = vpack.c.bf16 %v4200, %v4199
      %v4249 = vpack.c.bf16 %v4202, %v4201
      %v4250 = vpack.c.bf16 %v4204, %v4203
      %v4251 = vpack.c.bf16 %v4206, %v4205
      %v4252 = vpack.c.bf16 %v4208, %v4207
      %v4253 = vpack.c.bf16 %v4210, %v4209
      %v4254 = vpack.c.bf16 %v4212, %v4211
      %v4255 = vpack.c.bf16 %v4214, %v4213
      %v4256 = vpack.c.bf16 %v4216, %v4215
      %v4257 = vpack.c.bf16 %v4218, %v4217
      %v4258 = vpack.c.bf16 %v4220, %v4219
      %v4259 = vpack.c.bf16 %v4222, %v4221
      %v4260 = vpack.c.bf16 %v4224, %v4223
      %v4261 = vpack.c.bf16 %v4226, %v4225
      %v4262 = vpack.c.bf16 %v4228, %v4227
      %v4263 = vpack.c.bf16 %v4230, %v4229
      %v4264 = vpack.c.bf16 %v4232, %v4231
      %v4297 = vunpack.c.l.b16 %v4233
      %v4298 = vunpack.c.h.b16 %v4233
      %v4299 = vunpack.c.l.b16 %v4234
      %v4300 = vunpack.c.h.b16 %v4234
      %v4301 = vunpack.c.l.b16 %v4235
      %v4302 = vunpack.c.h.b16 %v4235
      %v4303 = vunpack.c.l.b16 %v4236
      %v4304 = vunpack.c.h.b16 %v4236
      %v4305 = vunpack.c.l.b16 %v4237
      %v4306 = vunpack.c.h.b16 %v4237
      %v4307 = vunpack.c.l.b16 %v4238
      %v4308 = vunpack.c.h.b16 %v4238
      %v4309 = vunpack.c.l.b16 %v4239
      %v4310 = vunpack.c.h.b16 %v4239
      %v4311 = vunpack.c.l.b16 %v4240
      %v4312 = vunpack.c.h.b16 %v4240
      %v4313 = vunpack.c.l.b16 %v4241
      %v4314 = vunpack.c.h.b16 %v4241
      %v4315 = vunpack.c.l.b16 %v4242
      %v4316 = vunpack.c.h.b16 %v4242
      %v4317 = vunpack.c.l.b16 %v4243
      %v4318 = vunpack.c.h.b16 %v4243
      %v4319 = vunpack.c.l.b16 %v4244
      %v4320 = vunpack.c.h.b16 %v4244
      %v4321 = vunpack.c.l.b16 %v4245
      %v4322 = vunpack.c.h.b16 %v4245
      %v4323 = vunpack.c.l.b16 %v4246
      %v4324 = vunpack.c.h.b16 %v4246
      %v4325 = vunpack.c.l.b16 %v4247
      %v4326 = vunpack.c.h.b16 %v4247
      %v4327 = vunpack.c.l.b16 %v4248
      %v4328 = vunpack.c.h.b16 %v4248
      %v4329 = vunpack.c.l.b16 %v4249
      %v4330 = vunpack.c.h.b16 %v4249
      %v4331 = vunpack.c.l.b16 %v4250
      %v4332 = vunpack.c.h.b16 %v4250
      %v4333 = vunpack.c.l.b16 %v4251
      %v4334 = vunpack.c.h.b16 %v4251
      %v4335 = vunpack.c.l.b16 %v4252
      %v4336 = vunpack.c.h.b16 %v4252
      %v4337 = vunpack.c.l.b16 %v4253
      %v4338 = vunpack.c.h.b16 %v4253
      %v4339 = vunpack.c.l.b16 %v4254
      %v4340 = vunpack.c.h.b16 %v4254
      %v4341 = vunpack.c.l.b16 %v4255
      %v4342 = vunpack.c.h.b16 %v4255
      %v4343 = vunpack.c.l.b16 %v4256
      %v4344 = vunpack.c.h.b16 %v4256
      %v4345 = vunpack.c.l.b16 %v4257
      %v4346 = vunpack.c.h.b16 %v4257
      %v4347 = vunpack.c.l.b16 %v4258
      %v4348 = vunpack.c.h.b16 %v4258
      %v4349 = vunpack.c.l.b16 %v4259
      %v4350 = vunpack.c.h.b16 %v4259
      %v4351 = vunpack.c.l.b16 %v4260
      %v4352 = vunpack.c.h.b16 %v4260
      %v4353 = vunpack.c.l.b16 %v4261
      %v4354 = vunpack.c.h.b16 %v4261
      %v4355 = vunpack.c.l.b16 %v4262
      %v4356 = vunpack.c.h.b16 %v4262
      %v4357 = vunpack.c.l.b16 %v4263
      %v4358 = vunpack.c.h.b16 %v4263
      %v4359 = vunpack.c.l.b16 %v4264
      %v4360 = vunpack.c.h.b16 %v4264
      %v4361 = vpack.c.b16 %v4297, %v4297
      %v4362 = vpack.c.b16 %v4298, %v4298
      %v4363 = vpack.c.b16 %v4299, %v4299
      %v4364 = vpack.c.b16 %v4300, %v4300
      %v4365 = vpack.c.b16 %v4301, %v4301
      %v4366 = vpack.c.b16 %v4302, %v4302
      %v4367 = vpack.c.b16 %v4303, %v4303
      %v4368 = vpack.c.b16 %v4304, %v4304
      %v4369 = vpack.c.b16 %v4305, %v4305
      %v4370 = vpack.c.b16 %v4306, %v4306
      %v4371 = vpack.c.b16 %v4307, %v4307
      %v4372 = vpack.c.b16 %v4308, %v4308
      %v4373 = vpack.c.b16 %v4309, %v4309
      %v4374 = vpack.c.b16 %v4310, %v4310
      %v4375 = vpack.c.b16 %v4311, %v4311
      %v4376 = vpack.c.b16 %v4312, %v4312
      %v4377 = vpack.c.b16 %v4313, %v4313
      %v4378 = vpack.c.b16 %v4314, %v4314
      %v4379 = vpack.c.b16 %v4315, %v4315
      %v4380 = vpack.c.b16 %v4316, %v4316
      %v4381 = vpack.c.b16 %v4317, %v4317
      %v4382 = vpack.c.b16 %v4318, %v4318
      %v4383 = vpack.c.b16 %v4319, %v4319
      %v4384 = vpack.c.b16 %v4320, %v4320
      %v4385 = vpack.c.b16 %v4321, %v4321
      %v4386 = vpack.c.b16 %v4322, %v4322
      %v4387 = vpack.c.b16 %v4323, %v4323
      %v4388 = vpack.c.b16 %v4324, %v4324
      %v4389 = vpack.c.b16 %v4325, %v4325
      %v4390 = vpack.c.b16 %v4326, %v4326
      %v4391 = vpack.c.b16 %v4327, %v4327
      %v4392 = vpack.c.b16 %v4328, %v4328
      %v4393 = vpack.c.b16 %v4329, %v4329
      %v4394 = vpack.c.b16 %v4330, %v4330
      %v4395 = vpack.c.b16 %v4331, %v4331
      %v4396 = vpack.c.b16 %v4332, %v4332
      %v4397 = vpack.c.b16 %v4333, %v4333
      %v4398 = vpack.c.b16 %v4334, %v4334
      %v4399 = vpack.c.b16 %v4335, %v4335
      %v4400 = vpack.c.b16 %v4336, %v4336
      %v4401 = vpack.c.b16 %v4337, %v4337
      %v4402 = vpack.c.b16 %v4338, %v4338
      %v4403 = vpack.c.b16 %v4339, %v4339
      %v4404 = vpack.c.b16 %v4340, %v4340
      %v4405 = vpack.c.b16 %v4341, %v4341
      %v4406 = vpack.c.b16 %v4342, %v4342
      %v4407 = vpack.c.b16 %v4343, %v4343
      %v4408 = vpack.c.b16 %v4344, %v4344
      %v4409 = vpack.c.b16 %v4345, %v4345
      %v4410 = vpack.c.b16 %v4346, %v4346
      %v4411 = vpack.c.b16 %v4347, %v4347
      %v4412 = vpack.c.b16 %v4348, %v4348
      %v4413 = vpack.c.b16 %v4349, %v4349
      %v4414 = vpack.c.b16 %v4350, %v4350
      %v4415 = vpack.c.b16 %v4351, %v4351
      %v4416 = vpack.c.b16 %v4352, %v4352
      %v4417 = vpack.c.b16 %v4353, %v4353
      %v4418 = vpack.c.b16 %v4354, %v4354
      %v4419 = vpack.c.b16 %v4355, %v4355
      %v4420 = vpack.c.b16 %v4356, %v4356
      %v4421 = vpack.c.b16 %v4357, %v4357
      %v4422 = vpack.c.b16 %v4358, %v4358
      %v4423 = vpack.c.b16 %v4359, %v4359
      %v4424 = vpack.c.b16 %v4360, %v4360
      %4489 = vst [vmem:[%s202] sm:$0xf] %v4361
      %4490 = vst [vmem:[%s202 + $0x4] sm:$0xf] %v4362
      %4491 = vst [vmem:[%s202 + $0x8] sm:$0xf] %v4363
      %4492 = vst [vmem:[%s202 + $0xc] sm:$0xf] %v4364
      %4493 = vst [vmem:[%s202 + $0x10] sm:$0xf] %v4365
      %4494 = vst [vmem:[%s202 + $0x14] sm:$0xf] %v4366
      %4495 = vst [vmem:[%s202 + $0x18] sm:$0xf] %v4367
      %4496 = vst [vmem:[%s202 + $0x1c] sm:$0xf] %v4368
      %4497 = vst [vmem:[%s202 + $0x20] sm:$0xf] %v4369
      %4498 = vst [vmem:[%s202 + $0x24] sm:$0xf] %v4370
      %4499 = vst [vmem:[%s202 + $0x28] sm:$0xf] %v4371
      %4500 = vst [vmem:[%s202 + $0x2c] sm:$0xf] %v4372
      %4501 = vst [vmem:[%s202 + $0x30] sm:$0xf] %v4373
      %4502 = vst [vmem:[%s202 + $0x34] sm:$0xf] %v4374
      %4503 = vst [vmem:[%s202 + $0x38] sm:$0xf] %v4375
      %4504 = vst [vmem:[%s202 + $0x3c] sm:$0xf] %v4376
      %4505 = vst [vmem:[%s202 + $0x40] sm:$0xf] %v4377
      %4506 = vst [vmem:[%s202 + $0x44] sm:$0xf] %v4378
      %4507 = vst [vmem:[%s202 + $0x48] sm:$0xf] %v4379
      %4508 = vst [vmem:[%s202 + $0x4c] sm:$0xf] %v4380
      %4509 = vst [vmem:[%s202 + $0x50] sm:$0xf] %v4381
      %4510 = vst [vmem:[%s202 + $0x54] sm:$0xf] %v4382
      %4511 = vst [vmem:[%s202 + $0x58] sm:$0xf] %v4383
      %4512 = vst [vmem:[%s202 + $0x5c] sm:$0xf] %v4384
      %4513 = vst [vmem:[%s202 + $0x60] sm:$0xf] %v4385
      %4514 = vst [vmem:[%s202 + $0x64] sm:$0xf] %v4386
      %4515 = vst [vmem:[%s202 + $0x68] sm:$0xf] %v4387
      %4516 = vst [vmem:[%s202 + $0x6c] sm:$0xf] %v4388
      %4517 = vst [vmem:[%s202 + $0x70] sm:$0xf] %v4389
      %4518 = vst [vmem:[%s202 + $0x74] sm:$0xf] %v4390
      %4519 = vst [vmem:[%s202 + $0x78] sm:$0xf] %v4391
      %4520 = vst [vmem:[%s202 + $0x7c] sm:$0xf] %v4392
      %4521 = vst [vmem:[%s202 + $0x80] sm:$0xf] %v4393
      %4522 = vst [vmem:[%s202 + $0x84] sm:$0xf] %v4394
      %4523 = vst [vmem:[%s202 + $0x88] sm:$0xf] %v4395
      %4524 = vst [vmem:[%s202 + $0x8c] sm:$0xf] %v4396
      %4525 = vst [vmem:[%s202 + $0x90] sm:$0xf] %v4397
      %4526 = vst [vmem:[%s202 + $0x94] sm:$0xf] %v4398
      %4527 = vst [vmem:[%s202 + $0x98] sm:$0xf] %v4399
      %4528 = vst [vmem:[%s202 + $0x9c] sm:$0xf] %v4400
      %4529 = vst [vmem:[%s202 + $0xa0] sm:$0xf] %v4401
      %4530 = vst [vmem:[%s202 + $0xa4] sm:$0xf] %v4402
      %4531 = vst [vmem:[%s202 + $0xa8] sm:$0xf] %v4403
      %4532 = vst [vmem:[%s202 + $0xac] sm:$0xf] %v4404
      %4533 = vst [vmem:[%s202 + $0xb0] sm:$0xf] %v4405
      %4534 = vst [vmem:[%s202 + $0xb4] sm:$0xf] %v4406
      %4535 = vst [vmem:[%s202 + $0xb8] sm:$0xf] %v4407
      %4536 = vst [vmem:[%s202 + $0xbc] sm:$0xf] %v4408
      %4537 = vst [vmem:[%s202 + $0xc0] sm:$0xf] %v4409
      %4538 = vst [vmem:[%s202 + $0xc4] sm:$0xf] %v4410
      %4539 = vst [vmem:[%s202 + $0xc8] sm:$0xf] %v4411
      %4540 = vst [vmem:[%s202 + $0xcc] sm:$0xf] %v4412
      %4541 = vst [vmem:[%s202 + $0xd0] sm:$0xf] %v4413
      %4542 = vst [vmem:[%s202 + $0xd4] sm:$0xf] %v4414
      %4543 = vst [vmem:[%s202 + $0xd8] sm:$0xf] %v4415
      %4544 = vst [vmem:[%s202 + $0xdc] sm:$0xf] %v4416
      %4545 = vst [vmem:[%s202 + $0xe0] sm:$0xf] %v4417
      %4546 = vst [vmem:[%s202 + $0xe4] sm:$0xf] %v4418
      %4547 = vst [vmem:[%s202 + $0xe8] sm:$0xf] %v4419
      %4548 = vst [vmem:[%s202 + $0xec] sm:$0xf] %v4420
      %4549 = vst [vmem:[%s202 + $0xf0] sm:$0xf] %v4421
      %4550 = vst [vmem:[%s202 + $0xf4] sm:$0xf] %v4422
      %4551 = vst [vmem:[%s202 + $0xf8] sm:$0xf] %v4423
      %4552 = vst [vmem:[%s202 + $0xfc] sm:$0xf] %v4424
      %s4553 = smul.u32 64, %s15
      %p4554 = scmp.lt.s32.totalorder %s4553, 255
      %s4555 = scalar_select %p4554, %s4553, 255
      %s4556 = smul.addr %s4555, 4
      %s4557 = scalar_lea.vmem %s4, %s4556
      // Predicated region
      $region37: #{matmul_bn_relu.1} parent=35 // pred_check
        %p4558 = pneg %p122
      $region38: #{matmul_bn_relu.1} parent=35 // pred_check_branch
        %4560 = sbr.rel (%p4558) target = $region40
      $region39: #{matmul_bn_relu.1} parent=35 // pred_region
        %s4561 = smul.u32 64, %s15
      $region40: #{matmul_bn_relu.1} parent=35 // pred_fallthru
        _
    $region36: #{matmul_bn_relu.1} parent=5 // pred_fallthru
      _
    %p4562 = scmp.le.s32.totalorder 2, %s10
    // Predicated region
    $region41: #{matmul_bn_relu.1} parent=5 // pred_check
      %p4563 = pneg %p4562
    $region42: #{matmul_bn_relu.1} parent=5 // pred_check_branch
      %4565 = sbr.rel (%p4563) target = $region44
    $region43: #{matmul_bn_relu.1} parent=5 // pred_region
      %s4566 = ssub.s32 %s10, 2
      // Predicated region
      $region45: #{matmul_bn_relu.1} parent=43 // pred_check
        %p4567 = pneg %p128
      $region46: #{matmul_bn_relu.1} parent=43 // pred_check_branch
        %4569 = sbr.rel (%p4567) target = $region48
      $region47: #{matmul_bn_relu.1} parent=43 // pred_region
        %s4570 = smul.u32 64, %s16
        %p4571 = scmp.lt.s32.totalorder %s4570, 255
        %s4572 = scalar_select %p4571, %s4570, 255
        %s4573 = smul.addr %s4572, 4
        %s4574 = scalar_lea.vmem %s4, %s4573
      $region48: #{matmul_bn_relu.1} parent=43 // pred_fallthru
        _
    $region44: #{matmul_bn_relu.1} parent=5 // pred_fallthru
      _
  $region6: #{matmul_bn_relu.1} parent=0 // loop_footer
    %s14 = sadd.s32 1, %s10
  $region7: #{matmul_bn_relu.1} parent=0 // loop_footer_branch
    %9 = sbr.rel target = $region3
  $region8: #{matmul_bn_relu.1} parent=0 // loop_exit
    _

</llo_original>
